<compile_context>
chip_gen: v6e
topology: v6e:2x2x1
jax: 0.10.0
libtpu: 0.0.40
codegen_flags: <defaults>
</compile_context>

<pallas_src>
import math
import functools

import jax
import jax.numpy as jnp
from jax.experimental import pallas as pl
from jax.experimental.pallas import tpu as pltpu


def _gelu(x):
    # exact port of the module-level torch gelu()
    return 0.5 * x * (1.0 + jnp.tanh(math.sqrt(2.0 / math.pi) * (x + 0.044715 * x ** 3)))


def _layernorm(v, gamma, beta, eps):
    mean = jnp.mean(v, axis=-1, keepdims=True)
    c = v - mean
    var = jnp.mean(c * c, axis=-1, keepdims=True)
    return gamma * (c * jax.lax.rsqrt(var + eps)) + beta


def transformer_block_kernel(
    x_ref,
    wq_ref, bq_ref, wk_ref, bk_ref, wv_ref, bv_ref, wo_ref, bo_ref,
    w1_ref, b1_ref, w2_ref, b2_ref,
    g1_ref, be1_ref, g2_ref, be2_ref,
    out_ref,
    ctx_ref,
    *, n_heads, d_key, b_tile, seq_len, eps, hf_chunk, ew_bf16,
):
    f32 = jnp.float32
    bf16 = jnp.bfloat16
    S = seq_len
    D = d_key
    Hf = w1_ref.shape[1]

    x = x_ref[...]                                  # (M, E) f32, M = b_tile*S
    x_b = x.astype(bf16)

    # ---- fused QKV projections: lane-dense (M,E)x(E,E) MXU GEMMs ----------
    # (the 1/sqrt(D) softmax scale is folded into WQ/bQ in the wrapper)
    q_all = (jnp.dot(x_b, wq_ref[...], preferred_element_type=f32)
             + bq_ref[...]).astype(bf16)
    k_all = (jnp.dot(x_b, wk_ref[...], preferred_element_type=f32)
             + bk_ref[...]).astype(bf16)
    v_all = (jnp.dot(x_b, wv_ref[...], preferred_element_type=f32)
             + bv_ref[...]).astype(bf16)

    # ---- per-head attention; context written back at lane offset h*D ------
    # Static unroll: trip count is n_heads (small) and the body no longer
    # contains the big GEMMs, so live-range pressure is bounded.  Dynamic lane
    # offsets under lax.fori_loop are avoided because d_key need not be
    # lane-aligned.
    for h in range(n_heads):
        lo = h * D
        q_h = q_all[:, lo:lo + D].reshape(b_tile, S, D)
        k_h = k_all[:, lo:lo + D].reshape(b_tile, S, D)
        v_h = v_all[:, lo:lo + D].reshape(b_tile, S, D)

        score = jnp.einsum("bqd,bkd->bqk", q_h, k_h,
                           preferred_element_type=f32)          # (b_tile,S,S)
        score = score - jnp.max(score, axis=-1, keepdims=True)
        p = jnp.exp(score)
        denom = jnp.sum(p, axis=-1, keepdims=True)
        attn = (p * pl.reciprocal(denom, approx=True)).astype(bf16)   # EUP recip

        ctx = jnp.einsum("bqk,bkd->bqd", attn, v_h,
                         preferred_element_type=f32)            # (b_tile,S,D)
        ctx_ref[:, lo:lo + D] = ctx.reshape(b_tile * S, D).astype(bf16)

    # ---- single WO GEMM (contraction K = E, MXU-dense) + residual + LN1 ----
    attn_out = jnp.dot(ctx_ref[...], wo_ref[...],
                       preferred_element_type=f32) + bo_ref[...]
    x1 = _layernorm(x + attn_out, g1_ref[...], be1_ref[...], eps)
    x1_b = x1.astype(bf16)

    # ---- position-wise FFN, chunked over Hf to bound the hidden transient --
    ffn = jnp.zeros_like(x1)
    for c0 in range(0, Hf, hf_chunk):
        w1_c = w1_ref[:, c0:c0 + hf_chunk]                      # (E,chunk) bf16
        b1_c = b1_ref[:, c0:c0 + hf_chunk]
        hidden = jnp.dot(x1_b, w1_c, preferred_element_type=f32) + b1_c
        if ew_bf16:
            hidden = _gelu(hidden.astype(bf16))   # bf16 VPU/EUP path (v6e/v7x)
        else:
            hidden = _gelu(hidden)                # f32 elementwise (v5e)
        ffn = ffn + jnp.dot(hidden.astype(bf16), w2_ref[c0:c0 + hf_chunk, :],
                            preferred_element_type=f32)
    ffn = ffn + b2_ref[...]

    # ---- residual + LayerNorm 2 --------------------------------------------
    out_ref[...] = _layernorm(x1 + ffn, g2_ref[...], be2_ref[...], eps
                              ).astype(out_ref.dtype)


# --------------------------- generation-aware knobs ------------------------
def _tensorcores_per_chip():
    try:
        kind = jax.devices()[0].device_kind.lower()
    except Exception:
        return 1
    if ("v7" in kind) or ("v4" in kind) or ("v5p" in kind):
        return 2
    return 1


def _elementwise_bf16_ok():
    # v5e (and older) have no bf16 VPU/EUP path; only enable on v6e/v7x.
    try:
        kind = jax.devices()[0].device_kind.lower()
    except Exception:
        return False
    return ("v6" in kind) or ("v7" in kind)


def _vmem_limit_bytes():
    # 3/4 of physical per-core VMEM, capped at 96 MiB.
    # v5e/v6e (128 MiB) -> 96 MiB; v7x (64 MiB) -> 48 MiB.
    try:
        cap = int(pltpu.get_tpu_info().vmem_capacity_bytes)
    except Exception:
        cap = 64 * 1024 * 1024
    return int(min(3 * cap // 4, 96 * 1024 * 1024))


def _pick_b_tile(B, S, n_cores):
    """Fold batch elements into the row tile.  Single-TC chips (v5e/v6e) get
    bigger tiles (closer to HBM roofline); multi-TC chips keep >= n_cores grid
    steps so the 'parallel' axis can shard across TensorCores."""
    if S % 8 != 0:
        return B          # row block must then equal the full array extent
    row_cap = 256 if n_cores > 1 else 512
    best = 1
    for c in range(1, B + 1):
        if B % c == 0 and c * S <= row_cap:
            best = c
    if n_cores > 1 and best > 1 and B // best < n_cores:
        for c in range(best - 1, 0, -1):
            if B % c == 0 and B // c >= n_cores:
                best = c
                break
    return best


def _pick_hf_chunk(Hf):
    if Hf <= 1024:
        return Hf
    for c in (1024, 512, 256, 128):
        if Hf % c == 0:
            return c
    return Hf


# ------------------------------ block wrapper -------------------------------
def transformer_block(x, p, *, n_heads, eps=1e-5):
    """One transformer encoder block. x: (B, S, E), p: dict of f32 weights."""
    B, S, E = x.shape
    Hf = p["w1"].shape[1]
    d_key = E // n_heads
    bf16 = jnp.bfloat16

    # one-time weight transforms outside the kernel
    scale = 1.0 / math.sqrt(d_key)
    wq = (p["wq"] * scale).astype(bf16)       # softmax scale folded into WQ/bQ
    bq = p["bq"] * scale
    wk = p["wk"].astype(bf16)
    wv = p["wv"].astype(bf16)
    wo = p["wo"].astype(bf16)
    w1 = p["w1"].astype(bf16)
    w2 = p["w2"].astype(bf16)

    n_cores = _tensorcores_per_chip()
    b_tile = _pick_b_tile(B, S, n_cores)
    m_tile = b_tile * S
    hf_chunk = _pick_hf_chunk(Hf)
    x2 = x.reshape(B * S, E)

    kernel = functools.partial(
        transformer_block_kernel,
        n_heads=n_heads, d_key=d_key, b_tile=b_tile, seq_len=S, eps=eps,
        hf_chunk=hf_chunk, ew_bf16=_elementwise_bf16_ok(),
    )

    Mrows = B * S
    flops = (8 * Mrows * E * E
             + 4 * B * n_heads * S * S * d_key
             + 4 * Mrows * E * Hf)
    transc = B * n_heads * S * (S + 1) + Mrows * Hf + 2 * Mrows
    bytes_accessed = (2 * Mrows * E * 4
                      + (4 * E * E + 2 * E * Hf) * 2
                      + (8 * E + Hf) * 4)
    cost = pl.CostEstimate(flops=int(flops), transcendentals=int(transc),
                           bytes_accessed=int(bytes_accessed))

    def _const_spec(shape, single_buffered):
        nd = len(shape)
        idx = lambda i, _nd=nd: (0,) * _nd
        if single_buffered:
            # weight/bias blocks never change across the grid: keep a single
            # resident copy instead of the default double buffer.
            return pl.BlockSpec(shape, idx, pipeline_mode=pl.Buffered(1))
        return pl.BlockSpec(shape, idx)

    def _run(single_buffered):
        cs = lambda shape: _const_spec(shape, single_buffered)
        return pl.pallas_call(
            kernel,
            out_shape=jax.ShapeDtypeStruct((B * S, E), jnp.float32),
            grid_spec=pltpu.PrefetchScalarGridSpec(
                num_scalar_prefetch=0,
                grid=(B // b_tile,),
                in_specs=[
                    pl.BlockSpec((m_tile, E), lambda i: (i, 0)),   # x rows
                    cs((E, E)), cs((1, E)),                        # WQ, bQ
                    cs((E, E)), cs((1, E)),                        # WK, bK
                    cs((E, E)), cs((1, E)),                        # WV, bV
                    cs((E, E)), cs((1, E)),                        # WO, bO
                    cs((E, Hf)), cs((1, Hf)),                      # W1, b1
                    cs((Hf, E)), cs((1, E)),                       # W2, b2
                    cs((1, E)), cs((1, E)),                        # gamma1, beta1
                    cs((1, E)), cs((1, E)),                        # gamma2, beta2
                ],
                out_specs=pl.BlockSpec((m_tile, E), lambda i: (i, 0)),
                scratch_shapes=[pltpu.VMEM((m_tile, E), bf16)],    # per-head ctx
            ),
            compiler_params=pltpu.CompilerParams(
                dimension_semantics=("parallel",),
                vmem_limit_bytes=_vmem_limit_bytes(),
            ),
            cost_estimate=cost,
        )(
            x2,
            wq, bq, wk, p["bk"], wv, p["bv"], wo, p["bo"],
            w1, p["b1"], w2, p["b2"],
            p["g1"], p["be1"], p["g2"], p["be2"],
        )

    try:
        out2 = _run(True)
    except Exception:
        # pipeline_mode=pl.Buffered(1) is a VMEM-residency optimization; fall
        # back to default double-buffering if this JAX/Mosaic version rejects it.
        out2 = _run(False)
    return out2.reshape(B, S, E)


def transformer_forward(x, layer_params, *, n_heads, eps=1e-5):
    for p in layer_params:
        x = transformer_block(x, p, n_heads=n_heads, eps=eps)
    return x


# ------------------------- pure-JAX reference ----------------------------
def reference_forward(x, layer_params, *, n_heads, eps=1e-5):
    B, S, E = x.shape
    d_key = E // n_heads
    for p in layer_params:
        q = x @ p["wq"] + p["bq"]
        k = x @ p["wk"] + p["bk"]
        v = x @ p["wv"] + p["bv"]
        q = q.reshape(B, S, n_heads, d_key).transpose(0, 2, 1, 3)
        k = k.reshape(B, S, n_heads, d_key).transpose(0, 2, 1, 3)
        v = v.reshape(B, S, n_heads, d_key).transpose(0, 2, 1, 3)
        score = jnp.einsum("bhqd,bhkd->bhqk", q, k) / math.sqrt(d_key)
        attn = jax.nn.softmax(score, axis=-1)
        o = jnp.einsum("bhqk,bhkd->bhqd", attn, v)
        o = o.transpose(0, 2, 1, 3).reshape(B, S, E)
        o = o @ p["wo"] + p["bo"]
        x = _layernorm(x + o, p["g1"], p["be1"], eps)
        h = _gelu(x @ p["w1"] + p["b1"])
        f = h @ p["w2"] + p["b2"]
        x = _layernorm(x + f, p["g2"], p["be2"], eps)
    return x


# --------------------------- parameter init -------------------------------
def init_layer_params(key, emb_dim, hidden_dim):
    ks = jax.random.split(key, 8)
    scl = 0.05
    return {
        "wq": scl * jax.random.normal(ks[0], (emb_dim, emb_dim), jnp.float32),
        "bq": jnp.zeros((1, emb_dim), jnp.float32),
        "wk": scl * jax.random.normal(ks[1], (emb_dim, emb_dim), jnp.float32),
        "bk": jnp.zeros((1, emb_dim), jnp.float32),
        "wv": scl * jax.random.normal(ks[2], (emb_dim, emb_dim), jnp.float32),
        "bv": jnp.zeros((1, emb_dim), jnp.float32),
        "wo": scl * jax.random.normal(ks[3], (emb_dim, emb_dim), jnp.float32),
        "bo": 0.01 * jax.random.normal(ks[4], (1, emb_dim), jnp.float32),
        "w1": scl * jax.random.normal(ks[5], (emb_dim, hidden_dim), jnp.float32),
        "b1": jnp.zeros((1, hidden_dim), jnp.float32),
        "w2": scl * jax.random.normal(ks[6], (hidden_dim, emb_dim), jnp.float32),
        "b2": jnp.zeros((1, emb_dim), jnp.float32),
        "g1": jnp.ones((1, emb_dim), jnp.float32),
        "be1": jnp.zeros((1, emb_dim), jnp.float32),
        "g2": jnp.ones((1, emb_dim), jnp.float32),
        "be2": jnp.zeros((1, emb_dim), jnp.float32),
    }


if __name__ == "__main__":
    # Small shapes consistent with the module's (B, S, E) convention; E chosen
    # as a multiple of 128 so output stores and attention math are lane-dense.
    B, S, E = 2, 16, 128
    n_heads = 4
    hidden_dim = 256
    n_layers = 2

    root = jax.random.PRNGKey(0)
    x_key, *layer_keys = jax.random.split(root, n_layers + 1)
    x = jax.random.normal(x_key, (B, S, E), jnp.float32)
    layer_params = [init_layer_params(k, E, hidden_dim) for k in layer_keys]

    out = transformer_forward(x, layer_params, n_heads=n_heads)
    out = jax.block_until_ready(out)

    ref = reference_forward(x, layer_params, n_heads=n_heads)
    assert out.shape == (B, S, E)
    # bf16 MXU operands + EUP approx reciprocal => loosened tolerance
    assert jnp.allclose(out, ref, atol=3e-2, rtol=3e-2), "mismatch vs reference"

    print("KERNEL_OK")
</pallas_src>

<mosaic_0001>
module attributes {stable_mosaic.version = 11 : i64} {
  func.func @transformer_block_kernel(%arg0: i32, %arg1: memref<32x128xf32, #tpu.memory_space<vmem>>, %arg2: memref<128x128xbf16, #tpu.memory_space<vmem>>, %arg3: memref<1x128xf32, #tpu.memory_space<vmem>>, %arg4: memref<128x128xbf16, #tpu.memory_space<vmem>>, %arg5: memref<1x128xf32, #tpu.memory_space<vmem>>, %arg6: memref<128x128xbf16, #tpu.memory_space<vmem>>, %arg7: memref<1x128xf32, #tpu.memory_space<vmem>>, %arg8: memref<128x128xbf16, #tpu.memory_space<vmem>>, %arg9: memref<1x128xf32, #tpu.memory_space<vmem>>, %arg10: memref<128x256xbf16, #tpu.memory_space<vmem>>, %arg11: memref<1x256xf32, #tpu.memory_space<vmem>>, %arg12: memref<256x128xbf16, #tpu.memory_space<vmem>>, %arg13: memref<1x128xf32, #tpu.memory_space<vmem>>, %arg14: memref<1x128xf32, #tpu.memory_space<vmem>>, %arg15: memref<1x128xf32, #tpu.memory_space<vmem>>, %arg16: memref<1x128xf32, #tpu.memory_space<vmem>>, %arg17: memref<1x128xf32, #tpu.memory_space<vmem>>, %arg18: memref<32x128xf32, #tpu.memory_space<vmem>>, %arg19: memref<32x128xbf16, #tpu.memory_space<vmem>>) attributes {dimension_semantics = [#tpu.dimension_semantics<parallel>], iteration_bounds = array<i64: 1>, scalar_prefetch = 0 : i64, scratch_operands = 1 : i64, tpu.core_type = #tpu.core_type<tc>, window_params = [{transform_indices = @transform_0, window_bounds = array<i64: 32, 128>}, {pipeline_mode = #tpu.pipeline_mode<synchronous>, transform_indices = @transform_1, window_bounds = array<i64: 128, 128>}, {pipeline_mode = #tpu.pipeline_mode<synchronous>, transform_indices = @transform_2, window_bounds = array<i64: 1, 128>}, {pipeline_mode = #tpu.pipeline_mode<synchronous>, transform_indices = @transform_3, window_bounds = array<i64: 128, 128>}, {pipeline_mode = #tpu.pipeline_mode<synchronous>, transform_indices = @transform_4, window_bounds = array<i64: 1, 128>}, {pipeline_mode = #tpu.pipeline_mode<synchronous>, transform_indices = @transform_5, window_bounds = array<i64: 128, 128>}, {pipeline_mode = #tpu.pipeline_mode<synchronous>, transform_indices = @transform_6, window_bounds = array<i64: 1, 128>}, {pipeline_mode = #tpu.pipeline_mode<synchronous>, transform_indices = @transform_7, window_bounds = array<i64: 128, 128>}, {pipeline_mode = #tpu.pipeline_mode<synchronous>, transform_indices = @transform_8, window_bounds = array<i64: 1, 128>}, {pipeline_mode = #tpu.pipeline_mode<synchronous>, transform_indices = @transform_9, window_bounds = array<i64: 128, 256>}, {pipeline_mode = #tpu.pipeline_mode<synchronous>, transform_indices = @transform_10, window_bounds = array<i64: 1, 256>}, {pipeline_mode = #tpu.pipeline_mode<synchronous>, transform_indices = @transform_11, window_bounds = array<i64: 256, 128>}, {pipeline_mode = #tpu.pipeline_mode<synchronous>, transform_indices = @transform_12, window_bounds = array<i64: 1, 128>}, {pipeline_mode = #tpu.pipeline_mode<synchronous>, transform_indices = @transform_13, window_bounds = array<i64: 1, 128>}, {pipeline_mode = #tpu.pipeline_mode<synchronous>, transform_indices = @transform_14, window_bounds = array<i64: 1, 128>}, {pipeline_mode = #tpu.pipeline_mode<synchronous>, transform_indices = @transform_15, window_bounds = array<i64: 1, 128>}, {pipeline_mode = #tpu.pipeline_mode<synchronous>, transform_indices = @transform_16, window_bounds = array<i64: 1, 128>}, {transform_indices = @transform_17, window_bounds = array<i64: 32, 128>}]} {
    %c0 = arith.constant 0 : index
    %c0_0 = arith.constant 0 : index
    %0 = vector.load %arg1[%c0, %c0_0] : memref<32x128xf32, #tpu.memory_space<vmem>>, vector<32x128xf32>
    %1 = arith.truncf %0 : vector<32x128xf32> to vector<32x128xbf16>
    %c0_1 = arith.constant 0 : index
    %c0_2 = arith.constant 0 : index
    %2 = vector.load %arg2[%c0_1, %c0_2] : memref<128x128xbf16, #tpu.memory_space<vmem>>, vector<128x128xbf16>
    %cst = arith.constant dense<0.000000e+00> : vector<32x128xf32>
    %3 = tpu.matmul %1, %2, %cst {dimension_numbers = #tpu.dot_dimension_numbers<[1], [0], [0], [1], [0, 0, 1, 1], [], []>} : vector<32x128xbf16>, vector<128x128xbf16>, vector<32x128xf32> -> vector<32x128xf32>
    %c0_3 = arith.constant 0 : index
    %c0_4 = arith.constant 0 : index
    %4 = vector.load %arg3[%c0_3, %c0_4] : memref<1x128xf32, #tpu.memory_space<vmem>>, vector<1x128xf32>
    %5 = vector.broadcast %4 : vector<1x128xf32> to vector<32x128xf32>
    %6 = arith.addf %3, %5 : vector<32x128xf32>
    %7 = arith.truncf %6 : vector<32x128xf32> to vector<32x128xbf16>
    %c0_5 = arith.constant 0 : index
    %c0_6 = arith.constant 0 : index
    %8 = vector.load %arg4[%c0_5, %c0_6] : memref<128x128xbf16, #tpu.memory_space<vmem>>, vector<128x128xbf16>
    %cst_7 = arith.constant dense<0.000000e+00> : vector<32x128xf32>
    %9 = tpu.matmul %1, %8, %cst_7 {dimension_numbers = #tpu.dot_dimension_numbers<[1], [0], [0], [1], [0, 0, 1, 1], [], []>} : vector<32x128xbf16>, vector<128x128xbf16>, vector<32x128xf32> -> vector<32x128xf32>
    %c0_8 = arith.constant 0 : index
    %c0_9 = arith.constant 0 : index
    %10 = vector.load %arg5[%c0_8, %c0_9] : memref<1x128xf32, #tpu.memory_space<vmem>>, vector<1x128xf32>
    %11 = vector.broadcast %10 : vector<1x128xf32> to vector<32x128xf32>
    %12 = arith.addf %9, %11 : vector<32x128xf32>
    %13 = arith.truncf %12 : vector<32x128xf32> to vector<32x128xbf16>
    %c0_10 = arith.constant 0 : index
    %c0_11 = arith.constant 0 : index
    %14 = vector.load %arg6[%c0_10, %c0_11] : memref<128x128xbf16, #tpu.memory_space<vmem>>, vector<128x128xbf16>
    %cst_12 = arith.constant dense<0.000000e+00> : vector<32x128xf32>
    %15 = tpu.matmul %1, %14, %cst_12 {dimension_numbers = #tpu.dot_dimension_numbers<[1], [0], [0], [1], [0, 0, 1, 1], [], []>} : vector<32x128xbf16>, vector<128x128xbf16>, vector<32x128xf32> -> vector<32x128xf32>
    %c0_13 = arith.constant 0 : index
    %c0_14 = arith.constant 0 : index
    %16 = vector.load %arg7[%c0_13, %c0_14] : memref<1x128xf32, #tpu.memory_space<vmem>>, vector<1x128xf32>
    %17 = vector.broadcast %16 : vector<1x128xf32> to vector<32x128xf32>
    %18 = arith.addf %15, %17 : vector<32x128xf32>
    %19 = arith.truncf %18 : vector<32x128xf32> to vector<32x128xbf16>
    %20 = vector.extract_strided_slice %7 {offsets = [0, 0], sizes = [32, 32], strides = [1, 1]} : vector<32x128xbf16> to vector<32x32xbf16>
    %21 = vector.shape_cast %20 : vector<32x32xbf16> to vector<2x16x32xbf16>
    %22 = vector.extract_strided_slice %13 {offsets = [0, 0], sizes = [32, 32], strides = [1, 1]} : vector<32x128xbf16> to vector<32x32xbf16>
    %23 = vector.shape_cast %22 : vector<32x32xbf16> to vector<2x16x32xbf16>
    %24 = vector.extract_strided_slice %19 {offsets = [0, 0], sizes = [32, 32], strides = [1, 1]} : vector<32x128xbf16> to vector<32x32xbf16>
    %25 = vector.shape_cast %24 : vector<32x32xbf16> to vector<2x16x32xbf16>
    "tpu.trace_start"() <{level = 10 : i32, message = "bqd,bkd->bqk"}> : () -> ()
    %cst_15 = arith.constant dense<0.000000e+00> : vector<2x16x16xf32>
    %26 = tpu.matmul %21, %23, %cst_15 {dimension_numbers = #tpu.dot_dimension_numbers<[2], [2], [1], [1], [0, 0, 0, 1, 1, 1], [0], [0]>} : vector<2x16x32xbf16>, vector<2x16x32xbf16>, vector<2x16x16xf32> -> vector<2x16x16xf32>
    "tpu.trace_stop"() : () -> ()
    %cst_16 = arith.constant dense<0xFF800000> : vector<2x16xf32>
    %27 = vector.multi_reduction <maximumf>, %26, %cst_16 [2] : vector<2x16x16xf32> to vector<2x16xf32>
    %28 = vector.shape_cast %27 : vector<2x16xf32> to vector<2x16x1xf32>
    %29 = vector.broadcast %28 : vector<2x16x1xf32> to vector<2x16x16xf32>
    %30 = arith.subf %26, %29 : vector<2x16x16xf32>
    %31 = math.exp %30 : vector<2x16x16xf32>
    %cst_17 = arith.constant dense<0.000000e+00> : vector<2x16xf32>
    %32 = vector.multi_reduction <add>, %31, %cst_17 [2] : vector<2x16x16xf32> to vector<2x16xf32>
    %33 = vector.shape_cast %32 : vector<2x16xf32> to vector<2x16x1xf32>
    %34 = tpu.reciprocal %33 {approx = true} : vector<2x16x1xf32> -> vector<2x16x1xf32>
    %35 = vector.broadcast %34 : vector<2x16x1xf32> to vector<2x16x16xf32>
    %36 = arith.mulf %31, %35 : vector<2x16x16xf32>
    %37 = arith.truncf %36 : vector<2x16x16xf32> to vector<2x16x16xbf16>
    "tpu.trace_start"() <{level = 10 : i32, message = "bqk,bkd->bqd"}> : () -> ()
    %cst_18 = arith.constant dense<0.000000e+00> : vector<2x16x32xf32>
    %38 = tpu.matmul %37, %25, %cst_18 {dimension_numbers = #tpu.dot_dimension_numbers<[2], [1], [1], [2], [0, 0, 0, 1, 1, 2], [0], [0]>} : vector<2x16x16xbf16>, vector<2x16x32xbf16>, vector<2x16x32xf32> -> vector<2x16x32xf32>
    "tpu.trace_stop"() : () -> ()
    %39 = vector.shape_cast %38 : vector<2x16x32xf32> to vector<32x32xf32>
    %40 = arith.truncf %39 : vector<32x32xf32> to vector<32x32xbf16>
    %c0_19 = arith.constant 0 : index
    %c0_20 = arith.constant 0 : index
    %41 = vector.load %arg19[%c0_19, %c0_20] : memref<32x128xbf16, #tpu.memory_space<vmem>>, vector<32x32xbf16>
    tpu.vector_store %arg19[%c0_19, %c0_20], %40 {strides = array<i32>} : memref<32x128xbf16, #tpu.memory_space<vmem>>, vector<32x32xbf16>,
    %42 = vector.extract_strided_slice %7 {offsets = [0, 32], sizes = [32, 32], strides = [1, 1]} : vector<32x128xbf16> to vector<32x32xbf16>
    %43 = vector.shape_cast %42 : vector<32x32xbf16> to vector<2x16x32xbf16>
    %44 = vector.extract_strided_slice %13 {offsets = [0, 32], sizes = [32, 32], strides = [1, 1]} : vector<32x128xbf16> to vector<32x32xbf16>
    %45 = vector.shape_cast %44 : vector<32x32xbf16> to vector<2x16x32xbf16>
    %46 = vector.extract_strided_slice %19 {offsets = [0, 32], sizes = [32, 32], strides = [1, 1]} : vector<32x128xbf16> to vector<32x32xbf16>
    %47 = vector.shape_cast %46 : vector<32x32xbf16> to vector<2x16x32xbf16>
    "tpu.trace_start"() <{level = 10 : i32, message = "bqd,bkd->bqk"}> : () -> ()
    %cst_21 = arith.constant dense<0.000000e+00> : vector<2x16x16xf32>
    %48 = tpu.matmul %43, %45, %cst_21 {dimension_numbers = #tpu.dot_dimension_numbers<[2], [2], [1], [1], [0, 0, 0, 1, 1, 1], [0], [0]>} : vector<2x16x32xbf16>, vector<2x16x32xbf16>, vector<2x16x16xf32> -> vector<2x16x16xf32>
    "tpu.trace_stop"() : () -> ()
    %cst_22 = arith.constant dense<0xFF800000> : vector<2x16xf32>
    %49 = vector.multi_reduction <maximumf>, %48, %cst_22 [2] : vector<2x16x16xf32> to vector<2x16xf32>
    %50 = vector.shape_cast %49 : vector<2x16xf32> to vector<2x16x1xf32>
    %51 = vector.broadcast %50 : vector<2x16x1xf32> to vector<2x16x16xf32>
    %52 = arith.subf %48, %51 : vector<2x16x16xf32>
    %53 = math.exp %52 : vector<2x16x16xf32>
    %cst_23 = arith.constant dense<0.000000e+00> : vector<2x16xf32>
    %54 = vector.multi_reduction <add>, %53, %cst_23 [2] : vector<2x16x16xf32> to vector<2x16xf32>
    %55 = vector.shape_cast %54 : vector<2x16xf32> to vector<2x16x1xf32>
    %56 = tpu.reciprocal %55 {approx = true} : vector<2x16x1xf32> -> vector<2x16x1xf32>
    %57 = vector.broadcast %56 : vector<2x16x1xf32> to vector<2x16x16xf32>
    %58 = arith.mulf %53, %57 : vector<2x16x16xf32>
    %59 = arith.truncf %58 : vector<2x16x16xf32> to vector<2x16x16xbf16>
    "tpu.trace_start"() <{level = 10 : i32, message = "bqk,bkd->bqd"}> : () -> ()
    %cst_24 = arith.constant dense<0.000000e+00> : vector<2x16x32xf32>
    %60 = tpu.matmul %59, %47, %cst_24 {dimension_numbers = #tpu.dot_dimension_numbers<[2], [1], [1], [2], [0, 0, 0, 1, 1, 2], [0], [0]>} : vector<2x16x16xbf16>, vector<2x16x32xbf16>, vector<2x16x32xf32> -> vector<2x16x32xf32>
    "tpu.trace_stop"() : () -> ()
    %61 = vector.shape_cast %60 : vector<2x16x32xf32> to vector<32x32xf32>
    %62 = arith.truncf %61 : vector<32x32xf32> to vector<32x32xbf16>
    %c0_25 = arith.constant 0 : index
    %c32 = arith.constant 32 : index
    %63 = vector.load %arg19[%c0_25, %c32] : memref<32x128xbf16, #tpu.memory_space<vmem>>, vector<32x32xbf16>
    tpu.vector_store %arg19[%c0_25, %c32], %62 {strides = array<i32>} : memref<32x128xbf16, #tpu.memory_space<vmem>>, vector<32x32xbf16>,
    %64 = vector.extract_strided_slice %7 {offsets = [0, 64], sizes = [32, 32], strides = [1, 1]} : vector<32x128xbf16> to vector<32x32xbf16>
    %65 = vector.shape_cast %64 : vector<32x32xbf16> to vector<2x16x32xbf16>
    %66 = vector.extract_strided_slice %13 {offsets = [0, 64], sizes = [32, 32], strides = [1, 1]} : vector<32x128xbf16> to vector<32x32xbf16>
    %67 = vector.shape_cast %66 : vector<32x32xbf16> to vector<2x16x32xbf16>
    %68 = vector.extract_strided_slice %19 {offsets = [0, 64], sizes = [32, 32], strides = [1, 1]} : vector<32x128xbf16> to vector<32x32xbf16>
    %69 = vector.shape_cast %68 : vector<32x32xbf16> to vector<2x16x32xbf16>
    "tpu.trace_start"() <{level = 10 : i32, message = "bqd,bkd->bqk"}> : () -> ()
    %cst_26 = arith.constant dense<0.000000e+00> : vector<2x16x16xf32>
    %70 = tpu.matmul %65, %67, %cst_26 {dimension_numbers = #tpu.dot_dimension_numbers<[2], [2], [1], [1], [0, 0, 0, 1, 1, 1], [0], [0]>} : vector<2x16x32xbf16>, vector<2x16x32xbf16>, vector<2x16x16xf32> -> vector<2x16x16xf32>
    "tpu.trace_stop"() : () -> ()
    %cst_27 = arith.constant dense<0xFF800000> : vector<2x16xf32>
    %71 = vector.multi_reduction <maximumf>, %70, %cst_27 [2] : vector<2x16x16xf32> to vector<2x16xf32>
    %72 = vector.shape_cast %71 : vector<2x16xf32> to vector<2x16x1xf32>
    %73 = vector.broadcast %72 : vector<2x16x1xf32> to vector<2x16x16xf32>
    %74 = arith.subf %70, %73 : vector<2x16x16xf32>
    %75 = math.exp %74 : vector<2x16x16xf32>
    %cst_28 = arith.constant dense<0.000000e+00> : vector<2x16xf32>
    %76 = vector.multi_reduction <add>, %75, %cst_28 [2] : vector<2x16x16xf32> to vector<2x16xf32>
    %77 = vector.shape_cast %76 : vector<2x16xf32> to vector<2x16x1xf32>
    %78 = tpu.reciprocal %77 {approx = true} : vector<2x16x1xf32> -> vector<2x16x1xf32>
    %79 = vector.broadcast %78 : vector<2x16x1xf32> to vector<2x16x16xf32>
    %80 = arith.mulf %75, %79 : vector<2x16x16xf32>
    %81 = arith.truncf %80 : vector<2x16x16xf32> to vector<2x16x16xbf16>
    "tpu.trace_start"() <{level = 10 : i32, message = "bqk,bkd->bqd"}> : () -> ()
    %cst_29 = arith.constant dense<0.000000e+00> : vector<2x16x32xf32>
    %82 = tpu.matmul %81, %69, %cst_29 {dimension_numbers = #tpu.dot_dimension_numbers<[2], [1], [1], [2], [0, 0, 0, 1, 1, 2], [0], [0]>} : vector<2x16x16xbf16>, vector<2x16x32xbf16>, vector<2x16x32xf32> -> vector<2x16x32xf32>
    "tpu.trace_stop"() : () -> ()
    %83 = vector.shape_cast %82 : vector<2x16x32xf32> to vector<32x32xf32>
    %84 = arith.truncf %83 : vector<32x32xf32> to vector<32x32xbf16>
    %c0_30 = arith.constant 0 : index
    %c64 = arith.constant 64 : index
    %85 = vector.load %arg19[%c0_30, %c64] : memref<32x128xbf16, #tpu.memory_space<vmem>>, vector<32x32xbf16>
    tpu.vector_store %arg19[%c0_30, %c64], %84 {strides = array<i32>} : memref<32x128xbf16, #tpu.memory_space<vmem>>, vector<32x32xbf16>,
    %86 = vector.extract_strided_slice %7 {offsets = [0, 96], sizes = [32, 32], strides = [1, 1]} : vector<32x128xbf16> to vector<32x32xbf16>
    %87 = vector.shape_cast %86 : vector<32x32xbf16> to vector<2x16x32xbf16>
    %88 = vector.extract_strided_slice %13 {offsets = [0, 96], sizes = [32, 32], strides = [1, 1]} : vector<32x128xbf16> to vector<32x32xbf16>
    %89 = vector.shape_cast %88 : vector<32x32xbf16> to vector<2x16x32xbf16>
    %90 = vector.extract_strided_slice %19 {offsets = [0, 96], sizes = [32, 32], strides = [1, 1]} : vector<32x128xbf16> to vector<32x32xbf16>
    %91 = vector.shape_cast %90 : vector<32x32xbf16> to vector<2x16x32xbf16>
    "tpu.trace_start"() <{level = 10 : i32, message = "bqd,bkd->bqk"}> : () -> ()
    %cst_31 = arith.constant dense<0.000000e+00> : vector<2x16x16xf32>
    %92 = tpu.matmul %87, %89, %cst_31 {dimension_numbers = #tpu.dot_dimension_numbers<[2], [2], [1], [1], [0, 0, 0, 1, 1, 1], [0], [0]>} : vector<2x16x32xbf16>, vector<2x16x32xbf16>, vector<2x16x16xf32> -> vector<2x16x16xf32>
    "tpu.trace_stop"() : () -> ()
    %cst_32 = arith.constant dense<0xFF800000> : vector<2x16xf32>
    %93 = vector.multi_reduction <maximumf>, %92, %cst_32 [2] : vector<2x16x16xf32> to vector<2x16xf32>
    %94 = vector.shape_cast %93 : vector<2x16xf32> to vector<2x16x1xf32>
    %95 = vector.broadcast %94 : vector<2x16x1xf32> to vector<2x16x16xf32>
    %96 = arith.subf %92, %95 : vector<2x16x16xf32>
    %97 = math.exp %96 : vector<2x16x16xf32>
    %cst_33 = arith.constant dense<0.000000e+00> : vector<2x16xf32>
    %98 = vector.multi_reduction <add>, %97, %cst_33 [2] : vector<2x16x16xf32> to vector<2x16xf32>
    %99 = vector.shape_cast %98 : vector<2x16xf32> to vector<2x16x1xf32>
    %100 = tpu.reciprocal %99 {approx = true} : vector<2x16x1xf32> -> vector<2x16x1xf32>
    %101 = vector.broadcast %100 : vector<2x16x1xf32> to vector<2x16x16xf32>
    %102 = arith.mulf %97, %101 : vector<2x16x16xf32>
    %103 = arith.truncf %102 : vector<2x16x16xf32> to vector<2x16x16xbf16>
    "tpu.trace_start"() <{level = 10 : i32, message = "bqk,bkd->bqd"}> : () -> ()
    %cst_34 = arith.constant dense<0.000000e+00> : vector<2x16x32xf32>
    %104 = tpu.matmul %103, %91, %cst_34 {dimension_numbers = #tpu.dot_dimension_numbers<[2], [1], [1], [2], [0, 0, 0, 1, 1, 2], [0], [0]>} : vector<2x16x16xbf16>, vector<2x16x32xbf16>, vector<2x16x32xf32> -> vector<2x16x32xf32>
    "tpu.trace_stop"() : () -> ()
    %105 = vector.shape_cast %104 : vector<2x16x32xf32> to vector<32x32xf32>
    %106 = arith.truncf %105 : vector<32x32xf32> to vector<32x32xbf16>
    %c0_35 = arith.constant 0 : index
    %c96 = arith.constant 96 : index
    %107 = vector.load %arg19[%c0_35, %c96] : memref<32x128xbf16, #tpu.memory_space<vmem>>, vector<32x32xbf16>
    tpu.vector_store %arg19[%c0_35, %c96], %106 {strides = array<i32>} : memref<32x128xbf16, #tpu.memory_space<vmem>>, vector<32x32xbf16>,
    %c0_36 = arith.constant 0 : index
    %c0_37 = arith.constant 0 : index
    %108 = vector.load %arg19[%c0_36, %c0_37] : memref<32x128xbf16, #tpu.memory_space<vmem>>, vector<32x128xbf16>
    %c0_38 = arith.constant 0 : index
    %c0_39 = arith.constant 0 : index
    %109 = vector.load %arg8[%c0_38, %c0_39] : memref<128x128xbf16, #tpu.memory_space<vmem>>, vector<128x128xbf16>
    %cst_40 = arith.constant dense<0.000000e+00> : vector<32x128xf32>
    %110 = tpu.matmul %108, %109, %cst_40 {dimension_numbers = #tpu.dot_dimension_numbers<[1], [0], [0], [1], [0, 0, 1, 1], [], []>} : vector<32x128xbf16>, vector<128x128xbf16>, vector<32x128xf32> -> vector<32x128xf32>
    %c0_41 = arith.constant 0 : index
    %c0_42 = arith.constant 0 : index
    %111 = vector.load %arg9[%c0_41, %c0_42] : memref<1x128xf32, #tpu.memory_space<vmem>>, vector<1x128xf32>
    %112 = vector.broadcast %111 : vector<1x128xf32> to vector<32x128xf32>
    %113 = arith.addf %110, %112 : vector<32x128xf32>
    %114 = arith.addf %0, %113 : vector<32x128xf32>
    %c0_43 = arith.constant 0 : index
    %c0_44 = arith.constant 0 : index
    %115 = vector.load %arg14[%c0_43, %c0_44] : memref<1x128xf32, #tpu.memory_space<vmem>>, vector<1x128xf32>
    %c0_45 = arith.constant 0 : index
    %c0_46 = arith.constant 0 : index
    %116 = vector.load %arg15[%c0_45, %c0_46] : memref<1x128xf32, #tpu.memory_space<vmem>>, vector<1x128xf32>
    %cst_47 = arith.constant dense<0.000000e+00> : vector<32xf32>
    %117 = vector.multi_reduction <add>, %114, %cst_47 [1] : vector<32x128xf32> to vector<32xf32>
    %118 = vector.shape_cast %117 : vector<32xf32> to vector<32x1xf32>
    %cst_48 = arith.constant 1.280000e+02 : f32
    %119 = vector.broadcast %cst_48 : f32 to vector<32x1xf32>
    %120 = arith.divf %118, %119 : vector<32x1xf32>
    %121 = vector.broadcast %120 : vector<32x1xf32> to vector<32x128xf32>
    %122 = arith.subf %114, %121 : vector<32x128xf32>
    %123 = arith.mulf %122, %122 : vector<32x128xf32>
    %cst_49 = arith.constant dense<0.000000e+00> : vector<32xf32>
    %124 = vector.multi_reduction <add>, %123, %cst_49 [1] : vector<32x128xf32> to vector<32xf32>
    %125 = vector.shape_cast %124 : vector<32xf32> to vector<32x1xf32>
    %cst_50 = arith.constant 1.280000e+02 : f32
    %126 = vector.broadcast %cst_50 : f32 to vector<32x1xf32>
    %127 = arith.divf %125, %126 : vector<32x1xf32>
    %cst_51 = arith.constant 9.99999974E-6 : f32
    %128 = vector.broadcast %cst_51 : f32 to vector<32x1xf32>
    %129 = arith.addf %127, %128 : vector<32x1xf32>
    %130 = math.rsqrt %129 : vector<32x1xf32>
    %131 = vector.broadcast %130 : vector<32x1xf32> to vector<32x128xf32>
    %132 = arith.mulf %122, %131 : vector<32x128xf32>
    %133 = vector.broadcast %115 : vector<1x128xf32> to vector<32x128xf32>
    %134 = arith.mulf %133, %132 : vector<32x128xf32>
    %135 = vector.broadcast %116 : vector<1x128xf32> to vector<32x128xf32>
    %136 = arith.addf %134, %135 : vector<32x128xf32>
    %137 = arith.truncf %136 : vector<32x128xf32> to vector<32x128xbf16>
    %cst_52 = arith.constant 0.000000e+00 : f32
    %138 = vector.broadcast %cst_52 : f32 to vector<32x128xf32>
    %c0_53 = arith.constant 0 : index
    %c0_54 = arith.constant 0 : index
    %139 = vector.load %arg10[%c0_53, %c0_54] : memref<128x256xbf16, #tpu.memory_space<vmem>>, vector<128x256xbf16>
    %c0_55 = arith.constant 0 : index
    %c0_56 = arith.constant 0 : index
    %140 = vector.load %arg11[%c0_55, %c0_56] : memref<1x256xf32, #tpu.memory_space<vmem>>, vector<1x256xf32>
    %cst_57 = arith.constant dense<0.000000e+00> : vector<32x256xf32>
    %141 = tpu.matmul %137, %139, %cst_57 {dimension_numbers = #tpu.dot_dimension_numbers<[1], [0], [0], [1], [0, 0, 1, 1], [], []>} : vector<32x128xbf16>, vector<128x256xbf16>, vector<32x256xf32> -> vector<32x256xf32>
    %142 = vector.broadcast %140 : vector<1x256xf32> to vector<32x256xf32>
    %143 = arith.addf %141, %142 : vector<32x256xf32>
    %cst_58 = arith.constant 5.000000e-01 : f32
    %144 = vector.broadcast %cst_58 : f32 to vector<32x256xf32>
    %145 = arith.mulf %144, %143 : vector<32x256xf32>
    %146 = arith.mulf %143, %143 : vector<32x256xf32>
    %147 = arith.mulf %143, %146 : vector<32x256xf32>
    %cst_59 = arith.constant 4.471500e-02 : f32
    %148 = vector.broadcast %cst_59 : f32 to vector<32x256xf32>
    %149 = arith.mulf %148, %147 : vector<32x256xf32>
    %150 = arith.addf %143, %149 : vector<32x256xf32>
    %cst_60 = arith.constant 0.797884583 : f32
    %151 = vector.broadcast %cst_60 : f32 to vector<32x256xf32>
    %152 = arith.mulf %151, %150 : vector<32x256xf32>
    %153 = math.tanh %152 : vector<32x256xf32>
    %cst_61 = arith.constant 1.000000e+00 : f32
    %154 = vector.broadcast %cst_61 : f32 to vector<32x256xf32>
    %155 = arith.addf %154, %153 : vector<32x256xf32>
    %156 = arith.mulf %145, %155 : vector<32x256xf32>
    %157 = arith.truncf %156 : vector<32x256xf32> to vector<32x256xbf16>
    %c0_62 = arith.constant 0 : index
    %c0_63 = arith.constant 0 : index
    %158 = vector.load %arg12[%c0_62, %c0_63] : memref<256x128xbf16, #tpu.memory_space<vmem>>, vector<256x128xbf16>
    %cst_64 = arith.constant dense<0.000000e+00> : vector<32x128xf32>
    %159 = tpu.matmul %157, %158, %cst_64 {dimension_numbers = #tpu.dot_dimension_numbers<[1], [0], [0], [1], [0, 0, 1, 1], [], []>} : vector<32x256xbf16>, vector<256x128xbf16>, vector<32x128xf32> -> vector<32x128xf32>
    %160 = arith.addf %138, %159 : vector<32x128xf32>
    %c0_65 = arith.constant 0 : index
    %c0_66 = arith.constant 0 : index
    %161 = vector.load %arg13[%c0_65, %c0_66] : memref<1x128xf32, #tpu.memory_space<vmem>>, vector<1x128xf32>
    %162 = vector.broadcast %161 : vector<1x128xf32> to vector<32x128xf32>
    %163 = arith.addf %160, %162 : vector<32x128xf32>
    %164 = arith.addf %136, %163 : vector<32x128xf32>
    %c0_67 = arith.constant 0 : index
    %c0_68 = arith.constant 0 : index
    %165 = vector.load %arg16[%c0_67, %c0_68] : memref<1x128xf32, #tpu.memory_space<vmem>>, vector<1x128xf32>
    %c0_69 = arith.constant 0 : index
    %c0_70 = arith.constant 0 : index
    %166 = vector.load %arg17[%c0_69, %c0_70] : memref<1x128xf32, #tpu.memory_space<vmem>>, vector<1x128xf32>
    %cst_71 = arith.constant dense<0.000000e+00> : vector<32xf32>
    %167 = vector.multi_reduction <add>, %164, %cst_71 [1] : vector<32x128xf32> to vector<32xf32>
    %168 = vector.shape_cast %167 : vector<32xf32> to vector<32x1xf32>
    %cst_72 = arith.constant 1.280000e+02 : f32
    %169 = vector.broadcast %cst_72 : f32 to vector<32x1xf32>
    %170 = arith.divf %168, %169 : vector<32x1xf32>
    %171 = vector.broadcast %170 : vector<32x1xf32> to vector<32x128xf32>
    %172 = arith.subf %164, %171 : vector<32x128xf32>
    %173 = arith.mulf %172, %172 : vector<32x128xf32>
    %cst_73 = arith.constant dense<0.000000e+00> : vector<32xf32>
    %174 = vector.multi_reduction <add>, %173, %cst_73 [1] : vector<32x128xf32> to vector<32xf32>
    %175 = vector.shape_cast %174 : vector<32xf32> to vector<32x1xf32>
    %cst_74 = arith.constant 1.280000e+02 : f32
    %176 = vector.broadcast %cst_74 : f32 to vector<32x1xf32>
    %177 = arith.divf %175, %176 : vector<32x1xf32>
    %cst_75 = arith.constant 9.99999974E-6 : f32
    %178 = vector.broadcast %cst_75 : f32 to vector<32x1xf32>
    %179 = arith.addf %177, %178 : vector<32x1xf32>
    %180 = math.rsqrt %179 : vector<32x1xf32>
    %181 = vector.broadcast %180 : vector<32x1xf32> to vector<32x128xf32>
    %182 = arith.mulf %172, %181 : vector<32x128xf32>
    %183 = vector.broadcast %165 : vector<1x128xf32> to vector<32x128xf32>
    %184 = arith.mulf %183, %182 : vector<32x128xf32>
    %185 = vector.broadcast %166 : vector<1x128xf32> to vector<32x128xf32>
    %186 = arith.addf %184, %185 : vector<32x128xf32>
    %c0_76 = arith.constant 0 : index
    %c0_77 = arith.constant 0 : index
    %187 = vector.load %arg18[%c0_76, %c0_77] : memref<32x128xf32, #tpu.memory_space<vmem>>, vector<32x128xf32>
    tpu.vector_store %arg18[%c0_76, %c0_77], %186 {strides = array<i32>} : memref<32x128xf32, #tpu.memory_space<vmem>>, vector<32x128xf32>,
    return
  }
  func.func @transform_0(%arg0: i32) -> (i32, i32) {
    %c0_i32 = arith.constant 0 : i32
    %c0_i32_0 = arith.constant 0 : i32
    return %arg0, %c0_i32 : i32, i32
  }
  func.func @transform_1(%arg0: i32) -> (i32, i32) {
    %c0_i32 = arith.constant 0 : i32
    %c0_i32_0 = arith.constant 0 : i32
    %c0_i32_1 = arith.constant 0 : i32
    return %c0_i32, %c0_i32_0 : i32, i32
  }
  func.func @transform_2(%arg0: i32) -> (i32, i32) {
    %c0_i32 = arith.constant 0 : i32
    %c0_i32_0 = arith.constant 0 : i32
    %c0_i32_1 = arith.constant 0 : i32
    return %c0_i32, %c0_i32_0 : i32, i32
  }
  func.func @transform_3(%arg0: i32) -> (i32, i32) {
    %c0_i32 = arith.constant 0 : i32
    %c0_i32_0 = arith.constant 0 : i32
    %c0_i32_1 = arith.constant 0 : i32
    return %c0_i32, %c0_i32_0 : i32, i32
  }
  func.func @transform_4(%arg0: i32) -> (i32, i32) {
    %c0_i32 = arith.constant 0 : i32
    %c0_i32_0 = arith.constant 0 : i32
    %c0_i32_1 = arith.constant 0 : i32
    return %c0_i32, %c0_i32_0 : i32, i32
  }
  func.func @transform_5(%arg0: i32) -> (i32, i32) {
    %c0_i32 = arith.constant 0 : i32
    %c0_i32_0 = arith.constant 0 : i32
    %c0_i32_1 = arith.constant 0 : i32
    return %c0_i32, %c0_i32_0 : i32, i32
  }
  func.func @transform_6(%arg0: i32) -> (i32, i32) {
    %c0_i32 = arith.constant 0 : i32
    %c0_i32_0 = arith.constant 0 : i32
    %c0_i32_1 = arith.constant 0 : i32
    return %c0_i32, %c0_i32_0 : i32, i32
  }
  func.func @transform_7(%arg0: i32) -> (i32, i32) {
    %c0_i32 = arith.constant 0 : i32
    %c0_i32_0 = arith.constant 0 : i32
    %c0_i32_1 = arith.constant 0 : i32
    return %c0_i32, %c0_i32_0 : i32, i32
  }
  func.func @transform_8(%arg0: i32) -> (i32, i32) {
    %c0_i32 = arith.constant 0 : i32
    %c0_i32_0 = arith.constant 0 : i32
    %c0_i32_1 = arith.constant 0 : i32
    return %c0_i32, %c0_i32_0 : i32, i32
  }
  func.func @transform_9(%arg0: i32) -> (i32, i32) {
    %c0_i32 = arith.constant 0 : i32
    %c0_i32_0 = arith.constant 0 : i32
    %c0_i32_1 = arith.constant 0 : i32
    return %c0_i32, %c0_i32_0 : i32, i32
  }
  func.func @transform_10(%arg0: i32) -> (i32, i32) {
    %c0_i32 = arith.constant 0 : i32
    %c0_i32_0 = arith.constant 0 : i32
    %c0_i32_1 = arith.constant 0 : i32
    return %c0_i32, %c0_i32_0 : i32, i32
  }
  func.func @transform_11(%arg0: i32) -> (i32, i32) {
    %c0_i32 = arith.constant 0 : i32
    %c0_i32_0 = arith.constant 0 : i32
    %c0_i32_1 = arith.constant 0 : i32
    return %c0_i32, %c0_i32_0 : i32, i32
  }
  func.func @transform_12(%arg0: i32) -> (i32, i32) {
    %c0_i32 = arith.constant 0 : i32
    %c0_i32_0 = arith.constant 0 : i32
    %c0_i32_1 = arith.constant 0 : i32
    return %c0_i32, %c0_i32_0 : i32, i32
  }
  func.func @transform_13(%arg0: i32) -> (i32, i32) {
    %c0_i32 = arith.constant 0 : i32
    %c0_i32_0 = arith.constant 0 : i32
    %c0_i32_1 = arith.constant 0 : i32
    return %c0_i32, %c0_i32_0 : i32, i32
  }
  func.func @transform_14(%arg0: i32) -> (i32, i32) {
    %c0_i32 = arith.constant 0 : i32
    %c0_i32_0 = arith.constant 0 : i32
    %c0_i32_1 = arith.constant 0 : i32
    return %c0_i32, %c0_i32_0 : i32, i32
  }
  func.func @transform_15(%arg0: i32) -> (i32, i32) {
    %c0_i32 = arith.constant 0 : i32
    %c0_i32_0 = arith.constant 0 : i32
    %c0_i32_1 = arith.constant 0 : i32
    return %c0_i32, %c0_i32_0 : i32, i32
  }
  func.func @transform_16(%arg0: i32) -> (i32, i32) {
    %c0_i32 = arith.constant 0 : i32
    %c0_i32_0 = arith.constant 0 : i32
    %c0_i32_1 = arith.constant 0 : i32
    return %c0_i32, %c0_i32_0 : i32, i32
  }
  func.func @transform_17(%arg0: i32) -> (i32, i32) {
    %c0_i32 = arith.constant 0 : i32
    %c0_i32_0 = arith.constant 0 : i32
    return %arg0, %c0_i32 : i32, i32
  }
}

module attributes {stable_mosaic.version = 11 : i64} {
  func.func @transformer_block_kernel(%arg0: i32, %arg1: memref<32x128xf32, #tpu.memory_space<vmem>>, %arg2: memref<128x128xbf16, #tpu.memory_space<vmem>>, %arg3: memref<1x128xf32, #tpu.memory_space<vmem>>, %arg4: memref<128x128xbf16, #tpu.memory_space<vmem>>, %arg5: memref<1x128xf32, #tpu.memory_space<vmem>>, %arg6: memref<128x128xbf16, #tpu.memory_space<vmem>>, %arg7: memref<1x128xf32, #tpu.memory_space<vmem>>, %arg8: memref<128x128xbf16, #tpu.memory_space<vmem>>, %arg9: memref<1x128xf32, #tpu.memory_space<vmem>>, %arg10: memref<128x256xbf16, #tpu.memory_space<vmem>>, %arg11: memref<1x256xf32, #tpu.memory_space<vmem>>, %arg12: memref<256x128xbf16, #tpu.memory_space<vmem>>, %arg13: memref<1x128xf32, #tpu.memory_space<vmem>>, %arg14: memref<1x128xf32, #tpu.memory_space<vmem>>, %arg15: memref<1x128xf32, #tpu.memory_space<vmem>>, %arg16: memref<1x128xf32, #tpu.memory_space<vmem>>, %arg17: memref<1x128xf32, #tpu.memory_space<vmem>>, %arg18: memref<32x128xf32, #tpu.memory_space<vmem>>, %arg19: memref<32x128xbf16, #tpu.memory_space<vmem>>) attributes {dimension_semantics = [#tpu.dimension_semantics<parallel>], iteration_bounds = array<i64: 1>, scalar_prefetch = 0 : i64, scratch_operands = 1 : i64, tpu.core_type = #tpu.core_type<tc>, window_params = [{transform_indices = @transform_0, window_bounds = array<i64: 32, 128>}, {pipeline_mode = #tpu.pipeline_mode<synchronous>, transform_indices = @transform_1, window_bounds = array<i64: 128, 128>}, {pipeline_mode = #tpu.pipeline_mode<synchronous>, transform_indices = @transform_2, window_bounds = array<i64: 1, 128>}, {pipeline_mode = #tpu.pipeline_mode<synchronous>, transform_indices = @transform_3, window_bounds = array<i64: 128, 128>}, {pipeline_mode = #tpu.pipeline_mode<synchronous>, transform_indices = @transform_4, window_bounds = array<i64: 1, 128>}, {pipeline_mode = #tpu.pipeline_mode<synchronous>, transform_indices = @transform_5, window_bounds = array<i64: 128, 128>}, {pipeline_mode = #tpu.pipeline_mode<synchronous>, transform_indices = @transform_6, window_bounds = array<i64: 1, 128>}, {pipeline_mode = #tpu.pipeline_mode<synchronous>, transform_indices = @transform_7, window_bounds = array<i64: 128, 128>}, {pipeline_mode = #tpu.pipeline_mode<synchronous>, transform_indices = @transform_8, window_bounds = array<i64: 1, 128>}, {pipeline_mode = #tpu.pipeline_mode<synchronous>, transform_indices = @transform_9, window_bounds = array<i64: 128, 256>}, {pipeline_mode = #tpu.pipeline_mode<synchronous>, transform_indices = @transform_10, window_bounds = array<i64: 1, 256>}, {pipeline_mode = #tpu.pipeline_mode<synchronous>, transform_indices = @transform_11, window_bounds = array<i64: 256, 128>}, {pipeline_mode = #tpu.pipeline_mode<synchronous>, transform_indices = @transform_12, window_bounds = array<i64: 1, 128>}, {pipeline_mode = #tpu.pipeline_mode<synchronous>, transform_indices = @transform_13, window_bounds = array<i64: 1, 128>}, {pipeline_mode = #tpu.pipeline_mode<synchronous>, transform_indices = @transform_14, window_bounds = array<i64: 1, 128>}, {pipeline_mode = #tpu.pipeline_mode<synchronous>, transform_indices = @transform_15, window_bounds = array<i64: 1, 128>}, {pipeline_mode = #tpu.pipeline_mode<synchronous>, transform_indices = @transform_16, window_bounds = array<i64: 1, 128>}, {transform_indices = @transform_17, window_bounds = array<i64: 32, 128>}]} {
    %c0 = arith.constant 0 : index
    %c0_0 = arith.constant 0 : index
    %0 = vector.load %arg1[%c0, %c0_0] : memref<32x128xf32, #tpu.memory_space<vmem>>, vector<32x128xf32>
    %1 = arith.truncf %0 : vector<32x128xf32> to vector<32x128xbf16>
    %c0_1 = arith.constant 0 : index
    %c0_2 = arith.constant 0 : index
    %2 = vector.load %arg2[%c0_1, %c0_2] : memref<128x128xbf16, #tpu.memory_space<vmem>>, vector<128x128xbf16>
    %cst = arith.constant dense<0.000000e+00> : vector<32x128xf32>
    %3 = tpu.matmul %1, %2, %cst {dimension_numbers = #tpu.dot_dimension_numbers<[1], [0], [0], [1], [0, 0, 1, 1], [], []>} : vector<32x128xbf16>, vector<128x128xbf16>, vector<32x128xf32> -> vector<32x128xf32>
    %c0_3 = arith.constant 0 : index
    %c0_4 = arith.constant 0 : index
    %4 = vector.load %arg3[%c0_3, %c0_4] : memref<1x128xf32, #tpu.memory_space<vmem>>, vector<1x128xf32>
    %5 = vector.broadcast %4 : vector<1x128xf32> to vector<32x128xf32>
    %6 = arith.addf %3, %5 : vector<32x128xf32>
    %7 = arith.truncf %6 : vector<32x128xf32> to vector<32x128xbf16>
    %c0_5 = arith.constant 0 : index
    %c0_6 = arith.constant 0 : index
    %8 = vector.load %arg4[%c0_5, %c0_6] : memref<128x128xbf16, #tpu.memory_space<vmem>>, vector<128x128xbf16>
    %cst_7 = arith.constant dense<0.000000e+00> : vector<32x128xf32>
    %9 = tpu.matmul %1, %8, %cst_7 {dimension_numbers = #tpu.dot_dimension_numbers<[1], [0], [0], [1], [0, 0, 1, 1], [], []>} : vector<32x128xbf16>, vector<128x128xbf16>, vector<32x128xf32> -> vector<32x128xf32>
    %c0_8 = arith.constant 0 : index
    %c0_9 = arith.constant 0 : index
    %10 = vector.load %arg5[%c0_8, %c0_9] : memref<1x128xf32, #tpu.memory_space<vmem>>, vector<1x128xf32>
    %11 = vector.broadcast %10 : vector<1x128xf32> to vector<32x128xf32>
    %12 = arith.addf %9, %11 : vector<32x128xf32>
    %13 = arith.truncf %12 : vector<32x128xf32> to vector<32x128xbf16>
    %c0_10 = arith.constant 0 : index
    %c0_11 = arith.constant 0 : index
    %14 = vector.load %arg6[%c0_10, %c0_11] : memref<128x128xbf16, #tpu.memory_space<vmem>>, vector<128x128xbf16>
    %cst_12 = arith.constant dense<0.000000e+00> : vector<32x128xf32>
    %15 = tpu.matmul %1, %14, %cst_12 {dimension_numbers = #tpu.dot_dimension_numbers<[1], [0], [0], [1], [0, 0, 1, 1], [], []>} : vector<32x128xbf16>, vector<128x128xbf16>, vector<32x128xf32> -> vector<32x128xf32>
    %c0_13 = arith.constant 0 : index
    %c0_14 = arith.constant 0 : index
    %16 = vector.load %arg7[%c0_13, %c0_14] : memref<1x128xf32, #tpu.memory_space<vmem>>, vector<1x128xf32>
    %17 = vector.broadcast %16 : vector<1x128xf32> to vector<32x128xf32>
    %18 = arith.addf %15, %17 : vector<32x128xf32>
    %19 = arith.truncf %18 : vector<32x128xf32> to vector<32x128xbf16>
    %20 = vector.extract_strided_slice %7 {offsets = [0, 0], sizes = [32, 32], strides = [1, 1]} : vector<32x128xbf16> to vector<32x32xbf16>
    %21 = vector.shape_cast %20 : vector<32x32xbf16> to vector<2x16x32xbf16>
    %22 = vector.extract_strided_slice %13 {offsets = [0, 0], sizes = [32, 32], strides = [1, 1]} : vector<32x128xbf16> to vector<32x32xbf16>
    %23 = vector.shape_cast %22 : vector<32x32xbf16> to vector<2x16x32xbf16>
    %24 = vector.extract_strided_slice %19 {offsets = [0, 0], sizes = [32, 32], strides = [1, 1]} : vector<32x128xbf16> to vector<32x32xbf16>
    %25 = vector.shape_cast %24 : vector<32x32xbf16> to vector<2x16x32xbf16>
    "tpu.trace_start"() <{level = 10 : i32, message = "bqd,bkd->bqk"}> : () -> ()
    %cst_15 = arith.constant dense<0.000000e+00> : vector<2x16x16xf32>
    %26 = tpu.matmul %21, %23, %cst_15 {dimension_numbers = #tpu.dot_dimension_numbers<[2], [2], [1], [1], [0, 0, 0, 1, 1, 1], [0], [0]>} : vector<2x16x32xbf16>, vector<2x16x32xbf16>, vector<2x16x16xf32> -> vector<2x16x16xf32>
    "tpu.trace_stop"() : () -> ()
    %cst_16 = arith.constant dense<0xFF800000> : vector<2x16xf32>
    %27 = vector.multi_reduction <maximumf>, %26, %cst_16 [2] : vector<2x16x16xf32> to vector<2x16xf32>
    %28 = vector.shape_cast %27 : vector<2x16xf32> to vector<2x16x1xf32>
    %29 = vector.broadcast %28 : vector<2x16x1xf32> to vector<2x16x16xf32>
    %30 = arith.subf %26, %29 : vector<2x16x16xf32>
    %31 = math.exp %30 : vector<2x16x16xf32>
    %cst_17 = arith.constant dense<0.000000e+00> : vector<2x16xf32>
    %32 = vector.multi_reduction <add>, %31, %cst_17 [2] : vector<2x16x16xf32> to vector<2x16xf32>
    %33 = vector.shape_cast %32 : vector<2x16xf32> to vector<2x16x1xf32>
    %34 = tpu.reciprocal %33 {approx = true} : vector<2x16x1xf32> -> vector<2x16x1xf32>
    %35 = vector.broadcast %34 : vector<2x16x1xf32> to vector<2x16x16xf32>
    %36 = arith.mulf %31, %35 : vector<2x16x16xf32>
    %37 = arith.truncf %36 : vector<2x16x16xf32> to vector<2x16x16xbf16>
    "tpu.trace_start"() <{level = 10 : i32, message = "bqk,bkd->bqd"}> : () -> ()
    %cst_18 = arith.constant dense<0.000000e+00> : vector<2x16x32xf32>
    %38 = tpu.matmul %37, %25, %cst_18 {dimension_numbers = #tpu.dot_dimension_numbers<[2], [1], [1], [2], [0, 0, 0, 1, 1, 2], [0], [0]>} : vector<2x16x16xbf16>, vector<2x16x32xbf16>, vector<2x16x32xf32> -> vector<2x16x32xf32>
    "tpu.trace_stop"() : () -> ()
    %39 = vector.shape_cast %38 : vector<2x16x32xf32> to vector<32x32xf32>
    %40 = arith.truncf %39 : vector<32x32xf32> to vector<32x32xbf16>
    %c0_19 = arith.constant 0 : index
    %c0_20 = arith.constant 0 : index
    %41 = vector.load %arg19[%c0_19, %c0_20] : memref<32x128xbf16, #tpu.memory_space<vmem>>, vector<32x32xbf16>
    tpu.vector_store %arg19[%c0_19, %c0_20], %40 {strides = array<i32>} : memref<32x128xbf16, #tpu.memory_space<vmem>>, vector<32x32xbf16>,
    %42 = vector.extract_strided_slice %7 {offsets = [0, 32], sizes = [32, 32], strides = [1, 1]} : vector<32x128xbf16> to vector<32x32xbf16>
    %43 = vector.shape_cast %42 : vector<32x32xbf16> to vector<2x16x32xbf16>
    %44 = vector.extract_strided_slice %13 {offsets = [0, 32], sizes = [32, 32], strides = [1, 1]} : vector<32x128xbf16> to vector<32x32xbf16>
    %45 = vector.shape_cast %44 : vector<32x32xbf16> to vector<2x16x32xbf16>
    %46 = vector.extract_strided_slice %19 {offsets = [0, 32], sizes = [32, 32], strides = [1, 1]} : vector<32x128xbf16> to vector<32x32xbf16>
    %47 = vector.shape_cast %46 : vector<32x32xbf16> to vector<2x16x32xbf16>
    "tpu.trace_start"() <{level = 10 : i32, message = "bqd,bkd->bqk"}> : () -> ()
    %cst_21 = arith.constant dense<0.000000e+00> : vector<2x16x16xf32>
    %48 = tpu.matmul %43, %45, %cst_21 {dimension_numbers = #tpu.dot_dimension_numbers<[2], [2], [1], [1], [0, 0, 0, 1, 1, 1], [0], [0]>} : vector<2x16x32xbf16>, vector<2x16x32xbf16>, vector<2x16x16xf32> -> vector<2x16x16xf32>
    "tpu.trace_stop"() : () -> ()
    %cst_22 = arith.constant dense<0xFF800000> : vector<2x16xf32>
    %49 = vector.multi_reduction <maximumf>, %48, %cst_22 [2] : vector<2x16x16xf32> to vector<2x16xf32>
    %50 = vector.shape_cast %49 : vector<2x16xf32> to vector<2x16x1xf32>
    %51 = vector.broadcast %50 : vector<2x16x1xf32> to vector<2x16x16xf32>
    %52 = arith.subf %48, %51 : vector<2x16x16xf32>
    %53 = math.exp %52 : vector<2x16x16xf32>
    %cst_23 = arith.constant dense<0.000000e+00> : vector<2x16xf32>
    %54 = vector.multi_reduction <add>, %53, %cst_23 [2] : vector<2x16x16xf32> to vector<2x16xf32>
    %55 = vector.shape_cast %54 : vector<2x16xf32> to vector<2x16x1xf32>
    %56 = tpu.reciprocal %55 {approx = true} : vector<2x16x1xf32> -> vector<2x16x1xf32>
    %57 = vector.broadcast %56 : vector<2x16x1xf32> to vector<2x16x16xf32>
    %58 = arith.mulf %53, %57 : vector<2x16x16xf32>
    %59 = arith.truncf %58 : vector<2x16x16xf32> to vector<2x16x16xbf16>
    "tpu.trace_start"() <{level = 10 : i32, message = "bqk,bkd->bqd"}> : () -> ()
    %cst_24 = arith.constant dense<0.000000e+00> : vector<2x16x32xf32>
    %60 = tpu.matmul %59, %47, %cst_24 {dimension_numbers = #tpu.dot_dimension_numbers<[2], [1], [1], [2], [0, 0, 0, 1, 1, 2], [0], [0]>} : vector<2x16x16xbf16>, vector<2x16x32xbf16>, vector<2x16x32xf32> -> vector<2x16x32xf32>
    "tpu.trace_stop"() : () -> ()
    %61 = vector.shape_cast %60 : vector<2x16x32xf32> to vector<32x32xf32>
    %62 = arith.truncf %61 : vector<32x32xf32> to vector<32x32xbf16>
    %c0_25 = arith.constant 0 : index
    %c32 = arith.constant 32 : index
    %63 = vector.load %arg19[%c0_25, %c32] : memref<32x128xbf16, #tpu.memory_space<vmem>>, vector<32x32xbf16>
    tpu.vector_store %arg19[%c0_25, %c32], %62 {strides = array<i32>} : memref<32x128xbf16, #tpu.memory_space<vmem>>, vector<32x32xbf16>,
    %64 = vector.extract_strided_slice %7 {offsets = [0, 64], sizes = [32, 32], strides = [1, 1]} : vector<32x128xbf16> to vector<32x32xbf16>
    %65 = vector.shape_cast %64 : vector<32x32xbf16> to vector<2x16x32xbf16>
    %66 = vector.extract_strided_slice %13 {offsets = [0, 64], sizes = [32, 32], strides = [1, 1]} : vector<32x128xbf16> to vector<32x32xbf16>
    %67 = vector.shape_cast %66 : vector<32x32xbf16> to vector<2x16x32xbf16>
    %68 = vector.extract_strided_slice %19 {offsets = [0, 64], sizes = [32, 32], strides = [1, 1]} : vector<32x128xbf16> to vector<32x32xbf16>
    %69 = vector.shape_cast %68 : vector<32x32xbf16> to vector<2x16x32xbf16>
    "tpu.trace_start"() <{level = 10 : i32, message = "bqd,bkd->bqk"}> : () -> ()
    %cst_26 = arith.constant dense<0.000000e+00> : vector<2x16x16xf32>
    %70 = tpu.matmul %65, %67, %cst_26 {dimension_numbers = #tpu.dot_dimension_numbers<[2], [2], [1], [1], [0, 0, 0, 1, 1, 1], [0], [0]>} : vector<2x16x32xbf16>, vector<2x16x32xbf16>, vector<2x16x16xf32> -> vector<2x16x16xf32>
    "tpu.trace_stop"() : () -> ()
    %cst_27 = arith.constant dense<0xFF800000> : vector<2x16xf32>
    %71 = vector.multi_reduction <maximumf>, %70, %cst_27 [2] : vector<2x16x16xf32> to vector<2x16xf32>
    %72 = vector.shape_cast %71 : vector<2x16xf32> to vector<2x16x1xf32>
    %73 = vector.broadcast %72 : vector<2x16x1xf32> to vector<2x16x16xf32>
    %74 = arith.subf %70, %73 : vector<2x16x16xf32>
    %75 = math.exp %74 : vector<2x16x16xf32>
    %cst_28 = arith.constant dense<0.000000e+00> : vector<2x16xf32>
    %76 = vector.multi_reduction <add>, %75, %cst_28 [2] : vector<2x16x16xf32> to vector<2x16xf32>
    %77 = vector.shape_cast %76 : vector<2x16xf32> to vector<2x16x1xf32>
    %78 = tpu.reciprocal %77 {approx = true} : vector<2x16x1xf32> -> vector<2x16x1xf32>
    %79 = vector.broadcast %78 : vector<2x16x1xf32> to vector<2x16x16xf32>
    %80 = arith.mulf %75, %79 : vector<2x16x16xf32>
    %81 = arith.truncf %80 : vector<2x16x16xf32> to vector<2x16x16xbf16>
    "tpu.trace_start"() <{level = 10 : i32, message = "bqk,bkd->bqd"}> : () -> ()
    %cst_29 = arith.constant dense<0.000000e+00> : vector<2x16x32xf32>
    %82 = tpu.matmul %81, %69, %cst_29 {dimension_numbers = #tpu.dot_dimension_numbers<[2], [1], [1], [2], [0, 0, 0, 1, 1, 2], [0], [0]>} : vector<2x16x16xbf16>, vector<2x16x32xbf16>, vector<2x16x32xf32> -> vector<2x16x32xf32>
    "tpu.trace_stop"() : () -> ()
    %83 = vector.shape_cast %82 : vector<2x16x32xf32> to vector<32x32xf32>
    %84 = arith.truncf %83 : vector<32x32xf32> to vector<32x32xbf16>
    %c0_30 = arith.constant 0 : index
    %c64 = arith.constant 64 : index
    %85 = vector.load %arg19[%c0_30, %c64] : memref<32x128xbf16, #tpu.memory_space<vmem>>, vector<32x32xbf16>
    tpu.vector_store %arg19[%c0_30, %c64], %84 {strides = array<i32>} : memref<32x128xbf16, #tpu.memory_space<vmem>>, vector<32x32xbf16>,
    %86 = vector.extract_strided_slice %7 {offsets = [0, 96], sizes = [32, 32], strides = [1, 1]} : vector<32x128xbf16> to vector<32x32xbf16>
    %87 = vector.shape_cast %86 : vector<32x32xbf16> to vector<2x16x32xbf16>
    %88 = vector.extract_strided_slice %13 {offsets = [0, 96], sizes = [32, 32], strides = [1, 1]} : vector<32x128xbf16> to vector<32x32xbf16>
    %89 = vector.shape_cast %88 : vector<32x32xbf16> to vector<2x16x32xbf16>
    %90 = vector.extract_strided_slice %19 {offsets = [0, 96], sizes = [32, 32], strides = [1, 1]} : vector<32x128xbf16> to vector<32x32xbf16>
    %91 = vector.shape_cast %90 : vector<32x32xbf16> to vector<2x16x32xbf16>
    "tpu.trace_start"() <{level = 10 : i32, message = "bqd,bkd->bqk"}> : () -> ()
    %cst_31 = arith.constant dense<0.000000e+00> : vector<2x16x16xf32>
    %92 = tpu.matmul %87, %89, %cst_31 {dimension_numbers = #tpu.dot_dimension_numbers<[2], [2], [1], [1], [0, 0, 0, 1, 1, 1], [0], [0]>} : vector<2x16x32xbf16>, vector<2x16x32xbf16>, vector<2x16x16xf32> -> vector<2x16x16xf32>
    "tpu.trace_stop"() : () -> ()
    %cst_32 = arith.constant dense<0xFF800000> : vector<2x16xf32>
    %93 = vector.multi_reduction <maximumf>, %92, %cst_32 [2] : vector<2x16x16xf32> to vector<2x16xf32>
    %94 = vector.shape_cast %93 : vector<2x16xf32> to vector<2x16x1xf32>
    %95 = vector.broadcast %94 : vector<2x16x1xf32> to vector<2x16x16xf32>
    %96 = arith.subf %92, %95 : vector<2x16x16xf32>
    %97 = math.exp %96 : vector<2x16x16xf32>
    %cst_33 = arith.constant dense<0.000000e+00> : vector<2x16xf32>
    %98 = vector.multi_reduction <add>, %97, %cst_33 [2] : vector<2x16x16xf32> to vector<2x16xf32>
    %99 = vector.shape_cast %98 : vector<2x16xf32> to vector<2x16x1xf32>
    %100 = tpu.reciprocal %99 {approx = true} : vector<2x16x1xf32> -> vector<2x16x1xf32>
    %101 = vector.broadcast %100 : vector<2x16x1xf32> to vector<2x16x16xf32>
    %102 = arith.mulf %97, %101 : vector<2x16x16xf32>
    %103 = arith.truncf %102 : vector<2x16x16xf32> to vector<2x16x16xbf16>
    "tpu.trace_start"() <{level = 10 : i32, message = "bqk,bkd->bqd"}> : () -> ()
    %cst_34 = arith.constant dense<0.000000e+00> : vector<2x16x32xf32>
    %104 = tpu.matmul %103, %91, %cst_34 {dimension_numbers = #tpu.dot_dimension_numbers<[2], [1], [1], [2], [0, 0, 0, 1, 1, 2], [0], [0]>} : vector<2x16x16xbf16>, vector<2x16x32xbf16>, vector<2x16x32xf32> -> vector<2x16x32xf32>
    "tpu.trace_stop"() : () -> ()
    %105 = vector.shape_cast %104 : vector<2x16x32xf32> to vector<32x32xf32>
    %106 = arith.truncf %105 : vector<32x32xf32> to vector<32x32xbf16>
    %c0_35 = arith.constant 0 : index
    %c96 = arith.constant 96 : index
    %107 = vector.load %arg19[%c0_35, %c96] : memref<32x128xbf16, #tpu.memory_space<vmem>>, vector<32x32xbf16>
    tpu.vector_store %arg19[%c0_35, %c96], %106 {strides = array<i32>} : memref<32x128xbf16, #tpu.memory_space<vmem>>, vector<32x32xbf16>,
    %c0_36 = arith.constant 0 : index
    %c0_37 = arith.constant 0 : index
    %108 = vector.load %arg19[%c0_36, %c0_37] : memref<32x128xbf16, #tpu.memory_space<vmem>>, vector<32x128xbf16>
    %c0_38 = arith.constant 0 : index
    %c0_39 = arith.constant 0 : index
    %109 = vector.load %arg8[%c0_38, %c0_39] : memref<128x128xbf16, #tpu.memory_space<vmem>>, vector<128x128xbf16>
    %cst_40 = arith.constant dense<0.000000e+00> : vector<32x128xf32>
    %110 = tpu.matmul %108, %109, %cst_40 {dimension_numbers = #tpu.dot_dimension_numbers<[1], [0], [0], [1], [0, 0, 1, 1], [], []>} : vector<32x128xbf16>, vector<128x128xbf16>, vector<32x128xf32> -> vector<32x128xf32>
    %c0_41 = arith.constant 0 : index
    %c0_42 = arith.constant 0 : index
    %111 = vector.load %arg9[%c0_41, %c0_42] : memref<1x128xf32, #tpu.memory_space<vmem>>, vector<1x128xf32>
    %112 = vector.broadcast %111 : vector<1x128xf32> to vector<32x128xf32>
    %113 = arith.addf %110, %112 : vector<32x128xf32>
    %114 = arith.addf %0, %113 : vector<32x128xf32>
    %c0_43 = arith.constant 0 : index
    %c0_44 = arith.constant 0 : index
    %115 = vector.load %arg14[%c0_43, %c0_44] : memref<1x128xf32, #tpu.memory_space<vmem>>, vector<1x128xf32>
    %c0_45 = arith.constant 0 : index
    %c0_46 = arith.constant 0 : index
    %116 = vector.load %arg15[%c0_45, %c0_46] : memref<1x128xf32, #tpu.memory_space<vmem>>, vector<1x128xf32>
    %cst_47 = arith.constant dense<0.000000e+00> : vector<32xf32>
    %117 = vector.multi_reduction <add>, %114, %cst_47 [1] : vector<32x128xf32> to vector<32xf32>
    %118 = vector.shape_cast %117 : vector<32xf32> to vector<32x1xf32>
    %cst_48 = arith.constant 1.280000e+02 : f32
    %119 = vector.broadcast %cst_48 : f32 to vector<32x1xf32>
    %120 = arith.divf %118, %119 : vector<32x1xf32>
    %121 = vector.broadcast %120 : vector<32x1xf32> to vector<32x128xf32>
    %122 = arith.subf %114, %121 : vector<32x128xf32>
    %123 = arith.mulf %122, %122 : vector<32x128xf32>
    %cst_49 = arith.constant dense<0.000000e+00> : vector<32xf32>
    %124 = vector.multi_reduction <add>, %123, %cst_49 [1] : vector<32x128xf32> to vector<32xf32>
    %125 = vector.shape_cast %124 : vector<32xf32> to vector<32x1xf32>
    %cst_50 = arith.constant 1.280000e+02 : f32
    %126 = vector.broadcast %cst_50 : f32 to vector<32x1xf32>
    %127 = arith.divf %125, %126 : vector<32x1xf32>
    %cst_51 = arith.constant 9.99999974E-6 : f32
    %128 = vector.broadcast %cst_51 : f32 to vector<32x1xf32>
    %129 = arith.addf %127, %128 : vector<32x1xf32>
    %130 = math.rsqrt %129 : vector<32x1xf32>
    %131 = vector.broadcast %130 : vector<32x1xf32> to vector<32x128xf32>
    %132 = arith.mulf %122, %131 : vector<32x128xf32>
    %133 = vector.broadcast %115 : vector<1x128xf32> to vector<32x128xf32>
    %134 = arith.mulf %133, %132 : vector<32x128xf32>
    %135 = vector.broadcast %116 : vector<1x128xf32> to vector<32x128xf32>
    %136 = arith.addf %134, %135 : vector<32x128xf32>
    %137 = arith.truncf %136 : vector<32x128xf32> to vector<32x128xbf16>
    %cst_52 = arith.constant 0.000000e+00 : f32
    %138 = vector.broadcast %cst_52 : f32 to vector<32x128xf32>
    %c0_53 = arith.constant 0 : index
    %c0_54 = arith.constant 0 : index
    %139 = vector.load %arg10[%c0_53, %c0_54] : memref<128x256xbf16, #tpu.memory_space<vmem>>, vector<128x256xbf16>
    %c0_55 = arith.constant 0 : index
    %c0_56 = arith.constant 0 : index
    %140 = vector.load %arg11[%c0_55, %c0_56] : memref<1x256xf32, #tpu.memory_space<vmem>>, vector<1x256xf32>
    %cst_57 = arith.constant dense<0.000000e+00> : vector<32x256xf32>
    %141 = tpu.matmul %137, %139, %cst_57 {dimension_numbers = #tpu.dot_dimension_numbers<[1], [0], [0], [1], [0, 0, 1, 1], [], []>} : vector<32x128xbf16>, vector<128x256xbf16>, vector<32x256xf32> -> vector<32x256xf32>
    %142 = vector.broadcast %140 : vector<1x256xf32> to vector<32x256xf32>
    %143 = arith.addf %141, %142 : vector<32x256xf32>
    %cst_58 = arith.constant 5.000000e-01 : f32
    %144 = vector.broadcast %cst_58 : f32 to vector<32x256xf32>
    %145 = arith.mulf %144, %143 : vector<32x256xf32>
    %146 = arith.mulf %143, %143 : vector<32x256xf32>
    %147 = arith.mulf %143, %146 : vector<32x256xf32>
    %cst_59 = arith.constant 4.471500e-02 : f32
    %148 = vector.broadcast %cst_59 : f32 to vector<32x256xf32>
    %149 = arith.mulf %148, %147 : vector<32x256xf32>
    %150 = arith.addf %143, %149 : vector<32x256xf32>
    %cst_60 = arith.constant 0.797884583 : f32
    %151 = vector.broadcast %cst_60 : f32 to vector<32x256xf32>
    %152 = arith.mulf %151, %150 : vector<32x256xf32>
    %153 = math.tanh %152 : vector<32x256xf32>
    %cst_61 = arith.constant 1.000000e+00 : f32
    %154 = vector.broadcast %cst_61 : f32 to vector<32x256xf32>
    %155 = arith.addf %154, %153 : vector<32x256xf32>
    %156 = arith.mulf %145, %155 : vector<32x256xf32>
    %157 = arith.truncf %156 : vector<32x256xf32> to vector<32x256xbf16>
    %c0_62 = arith.constant 0 : index
    %c0_63 = arith.constant 0 : index
    %158 = vector.load %arg12[%c0_62, %c0_63] : memref<256x128xbf16, #tpu.memory_space<vmem>>, vector<256x128xbf16>
    %cst_64 = arith.constant dense<0.000000e+00> : vector<32x128xf32>
    %159 = tpu.matmul %157, %158, %cst_64 {dimension_numbers = #tpu.dot_dimension_numbers<[1], [0], [0], [1], [0, 0, 1, 1], [], []>} : vector<32x256xbf16>, vector<256x128xbf16>, vector<32x128xf32> -> vector<32x128xf32>
    %160 = arith.addf %138, %159 : vector<32x128xf32>
    %c0_65 = arith.constant 0 : index
    %c0_66 = arith.constant 0 : index
    %161 = vector.load %arg13[%c0_65, %c0_66] : memref<1x128xf32, #tpu.memory_space<vmem>>, vector<1x128xf32>
    %162 = vector.broadcast %161 : vector<1x128xf32> to vector<32x128xf32>
    %163 = arith.addf %160, %162 : vector<32x128xf32>
    %164 = arith.addf %136, %163 : vector<32x128xf32>
    %c0_67 = arith.constant 0 : index
    %c0_68 = arith.constant 0 : index
    %165 = vector.load %arg16[%c0_67, %c0_68] : memref<1x128xf32, #tpu.memory_space<vmem>>, vector<1x128xf32>
    %c0_69 = arith.constant 0 : index
    %c0_70 = arith.constant 0 : index
    %166 = vector.load %arg17[%c0_69, %c0_70] : memref<1x128xf32, #tpu.memory_space<vmem>>, vector<1x128xf32>
    %cst_71 = arith.constant dense<0.000000e+00> : vector<32xf32>
    %167 = vector.multi_reduction <add>, %164, %cst_71 [1] : vector<32x128xf32> to vector<32xf32>
    %168 = vector.shape_cast %167 : vector<32xf32> to vector<32x1xf32>
    %cst_72 = arith.constant 1.280000e+02 : f32
    %169 = vector.broadcast %cst_72 : f32 to vector<32x1xf32>
    %170 = arith.divf %168, %169 : vector<32x1xf32>
    %171 = vector.broadcast %170 : vector<32x1xf32> to vector<32x128xf32>
    %172 = arith.subf %164, %171 : vector<32x128xf32>
    %173 = arith.mulf %172, %172 : vector<32x128xf32>
    %cst_73 = arith.constant dense<0.000000e+00> : vector<32xf32>
    %174 = vector.multi_reduction <add>, %173, %cst_73 [1] : vector<32x128xf32> to vector<32xf32>
    %175 = vector.shape_cast %174 : vector<32xf32> to vector<32x1xf32>
    %cst_74 = arith.constant 1.280000e+02 : f32
    %176 = vector.broadcast %cst_74 : f32 to vector<32x1xf32>
    %177 = arith.divf %175, %176 : vector<32x1xf32>
    %cst_75 = arith.constant 9.99999974E-6 : f32
    %178 = vector.broadcast %cst_75 : f32 to vector<32x1xf32>
    %179 = arith.addf %177, %178 : vector<32x1xf32>
    %180 = math.rsqrt %179 : vector<32x1xf32>
    %181 = vector.broadcast %180 : vector<32x1xf32> to vector<32x128xf32>
    %182 = arith.mulf %172, %181 : vector<32x128xf32>
    %183 = vector.broadcast %165 : vector<1x128xf32> to vector<32x128xf32>
    %184 = arith.mulf %183, %182 : vector<32x128xf32>
    %185 = vector.broadcast %166 : vector<1x128xf32> to vector<32x128xf32>
    %186 = arith.addf %184, %185 : vector<32x128xf32>
    %c0_76 = arith.constant 0 : index
    %c0_77 = arith.constant 0 : index
    %187 = vector.load %arg18[%c0_76, %c0_77] : memref<32x128xf32, #tpu.memory_space<vmem>>, vector<32x128xf32>
    tpu.vector_store %arg18[%c0_76, %c0_77], %186 {strides = array<i32>} : memref<32x128xf32, #tpu.memory_space<vmem>>, vector<32x128xf32>,
    return
  }
  func.func @transform_0(%arg0: i32) -> (i32, i32) {
    %c0_i32 = arith.constant 0 : i32
    %c0_i32_0 = arith.constant 0 : i32
    return %arg0, %c0_i32 : i32, i32
  }
  func.func @transform_1(%arg0: i32) -> (i32, i32) {
    %c0_i32 = arith.constant 0 : i32
    %c0_i32_0 = arith.constant 0 : i32
    %c0_i32_1 = arith.constant 0 : i32
    return %c0_i32, %c0_i32_0 : i32, i32
  }
  func.func @transform_2(%arg0: i32) -> (i32, i32) {
    %c0_i32 = arith.constant 0 : i32
    %c0_i32_0 = arith.constant 0 : i32
    %c0_i32_1 = arith.constant 0 : i32
    return %c0_i32, %c0_i32_0 : i32, i32
  }
  func.func @transform_3(%arg0: i32) -> (i32, i32) {
    %c0_i32 = arith.constant 0 : i32
    %c0_i32_0 = arith.constant 0 : i32
    %c0_i32_1 = arith.constant 0 : i32
    return %c0_i32, %c0_i32_0 : i32, i32
  }
  func.func @transform_4(%arg0: i32) -> (i32, i32) {
    %c0_i32 = arith.constant 0 : i32
    %c0_i32_0 = arith.constant 0 : i32
    %c0_i32_1 = arith.constant 0 : i32
    return %c0_i32, %c0_i32_0 : i32, i32
  }
  func.func @transform_5(%arg0: i32) -> (i32, i32) {
    %c0_i32 = arith.constant 0 : i32
    %c0_i32_0 = arith.constant 0 : i32
    %c0_i32_1 = arith.constant 0 : i32
    return %c0_i32, %c0_i32_0 : i32, i32
  }
  func.func @transform_6(%arg0: i32) -> (i32, i32) {
    %c0_i32 = arith.constant 0 : i32
    %c0_i32_0 = arith.constant 0 : i32
    %c0_i32_1 = arith.constant 0 : i32
    return %c0_i32, %c0_i32_0 : i32, i32
  }
  func.func @transform_7(%arg0: i32) -> (i32, i32) {
    %c0_i32 = arith.constant 0 : i32
    %c0_i32_0 = arith.constant 0 : i32
    %c0_i32_1 = arith.constant 0 : i32
    return %c0_i32, %c0_i32_0 : i32, i32
  }
  func.func @transform_8(%arg0: i32) -> (i32, i32) {
    %c0_i32 = arith.constant 0 : i32
    %c0_i32_0 = arith.constant 0 : i32
    %c0_i32_1 = arith.constant 0 : i32
    return %c0_i32, %c0_i32_0 : i32, i32
  }
  func.func @transform_9(%arg0: i32) -> (i32, i32) {
    %c0_i32 = arith.constant 0 : i32
    %c0_i32_0 = arith.constant 0 : i32
    %c0_i32_1 = arith.constant 0 : i32
    return %c0_i32, %c0_i32_0 : i32, i32
  }
  func.func @transform_10(%arg0: i32) -> (i32, i32) {
    %c0_i32 = arith.constant 0 : i32
    %c0_i32_0 = arith.constant 0 : i32
    %c0_i32_1 = arith.constant 0 : i32
    return %c0_i32, %c0_i32_0 : i32, i32
  }
  func.func @transform_11(%arg0: i32) -> (i32, i32) {
    %c0_i32 = arith.constant 0 : i32
    %c0_i32_0 = arith.constant 0 : i32
    %c0_i32_1 = arith.constant 0 : i32
    return %c0_i32, %c0_i32_0 : i32, i32
  }
  func.func @transform_12(%arg0: i32) -> (i32, i32) {
    %c0_i32 = arith.constant 0 : i32
    %c0_i32_0 = arith.constant 0 : i32
    %c0_i32_1 = arith.constant 0 : i32
    return %c0_i32, %c0_i32_0 : i32, i32
  }
  func.func @transform_13(%arg0: i32) -> (i32, i32) {
    %c0_i32 = arith.constant 0 : i32
    %c0_i32_0 = arith.constant 0 : i32
    %c0_i32_1 = arith.constant 0 : i32
    return %c0_i32, %c0_i32_0 : i32, i32
  }
  func.func @transform_14(%arg0: i32) -> (i32, i32) {
    %c0_i32 = arith.constant 0 : i32
    %c0_i32_0 = arith.constant 0 : i32
    %c0_i32_1 = arith.constant 0 : i32
    return %c0_i32, %c0_i32_0 : i32, i32
  }
  func.func @transform_15(%arg0: i32) -> (i32, i32) {
    %c0_i32 = arith.constant 0 : i32
    %c0_i32_0 = arith.constant 0 : i32
    %c0_i32_1 = arith.constant 0 : i32
    return %c0_i32, %c0_i32_0 : i32, i32
  }
  func.func @transform_16(%arg0: i32) -> (i32, i32) {
    %c0_i32 = arith.constant 0 : i32
    %c0_i32_0 = arith.constant 0 : i32
    %c0_i32_1 = arith.constant 0 : i32
    return %c0_i32, %c0_i32_0 : i32, i32
  }
  func.func @transform_17(%arg0: i32) -> (i32, i32) {
    %c0_i32 = arith.constant 0 : i32
    %c0_i32_0 = arith.constant 0 : i32
    return %arg0, %c0_i32 : i32, i32
  }
}

</mosaic_0001>

<llo_original>
// kernel: tpu_custom_call.1
$region0: #{tpu_custom_call.1}
  #allocation0 [shape = 'u32[]', space=smem, size = 0x4, offset = 0x4, fixed_abs, tag = 'smem constant byte address 0x4 - core index']
  #allocation1 [shape = 'u32[144,128]{1,0:T(1,128)}', space=vmem, size = 0x12000, scoped, tag = 'internal scratch']
  #allocation2 [shape = 'bf16[32,128]{1,0:T(8,128)(2,1)}', space=vmem, size = 0x2000, scoped, tag = 'scratch operand']
  %s0 = inlined_call_operand.hbm [shape: f32[32,128], index: 0, kind: input, shape index: {}]
  %s1 = inlined_call_operand.hbm [shape: bf16[128,128], index: 1, kind: input, shape index: {}]
  %s2 = inlined_call_operand.vmem [shape: f32[1,128], index: 2, kind: input, shape index: {}]
  %s3 = inlined_call_operand.hbm [shape: bf16[128,128], index: 3, kind: input, shape index: {}]
  %s4 = inlined_call_operand.vmem [shape: f32[1,128], index: 4, kind: input, shape index: {}]
  %s5 = inlined_call_operand.hbm [shape: bf16[128,128], index: 5, kind: input, shape index: {}]
  %s6 = inlined_call_operand.vmem [shape: f32[1,128], index: 6, kind: input, shape index: {}]
  %s7 = inlined_call_operand.hbm [shape: bf16[128,128], index: 7, kind: input, shape index: {}]
  %s8 = inlined_call_operand.vmem [shape: f32[1,128], index: 8, kind: input, shape index: {}]
  %s9 = inlined_call_operand.hbm [shape: bf16[128,256], index: 9, kind: input, shape index: {}]
  %s10 = inlined_call_operand.vmem [shape: f32[1,256], index: 10, kind: input, shape index: {}]
  %s11 = inlined_call_operand.hbm [shape: bf16[256,128], index: 11, kind: input, shape index: {}]
  %s12 = inlined_call_operand.vmem [shape: f32[1,128], index: 12, kind: input, shape index: {}]
  %s13 = inlined_call_operand.vmem [shape: f32[1,128], index: 13, kind: input, shape index: {}]
  %s14 = inlined_call_operand.vmem [shape: f32[1,128], index: 14, kind: input, shape index: {}]
  %s15 = inlined_call_operand.vmem [shape: f32[1,128], index: 15, kind: input, shape index: {}]
  %s16 = inlined_call_operand.vmem [shape: f32[1,128], index: 16, kind: input, shape index: {}]
  %s17 = inlined_call_operand.hbm [shape: f32[32,128], index: 17, kind: output, shape index: {}]
  %s18 = sld [smem:[#allocation0]]
  $region106: #{tpu_custom_call.1} parent=0
    _
  %s20 = ssub.s32 1, %s18
  %s21 = scalar_select 0, %s20, %s18
  $region1: #{tpu_custom_call.1} parent=0
    #allocation3 [shape = 'u8[16384]{0}', space=vmem, size = 0x4000, scoped, tag = 'input window, operand 0, single buffered']
    #allocation4 [shape = 's32[1]{0}', space=sflag, size = 0x4, scoped, tag = 'scoped memory for tpu_custom_call.1']
    #allocation5 [shape = 's32[1]{0}', space=sflag, size = 0x4, scoped, tag = 'scoped memory for tpu_custom_call.1']
    #allocation6 [shape = 'u8[32768]{0}', space=vmem, size = 0x8000, scoped, tag = 'input window, operand 1, single buffered']
    #allocation7 [shape = 's32[1]{0}', space=sflag, size = 0x4, scoped, tag = 'scoped memory for tpu_custom_call.1']
    #allocation8 [shape = 'u8[32768]{0}', space=vmem, size = 0x8000, scoped, tag = 'input window, operand 3, single buffered']
    #allocation9 [shape = 'u8[32768]{0}', space=vmem, size = 0x8000, scoped, tag = 'input window, operand 5, single buffered']
    #allocation10 [shape = 's32[1]{0}', space=sflag, size = 0x4, scoped, tag = 'scoped memory for tpu_custom_call.1']
    #allocation11 [shape = 'u8[32768]{0}', space=vmem, size = 0x8000, scoped, tag = 'input window, operand 7, single buffered']
    #allocation12 [shape = 'u8[65536]{0}', space=vmem, size = 0x10000, scoped, tag = 'input window, operand 9, single buffered']
    #allocation13 [shape = 's32[1]{0}', space=sflag, size = 0x4, scoped, tag = 'scoped memory for tpu_custom_call.1']
    #allocation14 [shape = 'u8[65536]{0}', space=vmem, size = 0x10000, scoped, tag = 'input window, operand 11, single buffered']
    #allocation15 [shape = 'u8[16384]{0}', space=vmem, size = 0x4000, scoped, tag = 'output window, operand 0, single buffered']
    %22 = vsyncpa [#allocation4], 0
    %23 = vsyncpa [#allocation7], 0
    %24 = vsyncpa [#allocation10], 0
    %25 = vsyncpa [#allocation13], 0
    %26 = vsyncpa [#allocation5], 0
    // Predicated region
    $region2: #{tpu_custom_call.1} parent=1 // pred_check
      _
    $region3: #{tpu_custom_call.1} parent=1 // pred_check_branch
      %28 = sbr.rel (0) target = $region5
    $region4: #{tpu_custom_call.1} parent=1 // pred_region
      %s30 = ssub.s32 512, 512
      %31 = vsyncadd [#allocation4], %s30
      %s32 = sshll.u32 [#allocation3], 4
      %s33 = int_to_ptr.vmem [resolvable:$true] %s32
      %38 = dma.hbm_to_vmem [thread:$0]  %s0, 512, %s33, [#allocation4], 128, 128, 8
    $region5: #{tpu_custom_call.1} parent=1 // pred_fallthru
      _
    // Predicated region
    $region6: #{tpu_custom_call.1} parent=1 // pred_check
      _
    $region7: #{tpu_custom_call.1} parent=1 // pred_check_branch
      %40 = sbr.rel (0) target = $region9
    $region8: #{tpu_custom_call.1} parent=1 // pred_region
      %s42 = ssub.s32 1024, 1024
      %43 = vsyncadd [#allocation7], %s42
      %s44 = sshll.u32 [#allocation6], 4
      %s45 = int_to_ptr.vmem [resolvable:$true] %s44
      %50 = dma.hbm_to_vmem [thread:$0]  %s1, 1024, %s45, [#allocation7], 64, 64, 4
    $region9: #{tpu_custom_call.1} parent=1 // pred_fallthru
      _
    // Predicated region
    $region10: #{tpu_custom_call.1} parent=1 // pred_check
      _
    $region11: #{tpu_custom_call.1} parent=1 // pred_check_branch
      %52 = sbr.rel (0) target = $region13
    $region12: #{tpu_custom_call.1} parent=1 // pred_region
      _
    $region13: #{tpu_custom_call.1} parent=1 // pred_fallthru
      _
    // Predicated region
    $region14: #{tpu_custom_call.1} parent=1 // pred_check
      _
    $region15: #{tpu_custom_call.1} parent=1 // pred_check_branch
      %54 = sbr.rel (0) target = $region17
    $region16: #{tpu_custom_call.1} parent=1 // pred_region
      %s56 = ssub.s32 1024, 1024
      %57 = vsyncadd [#allocation7], %s56
      %s58 = sshll.u32 [#allocation8], 4
      %s59 = int_to_ptr.vmem [resolvable:$true] %s58
      %64 = dma.hbm_to_vmem [thread:$0]  %s3, 1024, %s59, [#allocation7], 64, 64, 4
    $region17: #{tpu_custom_call.1} parent=1 // pred_fallthru
      _
    // Predicated region
    $region18: #{tpu_custom_call.1} parent=1 // pred_check
      _
    $region19: #{tpu_custom_call.1} parent=1 // pred_check_branch
      %66 = sbr.rel (0) target = $region21
    $region20: #{tpu_custom_call.1} parent=1 // pred_region
      _
    $region21: #{tpu_custom_call.1} parent=1 // pred_fallthru
      _
    // Predicated region
    $region22: #{tpu_custom_call.1} parent=1 // pred_check
      _
    $region23: #{tpu_custom_call.1} parent=1 // pred_check_branch
      %68 = sbr.rel (0) target = $region25
    $region24: #{tpu_custom_call.1} parent=1 // pred_region
      %s70 = ssub.s32 1024, 1024
      %71 = vsyncadd [#allocation10], %s70
      %s72 = sshll.u32 [#allocation9], 4
      %s73 = int_to_ptr.vmem [resolvable:$true] %s72
      %78 = dma.hbm_to_vmem [thread:$0]  %s5, 1024, %s73, [#allocation10], 64, 64, 4
    $region25: #{tpu_custom_call.1} parent=1 // pred_fallthru
      _
    // Predicated region
    $region26: #{tpu_custom_call.1} parent=1 // pred_check
      _
    $region27: #{tpu_custom_call.1} parent=1 // pred_check_branch
      %80 = sbr.rel (0) target = $region29
    $region28: #{tpu_custom_call.1} parent=1 // pred_region
      _
    $region29: #{tpu_custom_call.1} parent=1 // pred_fallthru
      _
    // Predicated region
    $region30: #{tpu_custom_call.1} parent=1 // pred_check
      _
    $region31: #{tpu_custom_call.1} parent=1 // pred_check_branch
      %82 = sbr.rel (0) target = $region33
    $region32: #{tpu_custom_call.1} parent=1 // pred_region
      %s84 = ssub.s32 1024, 1024
      %85 = vsyncadd [#allocation10], %s84
      %s86 = sshll.u32 [#allocation11], 4
      %s87 = int_to_ptr.vmem [resolvable:$true] %s86
      %92 = dma.hbm_to_vmem [thread:$0]  %s7, 1024, %s87, [#allocation10], 64, 64, 4
    $region33: #{tpu_custom_call.1} parent=1 // pred_fallthru
      _
    // Predicated region
    $region34: #{tpu_custom_call.1} parent=1 // pred_check
      _
    $region35: #{tpu_custom_call.1} parent=1 // pred_check_branch
      %94 = sbr.rel (0) target = $region37
    $region36: #{tpu_custom_call.1} parent=1 // pred_region
      _
    $region37: #{tpu_custom_call.1} parent=1 // pred_fallthru
      _
    // Predicated region
    $region38: #{tpu_custom_call.1} parent=1 // pred_check
      _
    $region39: #{tpu_custom_call.1} parent=1 // pred_check_branch
      %96 = sbr.rel (0) target = $region41
    $region40: #{tpu_custom_call.1} parent=1 // pred_region
      %s98 = ssub.s32 2048, 2048
      %99 = vsyncadd [#allocation13], %s98
      %s100 = sshll.u32 [#allocation12], 4
      %s101 = int_to_ptr.vmem [resolvable:$true] %s100
      %106 = dma.hbm_to_vmem [thread:$0]  %s9, 2048, %s101, [#allocation13], 128, 128, 8
    $region41: #{tpu_custom_call.1} parent=1 // pred_fallthru
      _
    // Predicated region
    $region42: #{tpu_custom_call.1} parent=1 // pred_check
      _
    $region43: #{tpu_custom_call.1} parent=1 // pred_check_branch
      %108 = sbr.rel (0) target = $region45
    $region44: #{tpu_custom_call.1} parent=1 // pred_region
      _
    $region45: #{tpu_custom_call.1} parent=1 // pred_fallthru
      _
    // Predicated region
    $region46: #{tpu_custom_call.1} parent=1 // pred_check
      _
    $region47: #{tpu_custom_call.1} parent=1 // pred_check_branch
      %110 = sbr.rel (0) target = $region49
    $region48: #{tpu_custom_call.1} parent=1 // pred_region
      %s112 = ssub.s32 2048, 2048
      %113 = vsyncadd [#allocation13], %s112
      %s114 = sshll.u32 [#allocation14], 4
      %s115 = int_to_ptr.vmem [resolvable:$true] %s114
      %120 = dma.hbm_to_vmem [thread:$0]  %s11, 2048, %s115, [#allocation13], 64, 64, 4
    $region49: #{tpu_custom_call.1} parent=1 // pred_fallthru
      _
    // Predicated region
    $region50: #{tpu_custom_call.1} parent=1 // pred_check
      _
    $region51: #{tpu_custom_call.1} parent=1 // pred_check_branch
      %122 = sbr.rel (0) target = $region53
    $region52: #{tpu_custom_call.1} parent=1 // pred_region
      _
    $region53: #{tpu_custom_call.1} parent=1 // pred_fallthru
      _
    // Predicated region
    $region54: #{tpu_custom_call.1} parent=1 // pred_check
      _
    $region55: #{tpu_custom_call.1} parent=1 // pred_check_branch
      %124 = sbr.rel (0) target = $region57
    $region56: #{tpu_custom_call.1} parent=1 // pred_region
      _
    $region57: #{tpu_custom_call.1} parent=1 // pred_fallthru
      _
    // Predicated region
    $region58: #{tpu_custom_call.1} parent=1 // pred_check
      _
    $region59: #{tpu_custom_call.1} parent=1 // pred_check_branch
      %126 = sbr.rel (0) target = $region61
    $region60: #{tpu_custom_call.1} parent=1 // pred_region
      _
    $region61: #{tpu_custom_call.1} parent=1 // pred_fallthru
      _
    // Predicated region
    $region62: #{tpu_custom_call.1} parent=1 // pred_check
      _
    $region63: #{tpu_custom_call.1} parent=1 // pred_check_branch
      %128 = sbr.rel (0) target = $region65
    $region64: #{tpu_custom_call.1} parent=1 // pred_region
      _
    $region65: #{tpu_custom_call.1} parent=1 // pred_fallthru
      _
    // Predicated region
    $region66: #{tpu_custom_call.1} parent=1 // pred_check
      _
    $region67: #{tpu_custom_call.1} parent=1 // pred_check_branch
      %130 = sbr.rel (0) target = $region69
    $region68: #{tpu_custom_call.1} parent=1 // pred_region
      _
    $region69: #{tpu_custom_call.1} parent=1 // pred_fallthru
      _
    // Predicated region
    $region70: #{tpu_custom_call.1} parent=1 // pred_check
      _
    $region71: #{tpu_custom_call.1} parent=1 // pred_check_branch
      %132 = sbr.rel (0) target = $region73
    $region72: #{tpu_custom_call.1} parent=1 // pred_region
      %133 = dma.done [#allocation4], 512
    $region73: #{tpu_custom_call.1} parent=1 // pred_fallthru
      _
    // Predicated region
    $region74: #{tpu_custom_call.1} parent=1 // pred_check
      _
    $region75: #{tpu_custom_call.1} parent=1 // pred_check_branch
      %135 = sbr.rel (0) target = $region77
    $region76: #{tpu_custom_call.1} parent=1 // pred_region
      %136 = dma.done [#allocation7], 1024
    $region77: #{tpu_custom_call.1} parent=1 // pred_fallthru
      _
    // Predicated region
    $region78: #{tpu_custom_call.1} parent=1 // pred_check
      _
    $region79: #{tpu_custom_call.1} parent=1 // pred_check_branch
      %138 = sbr.rel (0) target = $region81
    $region80: #{tpu_custom_call.1} parent=1 // pred_region
      %139 = dma.done [#allocation7], 1024
    $region81: #{tpu_custom_call.1} parent=1 // pred_fallthru
      _
    // Predicated region
    $region82: #{tpu_custom_call.1} parent=1 // pred_check
      _
    $region83: #{tpu_custom_call.1} parent=1 // pred_check_branch
      %141 = sbr.rel (0) target = $region85
    $region84: #{tpu_custom_call.1} parent=1 // pred_region
      %142 = dma.done [#allocation10], 1024
    $region85: #{tpu_custom_call.1} parent=1 // pred_fallthru
      _
    // Predicated region
    $region86: #{tpu_custom_call.1} parent=1 // pred_check
      _
    $region87: #{tpu_custom_call.1} parent=1 // pred_check_branch
      %144 = sbr.rel (0) target = $region89
    $region88: #{tpu_custom_call.1} parent=1 // pred_region
      %145 = dma.done [#allocation10], 1024
    $region89: #{tpu_custom_call.1} parent=1 // pred_fallthru
      _
    // Predicated region
    $region90: #{tpu_custom_call.1} parent=1 // pred_check
      _
    $region91: #{tpu_custom_call.1} parent=1 // pred_check_branch
      %147 = sbr.rel (0) target = $region93
    $region92: #{tpu_custom_call.1} parent=1 // pred_region
      %148 = dma.done [#allocation13], 2048
    $region93: #{tpu_custom_call.1} parent=1 // pred_fallthru
      _
    // Predicated region
    $region94: #{tpu_custom_call.1} parent=1 // pred_check
      _
    $region95: #{tpu_custom_call.1} parent=1 // pred_check_branch
      %150 = sbr.rel (0) target = $region97
    $region96: #{tpu_custom_call.1} parent=1 // pred_region
      %151 = dma.done [#allocation13], 2048
    $region97: #{tpu_custom_call.1} parent=1 // pred_fallthru
      _
    %v153 = vld [vmem:[#allocation3] sm:$0xff]
    %v154 = vld [vmem:[#allocation3 + $0x8] sm:$0xff]
    %v155 = vld [vmem:[#allocation3 + $0x10] sm:$0xff]
    %v156 = vld [vmem:[#allocation3 + $0x18] sm:$0xff]
    %v157 = vpack.c.bf16 %v154, %v153
    %v158 = vpack.c.bf16 %v156, %v155
    %v159 = vld [vmem:[#allocation6] sm:$0xf]
    %v160 = vld [vmem:[#allocation6 + $0x4] sm:$0xf]
    %v161 = vld [vmem:[#allocation6 + $0x8] sm:$0xf]
    %v162 = vld [vmem:[#allocation6 + $0xc] sm:$0xf]
    %v163 = vld [vmem:[#allocation6 + $0x10] sm:$0xf]
    %v164 = vld [vmem:[#allocation6 + $0x14] sm:$0xf]
    %v165 = vld [vmem:[#allocation6 + $0x18] sm:$0xf]
    %v166 = vld [vmem:[#allocation6 + $0x1c] sm:$0xf]
    %v167 = vld [vmem:[#allocation6 + $0x20] sm:$0xf]
    %v168 = vld [vmem:[#allocation6 + $0x24] sm:$0xf]
    %v169 = vld [vmem:[#allocation6 + $0x28] sm:$0xf]
    %v170 = vld [vmem:[#allocation6 + $0x2c] sm:$0xf]
    %v171 = vld [vmem:[#allocation6 + $0x30] sm:$0xf]
    %v172 = vld [vmem:[#allocation6 + $0x34] sm:$0xf]
    %v173 = vld [vmem:[#allocation6 + $0x38] sm:$0xf]
    %v174 = vld [vmem:[#allocation6 + $0x3c] sm:$0xf]
    %v175 = vld [vmem:[%s2] sm:$0x1]
    %v177 = vlaneseq
    %v178 = vshrl.u32 %v177, 7
    %v179 = vsub.s32 0, %v178
    %v180 = vrot.slane %v175, %v179
    %v198 = vunpack.c.l.b16 %v159
    %v199 = vunpack.c.l.b16 %v160
    %v200 = vunpack.c.l.b16 %v161
    %v201 = vunpack.c.l.b16 %v162
    %v202 = vunpack.c.l.b16 %v163
    %v203 = vunpack.c.l.b16 %v164
    %v204 = vunpack.c.l.b16 %v165
    %v205 = vunpack.c.l.b16 %v166
    %v206 = vunpack.c.l.b16 %v167
    %v207 = vunpack.c.l.b16 %v168
    %v208 = vunpack.c.l.b16 %v169
    %v209 = vunpack.c.l.b16 %v170
    %v210 = vunpack.c.l.b16 %v171
    %v211 = vunpack.c.l.b16 %v172
    %v212 = vunpack.c.l.b16 %v173
    %v213 = vunpack.c.l.b16 %v174
    %v214 = vpack.c.b16 %v199, %v198
    %v215 = vpack.c.b16 %v201, %v200
    %v216 = vpack.c.b16 %v203, %v202
    %v217 = vpack.c.b16 %v205, %v204
    %v218 = vpack.c.b16 %v207, %v206
    %v219 = vpack.c.b16 %v209, %v208
    %v220 = vpack.c.b16 %v211, %v210
    %v221 = vpack.c.b16 %v213, %v212
    %230 = vmatprep.subr.bf16.mxu0 0
    %231 = vmatpush1.bf16.msra.mxu0 %v221
    %232 = vmatprep.subr.bf16.mxu0 0
    %233 = vmatpush1.bf16.msra.mxu0 %v220
    %234 = vmatprep.subr.bf16.mxu0 0
    %235 = vmatpush1.bf16.msra.mxu0 %v219
    %236 = vmatprep.subr.bf16.mxu0 0
    %237 = vmatpush1.bf16.msra.mxu0 %v218
    %238 = vmatprep.subr.bf16.mxu0 0
    %239 = vmatpush1.bf16.msra.mxu0 %v217
    %240 = vmatprep.subr.bf16.mxu0 0
    %241 = vmatpush1.bf16.msra.mxu0 %v216
    %242 = vmatprep.subr.bf16.mxu0 0
    %243 = vmatpush1.bf16.msra.mxu0 %v215
    %244 = vmatprep.subr.bf16.mxu0 0
    %245 = vmatpush1.bf16.msra.mxu0 %v214
    %246 = vmatprep.subr.bf16.mxu0 0
    %247 = vmatpush2.bf16.msra.mxu0 0
    %248 = vmatprep.subr.bf16.mxu0 0
    %249 = vmatpush2.bf16.msra.mxu0 0
    %250 = vmatprep.subr.bf16.mxu0 0
    %251 = vmatpush2.bf16.msra.mxu0 0
    %252 = vmatprep.subr.bf16.mxu0 0
    %253 = vmatpush2.bf16.msra.mxu0 0
    %254 = vmatprep.subr.bf16.mxu0 0
    %255 = vmatpush2.bf16.msra.mxu0 0
    %256 = vmatprep.subr.bf16.mxu0 0
    %257 = vmatpush2.bf16.msra.mxu0 0
    %258 = vmatprep.subr.bf16.mxu0 0
    %259 = vmatpush2.bf16.msra.mxu0 0
    %260 = vmatprep.subr.bf16.mxu0 0
    %261 = vmatpush2.bf16.msra.mxu0 0
    %262 = vmatprep.mubr.bf16.mxu0 0
    %263 = vmatmul.mubr.bf16.gmra.mxu0 %v157
    %v264 = vpop.f32.mrf.mxu0
    %v265 = vadd.f32 %v180, %v264
    %v266 = vpop.f32.mrf.mxu0
    %v267 = vpop.f32.mrf.mxu0
    %v268 = vadd.f32 %v180, %v267
    %v269 = vpop.f32.mrf.mxu0
    %270 = vmatprep.mubr.bf16.mxu0 0
    %271 = vmatmul.mubr.bf16.gmra.mxu0 %v158
    %v272 = vpop.f32.mrf.mxu0
    %v273 = vadd.f32 %v180, %v272
    %v274 = vpop.f32.mrf.mxu0
    %v275 = vpop.f32.mrf.mxu0
    %v276 = vadd.f32 %v180, %v275
    %v277 = vpop.f32.mrf.mxu0
    %278 = vdwg.mxu0
    %v279 = vpack.c.bf16 %v268, %v265
    %v280 = vpack.c.bf16 %v276, %v273
    %v281 = vld [vmem:[#allocation8] sm:$0xf]
    %v282 = vld [vmem:[#allocation8 + $0x4] sm:$0xf]
    %v283 = vld [vmem:[#allocation8 + $0x8] sm:$0xf]
    %v284 = vld [vmem:[#allocation8 + $0xc] sm:$0xf]
    %v285 = vld [vmem:[#allocation8 + $0x10] sm:$0xf]
    %v286 = vld [vmem:[#allocation8 + $0x14] sm:$0xf]
    %v287 = vld [vmem:[#allocation8 + $0x18] sm:$0xf]
    %v288 = vld [vmem:[#allocation8 + $0x1c] sm:$0xf]
    %v289 = vld [vmem:[#allocation8 + $0x20] sm:$0xf]
    %v290 = vld [vmem:[#allocation8 + $0x24] sm:$0xf]
    %v291 = vld [vmem:[#allocation8 + $0x28] sm:$0xf]
    %v292 = vld [vmem:[#allocation8 + $0x2c] sm:$0xf]
    %v293 = vld [vmem:[#allocation8 + $0x30] sm:$0xf]
    %v294 = vld [vmem:[#allocation8 + $0x34] sm:$0xf]
    %v295 = vld [vmem:[#allocation8 + $0x38] sm:$0xf]
    %v296 = vld [vmem:[#allocation8 + $0x3c] sm:$0xf]
    %v297 = vld [vmem:[%s4] sm:$0x1]
    %v299 = vlaneseq
    %v300 = vshrl.u32 %v299, 7
    %v301 = vsub.s32 0, %v300
    %v302 = vrot.slane %v297, %v301
    %v320 = vunpack.c.l.b16 %v281
    %v321 = vunpack.c.l.b16 %v282
    %v322 = vunpack.c.l.b16 %v283
    %v323 = vunpack.c.l.b16 %v284
    %v324 = vunpack.c.l.b16 %v285
    %v325 = vunpack.c.l.b16 %v286
    %v326 = vunpack.c.l.b16 %v287
    %v327 = vunpack.c.l.b16 %v288
    %v328 = vunpack.c.l.b16 %v289
    %v329 = vunpack.c.l.b16 %v290
    %v330 = vunpack.c.l.b16 %v291
    %v331 = vunpack.c.l.b16 %v292
    %v332 = vunpack.c.l.b16 %v293
    %v333 = vunpack.c.l.b16 %v294
    %v334 = vunpack.c.l.b16 %v295
    %v335 = vunpack.c.l.b16 %v296
    %v336 = vpack.c.b16 %v321, %v320
    %v337 = vpack.c.b16 %v323, %v322
    %v338 = vpack.c.b16 %v325, %v324
    %v339 = vpack.c.b16 %v327, %v326
    %v340 = vpack.c.b16 %v329, %v328
    %v341 = vpack.c.b16 %v331, %v330
    %v342 = vpack.c.b16 %v333, %v332
    %v343 = vpack.c.b16 %v335, %v334
    %352 = vmatprep.subr.bf16.mxu0 0
    %353 = vmatpush1.bf16.msra.mxu0 %v343
    %354 = vmatprep.subr.bf16.mxu0 0
    %355 = vmatpush1.bf16.msra.mxu0 %v342
    %356 = vmatprep.subr.bf16.mxu0 0
    %357 = vmatpush1.bf16.msra.mxu0 %v341
    %358 = vmatprep.subr.bf16.mxu0 0
    %359 = vmatpush1.bf16.msra.mxu0 %v340
    %360 = vmatprep.subr.bf16.mxu0 0
    %361 = vmatpush1.bf16.msra.mxu0 %v339
    %362 = vmatprep.subr.bf16.mxu0 0
    %363 = vmatpush1.bf16.msra.mxu0 %v338
    %364 = vmatprep.subr.bf16.mxu0 0
    %365 = vmatpush1.bf16.msra.mxu0 %v337
    %366 = vmatprep.subr.bf16.mxu0 0
    %367 = vmatpush1.bf16.msra.mxu0 %v336
    %368 = vmatprep.subr.bf16.mxu0 0
    %369 = vmatpush2.bf16.msra.mxu0 0
    %370 = vmatprep.subr.bf16.mxu0 0
    %371 = vmatpush2.bf16.msra.mxu0 0
    %372 = vmatprep.subr.bf16.mxu0 0
    %373 = vmatpush2.bf16.msra.mxu0 0
    %374 = vmatprep.subr.bf16.mxu0 0
    %375 = vmatpush2.bf16.msra.mxu0 0
    %376 = vmatprep.subr.bf16.mxu0 0
    %377 = vmatpush2.bf16.msra.mxu0 0
    %378 = vmatprep.subr.bf16.mxu0 0
    %379 = vmatpush2.bf16.msra.mxu0 0
    %380 = vmatprep.subr.bf16.mxu0 0
    %381 = vmatpush2.bf16.msra.mxu0 0
    %382 = vmatprep.subr.bf16.mxu0 0
    %383 = vmatpush2.bf16.msra.mxu0 0
    %384 = vmatprep.mubr.bf16.mxu0 0
    %385 = vmatmul.mubr.bf16.gmra.mxu0 %v157
    %v386 = vpop.f32.mrf.mxu0
    %v387 = vadd.f32 %v302, %v386
    %v388 = vpop.f32.mrf.mxu0
    %v389 = vpop.f32.mrf.mxu0
    %v390 = vadd.f32 %v302, %v389
    %v391 = vpop.f32.mrf.mxu0
    %392 = vmatprep.mubr.bf16.mxu0 0
    %393 = vmatmul.mubr.bf16.gmra.mxu0 %v158
    %v394 = vpop.f32.mrf.mxu0
    %v395 = vadd.f32 %v302, %v394
    %v396 = vpop.f32.mrf.mxu0
    %v397 = vpop.f32.mrf.mxu0
    %v398 = vadd.f32 %v302, %v397
    %v399 = vpop.f32.mrf.mxu0
    %400 = vdwg.mxu0
    %v401 = vpack.c.bf16 %v390, %v387
    %v402 = vpack.c.bf16 %v398, %v395
    %v403 = vld [vmem:[#allocation9] sm:$0xf]
    %v404 = vld [vmem:[#allocation9 + $0x4] sm:$0xf]
    %v405 = vld [vmem:[#allocation9 + $0x8] sm:$0xf]
    %v406 = vld [vmem:[#allocation9 + $0xc] sm:$0xf]
    %v407 = vld [vmem:[#allocation9 + $0x10] sm:$0xf]
    %v408 = vld [vmem:[#allocation9 + $0x14] sm:$0xf]
    %v409 = vld [vmem:[#allocation9 + $0x18] sm:$0xf]
    %v410 = vld [vmem:[#allocation9 + $0x1c] sm:$0xf]
    %v411 = vld [vmem:[#allocation9 + $0x20] sm:$0xf]
    %v412 = vld [vmem:[#allocation9 + $0x24] sm:$0xf]
    %v413 = vld [vmem:[#allocation9 + $0x28] sm:$0xf]
    %v414 = vld [vmem:[#allocation9 + $0x2c] sm:$0xf]
    %v415 = vld [vmem:[#allocation9 + $0x30] sm:$0xf]
    %v416 = vld [vmem:[#allocation9 + $0x34] sm:$0xf]
    %v417 = vld [vmem:[#allocation9 + $0x38] sm:$0xf]
    %v418 = vld [vmem:[#allocation9 + $0x3c] sm:$0xf]
    %v419 = vld [vmem:[%s6] sm:$0x1]
    %v421 = vlaneseq
    %v422 = vshrl.u32 %v421, 7
    %v423 = vsub.s32 0, %v422
    %v424 = vrot.slane %v419, %v423
    %v442 = vunpack.c.l.b16 %v403
    %v443 = vunpack.c.l.b16 %v404
    %v444 = vunpack.c.l.b16 %v405
    %v445 = vunpack.c.l.b16 %v406
    %v446 = vunpack.c.l.b16 %v407
    %v447 = vunpack.c.l.b16 %v408
    %v448 = vunpack.c.l.b16 %v409
    %v449 = vunpack.c.l.b16 %v410
    %v450 = vunpack.c.l.b16 %v411
    %v451 = vunpack.c.l.b16 %v412
    %v452 = vunpack.c.l.b16 %v413
    %v453 = vunpack.c.l.b16 %v414
    %v454 = vunpack.c.l.b16 %v415
    %v455 = vunpack.c.l.b16 %v416
    %v456 = vunpack.c.l.b16 %v417
    %v457 = vunpack.c.l.b16 %v418
    %v458 = vpack.c.b16 %v443, %v442
    %v459 = vpack.c.b16 %v445, %v444
    %v460 = vpack.c.b16 %v447, %v446
    %v461 = vpack.c.b16 %v449, %v448
    %v462 = vpack.c.b16 %v451, %v450
    %v463 = vpack.c.b16 %v453, %v452
    %v464 = vpack.c.b16 %v455, %v454
    %v465 = vpack.c.b16 %v457, %v456
    %474 = vmatprep.subr.bf16.mxu0 0
    %475 = vmatpush1.bf16.msra.mxu0 %v465
    %476 = vmatprep.subr.bf16.mxu0 0
    %477 = vmatpush1.bf16.msra.mxu0 %v464
    %478 = vmatprep.subr.bf16.mxu0 0
    %479 = vmatpush1.bf16.msra.mxu0 %v463
    %480 = vmatprep.subr.bf16.mxu0 0
    %481 = vmatpush1.bf16.msra.mxu0 %v462
    %482 = vmatprep.subr.bf16.mxu0 0
    %483 = vmatpush1.bf16.msra.mxu0 %v461
    %484 = vmatprep.subr.bf16.mxu0 0
    %485 = vmatpush1.bf16.msra.mxu0 %v460
    %486 = vmatprep.subr.bf16.mxu0 0
    %487 = vmatpush1.bf16.msra.mxu0 %v459
    %488 = vmatprep.subr.bf16.mxu0 0
    %489 = vmatpush1.bf16.msra.mxu0 %v458
    %490 = vmatprep.subr.bf16.mxu0 0
    %491 = vmatpush2.bf16.msra.mxu0 0
    %492 = vmatprep.subr.bf16.mxu0 0
    %493 = vmatpush2.bf16.msra.mxu0 0
    %494 = vmatprep.subr.bf16.mxu0 0
    %495 = vmatpush2.bf16.msra.mxu0 0
    %496 = vmatprep.subr.bf16.mxu0 0
    %497 = vmatpush2.bf16.msra.mxu0 0
    %498 = vmatprep.subr.bf16.mxu0 0
    %499 = vmatpush2.bf16.msra.mxu0 0
    %500 = vmatprep.subr.bf16.mxu0 0
    %501 = vmatpush2.bf16.msra.mxu0 0
    %502 = vmatprep.subr.bf16.mxu0 0
    %503 = vmatpush2.bf16.msra.mxu0 0
    %504 = vmatprep.subr.bf16.mxu0 0
    %505 = vmatpush2.bf16.msra.mxu0 0
    %506 = vmatprep.mubr.bf16.mxu0 0
    %507 = vmatmul.mubr.bf16.gmra.mxu0 %v157
    %v508 = vpop.f32.mrf.mxu0
    %v509 = vadd.f32 %v424, %v508
    %v510 = vpop.f32.mrf.mxu0
    %v511 = vpop.f32.mrf.mxu0
    %v512 = vadd.f32 %v424, %v511
    %v513 = vpop.f32.mrf.mxu0
    %514 = vmatprep.mubr.bf16.mxu0 0
    %515 = vmatmul.mubr.bf16.gmra.mxu0 %v158
    %v516 = vpop.f32.mrf.mxu0
    %v517 = vadd.f32 %v424, %v516
    %v518 = vpop.f32.mrf.mxu0
    %v519 = vpop.f32.mrf.mxu0
    %v520 = vadd.f32 %v424, %v519
    %v521 = vpop.f32.mrf.mxu0
    %522 = vdwg.mxu0
    %v523 = vpack.c.bf16 %v512, %v509
    %v524 = vpack.c.bf16 %v520, %v517
    %vm525 = vcmask 261120
    %v527 = vsel %vm525, %v279, 0
    %v530 = vsel %vm525, %v401, 0
    %532 = vmatprep.subr.bf16.mxu0 0
    %533 = vmatpush1.bf16.xpose.msra.mxu0 0
    %534 = vmatprep.subr.bf16.mxu0 0
    %535 = vmatpush1.bf16.xpose.msra.mxu0 0
    %536 = vmatprep.subr.bf16.mxu0 0
    %537 = vmatpush1.bf16.xpose.msra.mxu0 0
    %538 = vmatprep.subr.bf16.mxu0 0
    %539 = vmatpush1.bf16.xpose.msra.mxu0 0
    %540 = vmatprep.subr.bf16.mxu0 0
    %541 = vmatpush1.bf16.xpose.msra.mxu0 0
    %542 = vmatprep.subr.bf16.mxu0 0
    %543 = vmatpush1.bf16.xpose.msra.mxu0 0
    %544 = vmatprep.subr.bf16.mxu0 0
    %545 = vmatpush1.bf16.xpose.msra.mxu0 0
    %546 = vmatprep.subr.bf16.mxu0 0
    %547 = vmatpush1.bf16.xpose.msra.mxu0 %v530
    %548 = vmatprep.subr.bf16.mxu0 0
    %549 = vmatpush2.bf16.xpose.msra.mxu0 0
    %550 = vmatprep.subr.bf16.mxu0 0
    %551 = vmatpush2.bf16.xpose.msra.mxu0 0
    %552 = vmatprep.subr.bf16.mxu0 0
    %553 = vmatpush2.bf16.xpose.msra.mxu0 0
    %554 = vmatprep.subr.bf16.mxu0 0
    %555 = vmatpush2.bf16.xpose.msra.mxu0 0
    %556 = vmatprep.subr.bf16.mxu0 0
    %557 = vmatpush2.bf16.xpose.msra.mxu0 0
    %558 = vmatprep.subr.bf16.mxu0 0
    %559 = vmatpush2.bf16.xpose.msra.mxu0 0
    %560 = vmatprep.subr.bf16.mxu0 0
    %561 = vmatpush2.bf16.xpose.msra.mxu0 0
    %562 = vmatprep.subr.bf16.mxu0 0
    %563 = vmatpush2.bf16.xpose.msra.mxu0 0
    %564 = vmatprep.mubr.bf16.mxu0 0
    %565 = vmatmul.mubr.bf16.gmra.mxu0 %v527
    %v566 = vpop.f32.mrf.mxu0
    %v567 = vadd.f32 0.0, %v566
    %v568 = vpop.f32.mrf.mxu0
    %v569 = vpop.f32.mrf.mxu0
    %v570 = vadd.f32 0.0, %v569
    %v571 = vpop.f32.mrf.mxu0
    %572 = vdwg.mxu0
    %v574 = vsel %vm525, %v280, 0
    %v577 = vsel %vm525, %v402, 0
    %579 = vmatprep.subr.bf16.mxu0 0
    %580 = vmatpush1.bf16.xpose.msra.mxu0 0
    %581 = vmatprep.subr.bf16.mxu0 0
    %582 = vmatpush1.bf16.xpose.msra.mxu0 0
    %583 = vmatprep.subr.bf16.mxu0 0
    %584 = vmatpush1.bf16.xpose.msra.mxu0 0
    %585 = vmatprep.subr.bf16.mxu0 0
    %586 = vmatpush1.bf16.xpose.msra.mxu0 0
    %587 = vmatprep.subr.bf16.mxu0 0
    %588 = vmatpush1.bf16.xpose.msra.mxu0 0
    %589 = vmatprep.subr.bf16.mxu0 0
    %590 = vmatpush1.bf16.xpose.msra.mxu0 0
    %591 = vmatprep.subr.bf16.mxu0 0
    %592 = vmatpush1.bf16.xpose.msra.mxu0 0
    %593 = vmatprep.subr.bf16.mxu0 0
    %594 = vmatpush1.bf16.xpose.msra.mxu0 %v577
    %595 = vmatprep.subr.bf16.mxu0 0
    %596 = vmatpush2.bf16.xpose.msra.mxu0 0
    %597 = vmatprep.subr.bf16.mxu0 0
    %598 = vmatpush2.bf16.xpose.msra.mxu0 0
    %599 = vmatprep.subr.bf16.mxu0 0
    %600 = vmatpush2.bf16.xpose.msra.mxu0 0
    %601 = vmatprep.subr.bf16.mxu0 0
    %602 = vmatpush2.bf16.xpose.msra.mxu0 0
    %603 = vmatprep.subr.bf16.mxu0 0
    %604 = vmatpush2.bf16.xpose.msra.mxu0 0
    %605 = vmatprep.subr.bf16.mxu0 0
    %606 = vmatpush2.bf16.xpose.msra.mxu0 0
    %607 = vmatprep.subr.bf16.mxu0 0
    %608 = vmatpush2.bf16.xpose.msra.mxu0 0
    %609 = vmatprep.subr.bf16.mxu0 0
    %610 = vmatpush2.bf16.xpose.msra.mxu0 0
    %611 = vmatprep.mubr.bf16.mxu0 0
    %612 = vmatmul.mubr.bf16.gmra.mxu0 %v574
    %v613 = vpop.f32.mrf.mxu0
    %v614 = vadd.f32 0.0, %v613
    %v615 = vpop.f32.mrf.mxu0
    %v616 = vpop.f32.mrf.mxu0
    %v617 = vadd.f32 0.0, %v616
    %v618 = vpop.f32.mrf.mxu0
    %619 = vdwg.mxu0
    %vm620 = vcmask 130048
    %v621 = vsel %vm620, %v567, -inf
    %622 = vmax.xlane.f32.xlu0 %v621
    %v623 = vpop.xlane.xlu0 %622
    %v624 = vsel %vm620, %v570, -inf
    %625 = vmax.xlane.f32.xlu0 %v624
    %v626 = vpop.xlane.xlu0 %625
    %v627 = vsel %vm620, %v614, -inf
    %628 = vmax.xlane.f32.xlu0 %v627
    %v629 = vpop.xlane.xlu0 %628
    %v630 = vsel %vm620, %v617, -inf
    %631 = vmax.xlane.f32.xlu0 %v630
    %v632 = vpop.xlane.xlu0 %631
    %v633 = vsub.f32 %v567, %v623
    %v634 = vsub.f32 %v570, %v626
    %v635 = vsub.f32 %v614, %v629
    %v636 = vsub.f32 %v617, %v632
    %v637 = vmul.f32 %v633, 1.442695
    %v638 = vpow.pop %v637
    %v639 = vmul.f32 %v634, 1.442695
    %v640 = vpow.pop %v639
    %v641 = vmul.f32 %v635, 1.442695
    %v642 = vpow.pop %v641
    %v643 = vmul.f32 %v636, 1.442695
    %v644 = vpow.pop %v643
    %v645 = vsel %vm620, %v638, 0.0
    %646 = vadd.xlane.f32.xlu0 %v645
    %v647 = vpop.xlane.xlu0 %646
    %v648 = vsel %vm620, %v640, 0.0
    %649 = vadd.xlane.f32.xlu0 %v648
    %v650 = vpop.xlane.xlu0 %649
    %v651 = vsel %vm620, %v642, 0.0
    %652 = vadd.xlane.f32.xlu0 %v651
    %v653 = vpop.xlane.xlu0 %652
    %v654 = vsel %vm620, %v644, 0.0
    %655 = vadd.xlane.f32.xlu0 %v654
    %v656 = vpop.xlane.xlu0 %655
    %v657 = vrcp.pop %v647
    %v658 = vrcp.pop %v650
    %v659 = vrcp.pop %v653
    %v660 = vrcp.pop %v656
    %v661 = vmul.f32 %v638, %v657
    %v662 = vmul.f32 %v640, %v658
    %v663 = vmul.f32 %v642, %v659
    %v664 = vmul.f32 %v644, %v660
    %v665 = vpack.c.bf16 %v662, %v661
    %v666 = vpack.c.bf16 %v664, %v663
    %v668 = vsel %vm620, %v665, 0
    %670 = vmatprep.subr.bf16.mxu0 0
    %671 = vmatpush1.bf16.msra.mxu0 0
    %672 = vmatprep.subr.bf16.mxu0 0
    %673 = vmatpush1.bf16.msra.mxu0 0
    %674 = vmatprep.subr.bf16.mxu0 0
    %675 = vmatpush1.bf16.msra.mxu0 0
    %676 = vmatprep.subr.bf16.mxu0 0
    %677 = vmatpush1.bf16.msra.mxu0 0
    %678 = vmatprep.subr.bf16.mxu0 0
    %679 = vmatpush1.bf16.msra.mxu0 0
    %680 = vmatprep.subr.bf16.mxu0 0
    %681 = vmatpush1.bf16.msra.mxu0 0
    %682 = vmatprep.subr.bf16.mxu0 0
    %683 = vmatpush1.bf16.msra.mxu0 0
    %684 = vmatprep.subr.bf16.mxu0 0
    %685 = vmatpush1.bf16.msra.mxu0 %v523
    %686 = vmatprep.subr.bf16.mxu0 0
    %687 = vmatpush2.bf16.msra.mxu0 0
    %688 = vmatprep.subr.bf16.mxu0 0
    %689 = vmatpush2.bf16.msra.mxu0 0
    %690 = vmatprep.subr.bf16.mxu0 0
    %691 = vmatpush2.bf16.msra.mxu0 0
    %692 = vmatprep.subr.bf16.mxu0 0
    %693 = vmatpush2.bf16.msra.mxu0 0
    %694 = vmatprep.subr.bf16.mxu0 0
    %695 = vmatpush2.bf16.msra.mxu0 0
    %696 = vmatprep.subr.bf16.mxu0 0
    %697 = vmatpush2.bf16.msra.mxu0 0
    %698 = vmatprep.subr.bf16.mxu0 0
    %699 = vmatpush2.bf16.msra.mxu0 0
    %700 = vmatprep.subr.bf16.mxu0 0
    %701 = vmatpush2.bf16.msra.mxu0 0
    %702 = vmatprep.mubr.bf16.mxu0 0
    %703 = vmatmul.mubr.bf16.gmra.mxu0 %v668
    %v704 = vpop.f32.mrf.mxu0
    %v705 = vadd.f32 0.0, %v704
    %v706 = vpop.f32.mrf.mxu0
    %v707 = vpop.f32.mrf.mxu0
    %v708 = vadd.f32 0.0, %v707
    %v709 = vpop.f32.mrf.mxu0
    %710 = vdwg.mxu0
    %v712 = vsel %vm620, %v666, 0
    %714 = vmatprep.subr.bf16.mxu0 0
    %715 = vmatpush1.bf16.msra.mxu0 0
    %716 = vmatprep.subr.bf16.mxu0 0
    %717 = vmatpush1.bf16.msra.mxu0 0
    %718 = vmatprep.subr.bf16.mxu0 0
    %719 = vmatpush1.bf16.msra.mxu0 0
    %720 = vmatprep.subr.bf16.mxu0 0
    %721 = vmatpush1.bf16.msra.mxu0 0
    %722 = vmatprep.subr.bf16.mxu0 0
    %723 = vmatpush1.bf16.msra.mxu0 0
    %724 = vmatprep.subr.bf16.mxu0 0
    %725 = vmatpush1.bf16.msra.mxu0 0
    %726 = vmatprep.subr.bf16.mxu0 0
    %727 = vmatpush1.bf16.msra.mxu0 0
    %728 = vmatprep.subr.bf16.mxu0 0
    %729 = vmatpush1.bf16.msra.mxu0 %v524
    %730 = vmatprep.subr.bf16.mxu0 0
    %731 = vmatpush2.bf16.msra.mxu0 0
    %732 = vmatprep.subr.bf16.mxu0 0
    %733 = vmatpush2.bf16.msra.mxu0 0
    %734 = vmatprep.subr.bf16.mxu0 0
    %735 = vmatpush2.bf16.msra.mxu0 0
    %736 = vmatprep.subr.bf16.mxu0 0
    %737 = vmatpush2.bf16.msra.mxu0 0
    %738 = vmatprep.subr.bf16.mxu0 0
    %739 = vmatpush2.bf16.msra.mxu0 0
    %740 = vmatprep.subr.bf16.mxu0 0
    %741 = vmatpush2.bf16.msra.mxu0 0
    %742 = vmatprep.subr.bf16.mxu0 0
    %743 = vmatpush2.bf16.msra.mxu0 0
    %744 = vmatprep.subr.bf16.mxu0 0
    %745 = vmatpush2.bf16.msra.mxu0 0
    %746 = vmatprep.mubr.bf16.mxu0 0
    %747 = vmatmul.mubr.bf16.gmra.mxu0 %v712
    %v748 = vpop.f32.mrf.mxu0
    %v749 = vadd.f32 0.0, %v748
    %v750 = vpop.f32.mrf.mxu0
    %v751 = vpop.f32.mrf.mxu0
    %v752 = vadd.f32 0.0, %v751
    %v753 = vpop.f32.mrf.mxu0
    %754 = vdwg.mxu0
    %v755 = vpack.c.bf16 %v708, %v705
    %v756 = vpack.c.bf16 %v752, %v749
    %v759 = vunpack.c.l.b16 %v755
    %v760 = vunpack.c.h.b16 %v755
    %v761 = vunpack.c.l.b16 %v756
    %v762 = vunpack.c.h.b16 %v756
    %v763 = vpack.c.b16 %v759, %v759
    %v764 = vpack.c.b16 %v760, %v760
    %v765 = vpack.c.b16 %v761, %v761
    %v766 = vpack.c.b16 %v762, %v762
    %vm771 = vcmask 257024
    %772 = vst.msk [vmem:[#allocation2] sm:$0xf] %vm771, %v763
    %773 = vst.msk [vmem:[#allocation2 + $0x4] sm:$0xf] %vm771, %v764
    %774 = vst.msk [vmem:[#allocation2 + $0x8] sm:$0xf] %vm771, %v765
    %775 = vst.msk [vmem:[#allocation2 + $0xc] sm:$0xf] %vm771, %v766
    %777 = vrot.lane.b32.xlu0 %v279, 96
    %v778 = vpop.permute.xlu0 %777
    %780 = vrot.lane.b32.xlu0 %v401, 96
    %v781 = vpop.permute.xlu0 %780
    %v783 = vsel %vm525, %v778, 0
    %v786 = vsel %vm525, %v781, 0
    %788 = vmatprep.subr.bf16.mxu0 0
    %789 = vmatpush1.bf16.xpose.msra.mxu0 0
    %790 = vmatprep.subr.bf16.mxu0 0
    %791 = vmatpush1.bf16.xpose.msra.mxu0 0
    %792 = vmatprep.subr.bf16.mxu0 0
    %793 = vmatpush1.bf16.xpose.msra.mxu0 0
    %794 = vmatprep.subr.bf16.mxu0 0
    %795 = vmatpush1.bf16.xpose.msra.mxu0 0
    %796 = vmatprep.subr.bf16.mxu0 0
    %797 = vmatpush1.bf16.xpose.msra.mxu0 0
    %798 = vmatprep.subr.bf16.mxu0 0
    %799 = vmatpush1.bf16.xpose.msra.mxu0 0
    %800 = vmatprep.subr.bf16.mxu0 0
    %801 = vmatpush1.bf16.xpose.msra.mxu0 0
    %802 = vmatprep.subr.bf16.mxu0 0
    %803 = vmatpush1.bf16.xpose.msra.mxu0 %v786
    %804 = vmatprep.subr.bf16.mxu0 0
    %805 = vmatpush2.bf16.xpose.msra.mxu0 0
    %806 = vmatprep.subr.bf16.mxu0 0
    %807 = vmatpush2.bf16.xpose.msra.mxu0 0
    %808 = vmatprep.subr.bf16.mxu0 0
    %809 = vmatpush2.bf16.xpose.msra.mxu0 0
    %810 = vmatprep.subr.bf16.mxu0 0
    %811 = vmatpush2.bf16.xpose.msra.mxu0 0
    %812 = vmatprep.subr.bf16.mxu0 0
    %813 = vmatpush2.bf16.xpose.msra.mxu0 0
    %814 = vmatprep.subr.bf16.mxu0 0
    %815 = vmatpush2.bf16.xpose.msra.mxu0 0
    %816 = vmatprep.subr.bf16.mxu0 0
    %817 = vmatpush2.bf16.xpose.msra.mxu0 0
    %818 = vmatprep.subr.bf16.mxu0 0
    %819 = vmatpush2.bf16.xpose.msra.mxu0 0
    %820 = vmatprep.mubr.bf16.mxu0 0
    %821 = vmatmul.mubr.bf16.gmra.mxu0 %v783
    %v822 = vpop.f32.mrf.mxu0
    %v823 = vadd.f32 0.0, %v822
    %v824 = vpop.f32.mrf.mxu0
    %v825 = vpop.f32.mrf.mxu0
    %v826 = vadd.f32 0.0, %v825
    %v827 = vpop.f32.mrf.mxu0
    %828 = vdwg.mxu0
    %830 = vrot.lane.b32.xlu0 %v280, 96
    %v831 = vpop.permute.xlu0 %830
    %833 = vrot.lane.b32.xlu0 %v402, 96
    %v834 = vpop.permute.xlu0 %833
    %v836 = vsel %vm525, %v831, 0
    %v839 = vsel %vm525, %v834, 0
    %841 = vmatprep.subr.bf16.mxu0 0
    %842 = vmatpush1.bf16.xpose.msra.mxu0 0
    %843 = vmatprep.subr.bf16.mxu0 0
    %844 = vmatpush1.bf16.xpose.msra.mxu0 0
    %845 = vmatprep.subr.bf16.mxu0 0
    %846 = vmatpush1.bf16.xpose.msra.mxu0 0
    %847 = vmatprep.subr.bf16.mxu0 0
    %848 = vmatpush1.bf16.xpose.msra.mxu0 0
    %849 = vmatprep.subr.bf16.mxu0 0
    %850 = vmatpush1.bf16.xpose.msra.mxu0 0
    %851 = vmatprep.subr.bf16.mxu0 0
    %852 = vmatpush1.bf16.xpose.msra.mxu0 0
    %853 = vmatprep.subr.bf16.mxu0 0
    %854 = vmatpush1.bf16.xpose.msra.mxu0 0
    %855 = vmatprep.subr.bf16.mxu0 0
    %856 = vmatpush1.bf16.xpose.msra.mxu0 %v839
    %857 = vmatprep.subr.bf16.mxu0 0
    %858 = vmatpush2.bf16.xpose.msra.mxu0 0
    %859 = vmatprep.subr.bf16.mxu0 0
    %860 = vmatpush2.bf16.xpose.msra.mxu0 0
    %861 = vmatprep.subr.bf16.mxu0 0
    %862 = vmatpush2.bf16.xpose.msra.mxu0 0
    %863 = vmatprep.subr.bf16.mxu0 0
    %864 = vmatpush2.bf16.xpose.msra.mxu0 0
    %865 = vmatprep.subr.bf16.mxu0 0
    %866 = vmatpush2.bf16.xpose.msra.mxu0 0
    %867 = vmatprep.subr.bf16.mxu0 0
    %868 = vmatpush2.bf16.xpose.msra.mxu0 0
    %869 = vmatprep.subr.bf16.mxu0 0
    %870 = vmatpush2.bf16.xpose.msra.mxu0 0
    %871 = vmatprep.subr.bf16.mxu0 0
    %872 = vmatpush2.bf16.xpose.msra.mxu0 0
    %873 = vmatprep.mubr.bf16.mxu0 0
    %874 = vmatmul.mubr.bf16.gmra.mxu0 %v836
    %v875 = vpop.f32.mrf.mxu0
    %v876 = vadd.f32 0.0, %v875
    %v877 = vpop.f32.mrf.mxu0
    %v878 = vpop.f32.mrf.mxu0
    %v879 = vadd.f32 0.0, %v878
    %v880 = vpop.f32.mrf.mxu0
    %881 = vdwg.mxu0
    %v882 = vsel %vm620, %v823, -inf
    %883 = vmax.xlane.f32.xlu0 %v882
    %v884 = vpop.xlane.xlu0 %883
    %v885 = vsel %vm620, %v826, -inf
    %886 = vmax.xlane.f32.xlu0 %v885
    %v887 = vpop.xlane.xlu0 %886
    %v888 = vsel %vm620, %v876, -inf
    %889 = vmax.xlane.f32.xlu0 %v888
    %v890 = vpop.xlane.xlu0 %889
    %v891 = vsel %vm620, %v879, -inf
    %892 = vmax.xlane.f32.xlu0 %v891
    %v893 = vpop.xlane.xlu0 %892
    %v894 = vsub.f32 %v823, %v884
    %v895 = vsub.f32 %v826, %v887
    %v896 = vsub.f32 %v876, %v890
    %v897 = vsub.f32 %v879, %v893
    %v898 = vmul.f32 %v894, 1.442695
    %v899 = vpow.pop %v898
    %v900 = vmul.f32 %v895, 1.442695
    %v901 = vpow.pop %v900
    %v902 = vmul.f32 %v896, 1.442695
    %v903 = vpow.pop %v902
    %v904 = vmul.f32 %v897, 1.442695
    %v905 = vpow.pop %v904
    %v906 = vsel %vm620, %v899, 0.0
    %907 = vadd.xlane.f32.xlu0 %v906
    %v908 = vpop.xlane.xlu0 %907
    %v909 = vsel %vm620, %v901, 0.0
    %910 = vadd.xlane.f32.xlu0 %v909
    %v911 = vpop.xlane.xlu0 %910
    %v912 = vsel %vm620, %v903, 0.0
    %913 = vadd.xlane.f32.xlu0 %v912
    %v914 = vpop.xlane.xlu0 %913
    %v915 = vsel %vm620, %v905, 0.0
    %916 = vadd.xlane.f32.xlu0 %v915
    %v917 = vpop.xlane.xlu0 %916
    %v918 = vrcp.pop %v908
    %v919 = vrcp.pop %v911
    %v920 = vrcp.pop %v914
    %v921 = vrcp.pop %v917
    %v922 = vmul.f32 %v899, %v918
    %v923 = vmul.f32 %v901, %v919
    %v924 = vmul.f32 %v903, %v920
    %v925 = vmul.f32 %v905, %v921
    %v926 = vpack.c.bf16 %v923, %v922
    %v927 = vpack.c.bf16 %v925, %v924
    %929 = vrot.lane.b32.xlu0 %v523, 96
    %v930 = vpop.permute.xlu0 %929
    %v933 = vsel %vm620, %v926, 0
    %935 = vmatprep.subr.bf16.mxu0 0
    %936 = vmatpush1.bf16.msra.mxu0 0
    %937 = vmatprep.subr.bf16.mxu0 0
    %938 = vmatpush1.bf16.msra.mxu0 0
    %939 = vmatprep.subr.bf16.mxu0 0
    %940 = vmatpush1.bf16.msra.mxu0 0
    %941 = vmatprep.subr.bf16.mxu0 0
    %942 = vmatpush1.bf16.msra.mxu0 0
    %943 = vmatprep.subr.bf16.mxu0 0
    %944 = vmatpush1.bf16.msra.mxu0 0
    %945 = vmatprep.subr.bf16.mxu0 0
    %946 = vmatpush1.bf16.msra.mxu0 0
    %947 = vmatprep.subr.bf16.mxu0 0
    %948 = vmatpush1.bf16.msra.mxu0 0
    %949 = vmatprep.subr.bf16.mxu0 0
    %950 = vmatpush1.bf16.msra.mxu0 %v930
    %951 = vmatprep.subr.bf16.mxu0 0
    %952 = vmatpush2.bf16.msra.mxu0 0
    %953 = vmatprep.subr.bf16.mxu0 0
    %954 = vmatpush2.bf16.msra.mxu0 0
    %955 = vmatprep.subr.bf16.mxu0 0
    %956 = vmatpush2.bf16.msra.mxu0 0
    %957 = vmatprep.subr.bf16.mxu0 0
    %958 = vmatpush2.bf16.msra.mxu0 0
    %959 = vmatprep.subr.bf16.mxu0 0
    %960 = vmatpush2.bf16.msra.mxu0 0
    %961 = vmatprep.subr.bf16.mxu0 0
    %962 = vmatpush2.bf16.msra.mxu0 0
    %963 = vmatprep.subr.bf16.mxu0 0
    %964 = vmatpush2.bf16.msra.mxu0 0
    %965 = vmatprep.subr.bf16.mxu0 0
    %966 = vmatpush2.bf16.msra.mxu0 0
    %967 = vmatprep.mubr.bf16.mxu0 0
    %968 = vmatmul.mubr.bf16.gmra.mxu0 %v933
    %v969 = vpop.f32.mrf.mxu0
    %v970 = vadd.f32 0.0, %v969
    %v971 = vpop.f32.mrf.mxu0
    %v972 = vpop.f32.mrf.mxu0
    %v973 = vadd.f32 0.0, %v972
    %v974 = vpop.f32.mrf.mxu0
    %975 = vdwg.mxu0
    %977 = vrot.lane.b32.xlu0 %v524, 96
    %v978 = vpop.permute.xlu0 %977
    %v981 = vsel %vm620, %v927, 0
    %983 = vmatprep.subr.bf16.mxu0 0
    %984 = vmatpush1.bf16.msra.mxu0 0
    %985 = vmatprep.subr.bf16.mxu0 0
    %986 = vmatpush1.bf16.msra.mxu0 0
    %987 = vmatprep.subr.bf16.mxu0 0
    %988 = vmatpush1.bf16.msra.mxu0 0
    %989 = vmatprep.subr.bf16.mxu0 0
    %990 = vmatpush1.bf16.msra.mxu0 0
    %991 = vmatprep.subr.bf16.mxu0 0
    %992 = vmatpush1.bf16.msra.mxu0 0
    %993 = vmatprep.subr.bf16.mxu0 0
    %994 = vmatpush1.bf16.msra.mxu0 0
    %995 = vmatprep.subr.bf16.mxu0 0
    %996 = vmatpush1.bf16.msra.mxu0 0
    %997 = vmatprep.subr.bf16.mxu0 0
    %998 = vmatpush1.bf16.msra.mxu0 %v978
    %999 = vmatprep.subr.bf16.mxu0 0
    %1000 = vmatpush2.bf16.msra.mxu0 0
    %1001 = vmatprep.subr.bf16.mxu0 0
    %1002 = vmatpush2.bf16.msra.mxu0 0
    %1003 = vmatprep.subr.bf16.mxu0 0
    %1004 = vmatpush2.bf16.msra.mxu0 0
    %1005 = vmatprep.subr.bf16.mxu0 0
    %1006 = vmatpush2.bf16.msra.mxu0 0
    %1007 = vmatprep.subr.bf16.mxu0 0
    %1008 = vmatpush2.bf16.msra.mxu0 0
    %1009 = vmatprep.subr.bf16.mxu0 0
    %1010 = vmatpush2.bf16.msra.mxu0 0
    %1011 = vmatprep.subr.bf16.mxu0 0
    %1012 = vmatpush2.bf16.msra.mxu0 0
    %1013 = vmatprep.subr.bf16.mxu0 0
    %1014 = vmatpush2.bf16.msra.mxu0 0
    %1015 = vmatprep.mubr.bf16.mxu0 0
    %1016 = vmatmul.mubr.bf16.gmra.mxu0 %v981
    %v1017 = vpop.f32.mrf.mxu0
    %v1018 = vadd.f32 0.0, %v1017
    %v1019 = vpop.f32.mrf.mxu0
    %v1020 = vpop.f32.mrf.mxu0
    %v1021 = vadd.f32 0.0, %v1020
    %v1022 = vpop.f32.mrf.mxu0
    %1023 = vdwg.mxu0
    %v1024 = vpack.c.bf16 %v973, %v970
    %v1025 = vpack.c.bf16 %v1021, %v1018
    %v1028 = vunpack.c.l.b16 %v1024
    %v1029 = vunpack.c.h.b16 %v1024
    %v1030 = vunpack.c.l.b16 %v1025
    %v1031 = vunpack.c.h.b16 %v1025
    %v1032 = vpack.c.b16 %v1028, %v1028
    %v1033 = vpack.c.b16 %v1029, %v1029
    %v1034 = vpack.c.b16 %v1030, %v1030
    %v1035 = vpack.c.b16 %v1031, %v1031
    %1036 = vrot.lane.b32.xlu0 %v1032, 32
    %v1037 = vpop.permute.xlu0 %1036
    %1038 = vrot.lane.b32.xlu0 %v1033, 32
    %v1039 = vpop.permute.xlu0 %1038
    %1040 = vrot.lane.b32.xlu0 %v1034, 32
    %v1041 = vpop.permute.xlu0 %1040
    %1042 = vrot.lane.b32.xlu0 %v1035, 32
    %v1043 = vpop.permute.xlu0 %1042
    %vm1048 = vcmask 519424
    %1049 = vst.msk [vmem:[#allocation2] sm:$0xf] %vm1048, %v1037
    %1050 = vst.msk [vmem:[#allocation2 + $0x4] sm:$0xf] %vm1048, %v1039
    %1051 = vst.msk [vmem:[#allocation2 + $0x8] sm:$0xf] %vm1048, %v1041
    %1052 = vst.msk [vmem:[#allocation2 + $0xc] sm:$0xf] %vm1048, %v1043
    %1053 = vrot.lane.b32.xlu0 %v279, 64
    %v1054 = vpop.permute.xlu0 %1053
    %1055 = vrot.lane.b32.xlu0 %v401, 64
    %v1056 = vpop.permute.xlu0 %1055
    %v1058 = vsel %vm525, %v1054, 0
    %v1061 = vsel %vm525, %v1056, 0
    %1063 = vmatprep.subr.bf16.mxu0 0
    %1064 = vmatpush1.bf16.xpose.msra.mxu0 0
    %1065 = vmatprep.subr.bf16.mxu0 0
    %1066 = vmatpush1.bf16.xpose.msra.mxu0 0
    %1067 = vmatprep.subr.bf16.mxu0 0
    %1068 = vmatpush1.bf16.xpose.msra.mxu0 0
    %1069 = vmatprep.subr.bf16.mxu0 0
    %1070 = vmatpush1.bf16.xpose.msra.mxu0 0
    %1071 = vmatprep.subr.bf16.mxu0 0
    %1072 = vmatpush1.bf16.xpose.msra.mxu0 0
    %1073 = vmatprep.subr.bf16.mxu0 0
    %1074 = vmatpush1.bf16.xpose.msra.mxu0 0
    %1075 = vmatprep.subr.bf16.mxu0 0
    %1076 = vmatpush1.bf16.xpose.msra.mxu0 0
    %1077 = vmatprep.subr.bf16.mxu0 0
    %1078 = vmatpush1.bf16.xpose.msra.mxu0 %v1061
    %1079 = vmatprep.subr.bf16.mxu0 0
    %1080 = vmatpush2.bf16.xpose.msra.mxu0 0
    %1081 = vmatprep.subr.bf16.mxu0 0
    %1082 = vmatpush2.bf16.xpose.msra.mxu0 0
    %1083 = vmatprep.subr.bf16.mxu0 0
    %1084 = vmatpush2.bf16.xpose.msra.mxu0 0
    %1085 = vmatprep.subr.bf16.mxu0 0
    %1086 = vmatpush2.bf16.xpose.msra.mxu0 0
    %1087 = vmatprep.subr.bf16.mxu0 0
    %1088 = vmatpush2.bf16.xpose.msra.mxu0 0
    %1089 = vmatprep.subr.bf16.mxu0 0
    %1090 = vmatpush2.bf16.xpose.msra.mxu0 0
    %1091 = vmatprep.subr.bf16.mxu0 0
    %1092 = vmatpush2.bf16.xpose.msra.mxu0 0
    %1093 = vmatprep.subr.bf16.mxu0 0
    %1094 = vmatpush2.bf16.xpose.msra.mxu0 0
    %1095 = vmatprep.mubr.bf16.mxu0 0
    %1096 = vmatmul.mubr.bf16.gmra.mxu0 %v1058
    %v1097 = vpop.f32.mrf.mxu0
    %v1098 = vadd.f32 0.0, %v1097
    %v1099 = vpop.f32.mrf.mxu0
    %v1100 = vpop.f32.mrf.mxu0
    %v1101 = vadd.f32 0.0, %v1100
    %v1102 = vpop.f32.mrf.mxu0
    %1103 = vdwg.mxu0
    %1104 = vrot.lane.b32.xlu0 %v280, 64
    %v1105 = vpop.permute.xlu0 %1104
    %1106 = vrot.lane.b32.xlu0 %v402, 64
    %v1107 = vpop.permute.xlu0 %1106
    %v1109 = vsel %vm525, %v1105, 0
    %v1112 = vsel %vm525, %v1107, 0
    %1114 = vmatprep.subr.bf16.mxu0 0
    %1115 = vmatpush1.bf16.xpose.msra.mxu0 0
    %1116 = vmatprep.subr.bf16.mxu0 0
    %1117 = vmatpush1.bf16.xpose.msra.mxu0 0
    %1118 = vmatprep.subr.bf16.mxu0 0
    %1119 = vmatpush1.bf16.xpose.msra.mxu0 0
    %1120 = vmatprep.subr.bf16.mxu0 0
    %1121 = vmatpush1.bf16.xpose.msra.mxu0 0
    %1122 = vmatprep.subr.bf16.mxu0 0
    %1123 = vmatpush1.bf16.xpose.msra.mxu0 0
    %1124 = vmatprep.subr.bf16.mxu0 0
    %1125 = vmatpush1.bf16.xpose.msra.mxu0 0
    %1126 = vmatprep.subr.bf16.mxu0 0
    %1127 = vmatpush1.bf16.xpose.msra.mxu0 0
    %1128 = vmatprep.subr.bf16.mxu0 0
    %1129 = vmatpush1.bf16.xpose.msra.mxu0 %v1112
    %1130 = vmatprep.subr.bf16.mxu0 0
    %1131 = vmatpush2.bf16.xpose.msra.mxu0 0
    %1132 = vmatprep.subr.bf16.mxu0 0
    %1133 = vmatpush2.bf16.xpose.msra.mxu0 0
    %1134 = vmatprep.subr.bf16.mxu0 0
    %1135 = vmatpush2.bf16.xpose.msra.mxu0 0
    %1136 = vmatprep.subr.bf16.mxu0 0
    %1137 = vmatpush2.bf16.xpose.msra.mxu0 0
    %1138 = vmatprep.subr.bf16.mxu0 0
    %1139 = vmatpush2.bf16.xpose.msra.mxu0 0
    %1140 = vmatprep.subr.bf16.mxu0 0
    %1141 = vmatpush2.bf16.xpose.msra.mxu0 0
    %1142 = vmatprep.subr.bf16.mxu0 0
    %1143 = vmatpush2.bf16.xpose.msra.mxu0 0
    %1144 = vmatprep.subr.bf16.mxu0 0
    %1145 = vmatpush2.bf16.xpose.msra.mxu0 0
    %1146 = vmatprep.mubr.bf16.mxu0 0
    %1147 = vmatmul.mubr.bf16.gmra.mxu0 %v1109
    %v1148 = vpop.f32.mrf.mxu0
    %v1149 = vadd.f32 0.0, %v1148
    %v1150 = vpop.f32.mrf.mxu0
    %v1151 = vpop.f32.mrf.mxu0
    %v1152 = vadd.f32 0.0, %v1151
    %v1153 = vpop.f32.mrf.mxu0
    %1154 = vdwg.mxu0
    %v1155 = vsel %vm620, %v1098, -inf
    %1156 = vmax.xlane.f32.xlu0 %v1155
    %v1157 = vpop.xlane.xlu0 %1156
    %v1158 = vsel %vm620, %v1101, -inf
    %1159 = vmax.xlane.f32.xlu0 %v1158
    %v1160 = vpop.xlane.xlu0 %1159
    %v1161 = vsel %vm620, %v1149, -inf
    %1162 = vmax.xlane.f32.xlu0 %v1161
    %v1163 = vpop.xlane.xlu0 %1162
    %v1164 = vsel %vm620, %v1152, -inf
    %1165 = vmax.xlane.f32.xlu0 %v1164
    %v1166 = vpop.xlane.xlu0 %1165
    %v1167 = vsub.f32 %v1098, %v1157
    %v1168 = vsub.f32 %v1101, %v1160
    %v1169 = vsub.f32 %v1149, %v1163
    %v1170 = vsub.f32 %v1152, %v1166
    %v1171 = vmul.f32 %v1167, 1.442695
    %v1172 = vpow.pop %v1171
    %v1173 = vmul.f32 %v1168, 1.442695
    %v1174 = vpow.pop %v1173
    %v1175 = vmul.f32 %v1169, 1.442695
    %v1176 = vpow.pop %v1175
    %v1177 = vmul.f32 %v1170, 1.442695
    %v1178 = vpow.pop %v1177
    %v1179 = vsel %vm620, %v1172, 0.0
    %1180 = vadd.xlane.f32.xlu0 %v1179
    %v1181 = vpop.xlane.xlu0 %1180
    %v1182 = vsel %vm620, %v1174, 0.0
    %1183 = vadd.xlane.f32.xlu0 %v1182
    %v1184 = vpop.xlane.xlu0 %1183
    %v1185 = vsel %vm620, %v1176, 0.0
    %1186 = vadd.xlane.f32.xlu0 %v1185
    %v1187 = vpop.xlane.xlu0 %1186
    %v1188 = vsel %vm620, %v1178, 0.0
    %1189 = vadd.xlane.f32.xlu0 %v1188
    %v1190 = vpop.xlane.xlu0 %1189
    %v1191 = vrcp.pop %v1181
    %v1192 = vrcp.pop %v1184
    %v1193 = vrcp.pop %v1187
    %v1194 = vrcp.pop %v1190
    %v1195 = vmul.f32 %v1172, %v1191
    %v1196 = vmul.f32 %v1174, %v1192
    %v1197 = vmul.f32 %v1176, %v1193
    %v1198 = vmul.f32 %v1178, %v1194
    %v1199 = vpack.c.bf16 %v1196, %v1195
    %v1200 = vpack.c.bf16 %v1198, %v1197
    %1201 = vrot.lane.b32.xlu0 %v523, 64
    %v1202 = vpop.permute.xlu0 %1201
    %v1205 = vsel %vm620, %v1199, 0
    %1207 = vmatprep.subr.bf16.mxu0 0
    %1208 = vmatpush1.bf16.msra.mxu0 0
    %1209 = vmatprep.subr.bf16.mxu0 0
    %1210 = vmatpush1.bf16.msra.mxu0 0
    %1211 = vmatprep.subr.bf16.mxu0 0
    %1212 = vmatpush1.bf16.msra.mxu0 0
    %1213 = vmatprep.subr.bf16.mxu0 0
    %1214 = vmatpush1.bf16.msra.mxu0 0
    %1215 = vmatprep.subr.bf16.mxu0 0
    %1216 = vmatpush1.bf16.msra.mxu0 0
    %1217 = vmatprep.subr.bf16.mxu0 0
    %1218 = vmatpush1.bf16.msra.mxu0 0
    %1219 = vmatprep.subr.bf16.mxu0 0
    %1220 = vmatpush1.bf16.msra.mxu0 0
    %1221 = vmatprep.subr.bf16.mxu0 0
    %1222 = vmatpush1.bf16.msra.mxu0 %v1202
    %1223 = vmatprep.subr.bf16.mxu0 0
    %1224 = vmatpush2.bf16.msra.mxu0 0
    %1225 = vmatprep.subr.bf16.mxu0 0
    %1226 = vmatpush2.bf16.msra.mxu0 0
    %1227 = vmatprep.subr.bf16.mxu0 0
    %1228 = vmatpush2.bf16.msra.mxu0 0
    %1229 = vmatprep.subr.bf16.mxu0 0
    %1230 = vmatpush2.bf16.msra.mxu0 0
    %1231 = vmatprep.subr.bf16.mxu0 0
    %1232 = vmatpush2.bf16.msra.mxu0 0
    %1233 = vmatprep.subr.bf16.mxu0 0
    %1234 = vmatpush2.bf16.msra.mxu0 0
    %1235 = vmatprep.subr.bf16.mxu0 0
    %1236 = vmatpush2.bf16.msra.mxu0 0
    %1237 = vmatprep.subr.bf16.mxu0 0
    %1238 = vmatpush2.bf16.msra.mxu0 0
    %1239 = vmatprep.mubr.bf16.mxu0 0
    %1240 = vmatmul.mubr.bf16.gmra.mxu0 %v1205
    %v1241 = vpop.f32.mrf.mxu0
    %v1242 = vadd.f32 0.0, %v1241
    %v1243 = vpop.f32.mrf.mxu0
    %v1244 = vpop.f32.mrf.mxu0
    %v1245 = vadd.f32 0.0, %v1244
    %v1246 = vpop.f32.mrf.mxu0
    %1247 = vdwg.mxu0
    %1248 = vrot.lane.b32.xlu0 %v524, 64
    %v1249 = vpop.permute.xlu0 %1248
    %v1252 = vsel %vm620, %v1200, 0
    %1254 = vmatprep.subr.bf16.mxu0 0
    %1255 = vmatpush1.bf16.msra.mxu0 0
    %1256 = vmatprep.subr.bf16.mxu0 0
    %1257 = vmatpush1.bf16.msra.mxu0 0
    %1258 = vmatprep.subr.bf16.mxu0 0
    %1259 = vmatpush1.bf16.msra.mxu0 0
    %1260 = vmatprep.subr.bf16.mxu0 0
    %1261 = vmatpush1.bf16.msra.mxu0 0
    %1262 = vmatprep.subr.bf16.mxu0 0
    %1263 = vmatpush1.bf16.msra.mxu0 0
    %1264 = vmatprep.subr.bf16.mxu0 0
    %1265 = vmatpush1.bf16.msra.mxu0 0
    %1266 = vmatprep.subr.bf16.mxu0 0
    %1267 = vmatpush1.bf16.msra.mxu0 0
    %1268 = vmatprep.subr.bf16.mxu0 0
    %1269 = vmatpush1.bf16.msra.mxu0 %v1249
    %1270 = vmatprep.subr.bf16.mxu0 0
    %1271 = vmatpush2.bf16.msra.mxu0 0
    %1272 = vmatprep.subr.bf16.mxu0 0
    %1273 = vmatpush2.bf16.msra.mxu0 0
    %1274 = vmatprep.subr.bf16.mxu0 0
    %1275 = vmatpush2.bf16.msra.mxu0 0
    %1276 = vmatprep.subr.bf16.mxu0 0
    %1277 = vmatpush2.bf16.msra.mxu0 0
    %1278 = vmatprep.subr.bf16.mxu0 0
    %1279 = vmatpush2.bf16.msra.mxu0 0
    %1280 = vmatprep.subr.bf16.mxu0 0
    %1281 = vmatpush2.bf16.msra.mxu0 0
    %1282 = vmatprep.subr.bf16.mxu0 0
    %1283 = vmatpush2.bf16.msra.mxu0 0
    %1284 = vmatprep.subr.bf16.mxu0 0
    %1285 = vmatpush2.bf16.msra.mxu0 0
    %1286 = vmatprep.mubr.bf16.mxu0 0
    %1287 = vmatmul.mubr.bf16.gmra.mxu0 %v1252
    %v1288 = vpop.f32.mrf.mxu0
    %v1289 = vadd.f32 0.0, %v1288
    %v1290 = vpop.f32.mrf.mxu0
    %v1291 = vpop.f32.mrf.mxu0
    %v1292 = vadd.f32 0.0, %v1291
    %v1293 = vpop.f32.mrf.mxu0
    %1294 = vdwg.mxu0
    %v1295 = vpack.c.bf16 %v1245, %v1242
    %v1296 = vpack.c.bf16 %v1292, %v1289
    %v1299 = vunpack.c.l.b16 %v1295
    %v1300 = vunpack.c.h.b16 %v1295
    %v1301 = vunpack.c.l.b16 %v1296
    %v1302 = vunpack.c.h.b16 %v1296
    %v1303 = vpack.c.b16 %v1299, %v1299
    %v1304 = vpack.c.b16 %v1300, %v1300
    %v1305 = vpack.c.b16 %v1301, %v1301
    %v1306 = vpack.c.b16 %v1302, %v1302
    %1307 = vrot.lane.b32.xlu0 %v1303, 64
    %v1308 = vpop.permute.xlu0 %1307
    %1309 = vrot.lane.b32.xlu0 %v1304, 64
    %v1310 = vpop.permute.xlu0 %1309
    %1311 = vrot.lane.b32.xlu0 %v1305, 64
    %v1312 = vpop.permute.xlu0 %1311
    %1313 = vrot.lane.b32.xlu0 %v1306, 64
    %v1314 = vpop.permute.xlu0 %1313
    %vm1319 = vcmask 781824
    %1320 = vst.msk [vmem:[#allocation2] sm:$0xf] %vm1319, %v1308
    %1321 = vst.msk [vmem:[#allocation2 + $0x4] sm:$0xf] %vm1319, %v1310
    %1322 = vst.msk [vmem:[#allocation2 + $0x8] sm:$0xf] %vm1319, %v1312
    %1323 = vst.msk [vmem:[#allocation2 + $0xc] sm:$0xf] %vm1319, %v1314
    %1324 = vrot.lane.b32.xlu0 %v279, 32
    %v1325 = vpop.permute.xlu0 %1324
    %1326 = vrot.lane.b32.xlu0 %v401, 32
    %v1327 = vpop.permute.xlu0 %1326
    %v1329 = vsel %vm525, %v1325, 0
    %v1332 = vsel %vm525, %v1327, 0
    %1334 = vmatprep.subr.bf16.mxu0 0
    %1335 = vmatpush1.bf16.xpose.msra.mxu0 0
    %1336 = vmatprep.subr.bf16.mxu0 0
    %1337 = vmatpush1.bf16.xpose.msra.mxu0 0
    %1338 = vmatprep.subr.bf16.mxu0 0
    %1339 = vmatpush1.bf16.xpose.msra.mxu0 0
    %1340 = vmatprep.subr.bf16.mxu0 0
    %1341 = vmatpush1.bf16.xpose.msra.mxu0 0
    %1342 = vmatprep.subr.bf16.mxu0 0
    %1343 = vmatpush1.bf16.xpose.msra.mxu0 0
    %1344 = vmatprep.subr.bf16.mxu0 0
    %1345 = vmatpush1.bf16.xpose.msra.mxu0 0
    %1346 = vmatprep.subr.bf16.mxu0 0
    %1347 = vmatpush1.bf16.xpose.msra.mxu0 0
    %1348 = vmatprep.subr.bf16.mxu0 0
    %1349 = vmatpush1.bf16.xpose.msra.mxu0 %v1332
    %1350 = vmatprep.subr.bf16.mxu0 0
    %1351 = vmatpush2.bf16.xpose.msra.mxu0 0
    %1352 = vmatprep.subr.bf16.mxu0 0
    %1353 = vmatpush2.bf16.xpose.msra.mxu0 0
    %1354 = vmatprep.subr.bf16.mxu0 0
    %1355 = vmatpush2.bf16.xpose.msra.mxu0 0
    %1356 = vmatprep.subr.bf16.mxu0 0
    %1357 = vmatpush2.bf16.xpose.msra.mxu0 0
    %1358 = vmatprep.subr.bf16.mxu0 0
    %1359 = vmatpush2.bf16.xpose.msra.mxu0 0
    %1360 = vmatprep.subr.bf16.mxu0 0
    %1361 = vmatpush2.bf16.xpose.msra.mxu0 0
    %1362 = vmatprep.subr.bf16.mxu0 0
    %1363 = vmatpush2.bf16.xpose.msra.mxu0 0
    %1364 = vmatprep.subr.bf16.mxu0 0
    %1365 = vmatpush2.bf16.xpose.msra.mxu0 0
    %1366 = vmatprep.mubr.bf16.mxu0 0
    %1367 = vmatmul.mubr.bf16.gmra.mxu0 %v1329
    %v1368 = vpop.f32.mrf.mxu0
    %v1369 = vadd.f32 0.0, %v1368
    %v1370 = vpop.f32.mrf.mxu0
    %v1371 = vpop.f32.mrf.mxu0
    %v1372 = vadd.f32 0.0, %v1371
    %v1373 = vpop.f32.mrf.mxu0
    %1374 = vdwg.mxu0
    %1375 = vrot.lane.b32.xlu0 %v280, 32
    %v1376 = vpop.permute.xlu0 %1375
    %1377 = vrot.lane.b32.xlu0 %v402, 32
    %v1378 = vpop.permute.xlu0 %1377
    %v1380 = vsel %vm525, %v1376, 0
    %v1383 = vsel %vm525, %v1378, 0
    %1385 = vmatprep.subr.bf16.mxu0 0
    %1386 = vmatpush1.bf16.xpose.msra.mxu0 0
    %1387 = vmatprep.subr.bf16.mxu0 0
    %1388 = vmatpush1.bf16.xpose.msra.mxu0 0
    %1389 = vmatprep.subr.bf16.mxu0 0
    %1390 = vmatpush1.bf16.xpose.msra.mxu0 0
    %1391 = vmatprep.subr.bf16.mxu0 0
    %1392 = vmatpush1.bf16.xpose.msra.mxu0 0
    %1393 = vmatprep.subr.bf16.mxu0 0
    %1394 = vmatpush1.bf16.xpose.msra.mxu0 0
    %1395 = vmatprep.subr.bf16.mxu0 0
    %1396 = vmatpush1.bf16.xpose.msra.mxu0 0
    %1397 = vmatprep.subr.bf16.mxu0 0
    %1398 = vmatpush1.bf16.xpose.msra.mxu0 0
    %1399 = vmatprep.subr.bf16.mxu0 0
    %1400 = vmatpush1.bf16.xpose.msra.mxu0 %v1383
    %1401 = vmatprep.subr.bf16.mxu0 0
    %1402 = vmatpush2.bf16.xpose.msra.mxu0 0
    %1403 = vmatprep.subr.bf16.mxu0 0
    %1404 = vmatpush2.bf16.xpose.msra.mxu0 0
    %1405 = vmatprep.subr.bf16.mxu0 0
    %1406 = vmatpush2.bf16.xpose.msra.mxu0 0
    %1407 = vmatprep.subr.bf16.mxu0 0
    %1408 = vmatpush2.bf16.xpose.msra.mxu0 0
    %1409 = vmatprep.subr.bf16.mxu0 0
    %1410 = vmatpush2.bf16.xpose.msra.mxu0 0
    %1411 = vmatprep.subr.bf16.mxu0 0
    %1412 = vmatpush2.bf16.xpose.msra.mxu0 0
    %1413 = vmatprep.subr.bf16.mxu0 0
    %1414 = vmatpush2.bf16.xpose.msra.mxu0 0
    %1415 = vmatprep.subr.bf16.mxu0 0
    %1416 = vmatpush2.bf16.xpose.msra.mxu0 0
    %1417 = vmatprep.mubr.bf16.mxu0 0
    %1418 = vmatmul.mubr.bf16.gmra.mxu0 %v1380
    %v1419 = vpop.f32.mrf.mxu0
    %v1420 = vadd.f32 0.0, %v1419
    %v1421 = vpop.f32.mrf.mxu0
    %v1422 = vpop.f32.mrf.mxu0
    %v1423 = vadd.f32 0.0, %v1422
    %v1424 = vpop.f32.mrf.mxu0
    %1425 = vdwg.mxu0
    %v1426 = vsel %vm620, %v1369, -inf
    %1427 = vmax.xlane.f32.xlu0 %v1426
    %v1428 = vpop.xlane.xlu0 %1427
    %v1429 = vsel %vm620, %v1372, -inf
    %1430 = vmax.xlane.f32.xlu0 %v1429
    %v1431 = vpop.xlane.xlu0 %1430
    %v1432 = vsel %vm620, %v1420, -inf
    %1433 = vmax.xlane.f32.xlu0 %v1432
    %v1434 = vpop.xlane.xlu0 %1433
    %v1435 = vsel %vm620, %v1423, -inf
    %1436 = vmax.xlane.f32.xlu0 %v1435
    %v1437 = vpop.xlane.xlu0 %1436
    %v1438 = vsub.f32 %v1369, %v1428
    %v1439 = vsub.f32 %v1372, %v1431
    %v1440 = vsub.f32 %v1420, %v1434
    %v1441 = vsub.f32 %v1423, %v1437
    %v1442 = vmul.f32 %v1438, 1.442695
    %v1443 = vpow.pop %v1442
    %v1444 = vmul.f32 %v1439, 1.442695
    %v1445 = vpow.pop %v1444
    %v1446 = vmul.f32 %v1440, 1.442695
    %v1447 = vpow.pop %v1446
    %v1448 = vmul.f32 %v1441, 1.442695
    %v1449 = vpow.pop %v1448
    %v1450 = vsel %vm620, %v1443, 0.0
    %1451 = vadd.xlane.f32.xlu0 %v1450
    %v1452 = vpop.xlane.xlu0 %1451
    %v1453 = vsel %vm620, %v1445, 0.0
    %1454 = vadd.xlane.f32.xlu0 %v1453
    %v1455 = vpop.xlane.xlu0 %1454
    %v1456 = vsel %vm620, %v1447, 0.0
    %1457 = vadd.xlane.f32.xlu0 %v1456
    %v1458 = vpop.xlane.xlu0 %1457
    %v1459 = vsel %vm620, %v1449, 0.0
    %1460 = vadd.xlane.f32.xlu0 %v1459
    %v1461 = vpop.xlane.xlu0 %1460
    %v1462 = vrcp.pop %v1452
    %v1463 = vrcp.pop %v1455
    %v1464 = vrcp.pop %v1458
    %v1465 = vrcp.pop %v1461
    %v1466 = vmul.f32 %v1443, %v1462
    %v1467 = vmul.f32 %v1445, %v1463
    %v1468 = vmul.f32 %v1447, %v1464
    %v1469 = vmul.f32 %v1449, %v1465
    %v1470 = vpack.c.bf16 %v1467, %v1466
    %v1471 = vpack.c.bf16 %v1469, %v1468
    %1472 = vrot.lane.b32.xlu0 %v523, 32
    %v1473 = vpop.permute.xlu0 %1472
    %v1476 = vsel %vm620, %v1470, 0
    %1478 = vmatprep.subr.bf16.mxu0 0
    %1479 = vmatpush1.bf16.msra.mxu0 0
    %1480 = vmatprep.subr.bf16.mxu0 0
    %1481 = vmatpush1.bf16.msra.mxu0 0
    %1482 = vmatprep.subr.bf16.mxu0 0
    %1483 = vmatpush1.bf16.msra.mxu0 0
    %1484 = vmatprep.subr.bf16.mxu0 0
    %1485 = vmatpush1.bf16.msra.mxu0 0
    %1486 = vmatprep.subr.bf16.mxu0 0
    %1487 = vmatpush1.bf16.msra.mxu0 0
    %1488 = vmatprep.subr.bf16.mxu0 0
    %1489 = vmatpush1.bf16.msra.mxu0 0
    %1490 = vmatprep.subr.bf16.mxu0 0
    %1491 = vmatpush1.bf16.msra.mxu0 0
    %1492 = vmatprep.subr.bf16.mxu0 0
    %1493 = vmatpush1.bf16.msra.mxu0 %v1473
    %1494 = vmatprep.subr.bf16.mxu0 0
    %1495 = vmatpush2.bf16.msra.mxu0 0
    %1496 = vmatprep.subr.bf16.mxu0 0
    %1497 = vmatpush2.bf16.msra.mxu0 0
    %1498 = vmatprep.subr.bf16.mxu0 0
    %1499 = vmatpush2.bf16.msra.mxu0 0
    %1500 = vmatprep.subr.bf16.mxu0 0
    %1501 = vmatpush2.bf16.msra.mxu0 0
    %1502 = vmatprep.subr.bf16.mxu0 0
    %1503 = vmatpush2.bf16.msra.mxu0 0
    %1504 = vmatprep.subr.bf16.mxu0 0
    %1505 = vmatpush2.bf16.msra.mxu0 0
    %1506 = vmatprep.subr.bf16.mxu0 0
    %1507 = vmatpush2.bf16.msra.mxu0 0
    %1508 = vmatprep.subr.bf16.mxu0 0
    %1509 = vmatpush2.bf16.msra.mxu0 0
    %1510 = vmatprep.mubr.bf16.mxu0 0
    %1511 = vmatmul.mubr.bf16.gmra.mxu0 %v1476
    %v1512 = vpop.f32.mrf.mxu0
    %v1513 = vadd.f32 0.0, %v1512
    %v1514 = vpop.f32.mrf.mxu0
    %v1515 = vpop.f32.mrf.mxu0
    %v1516 = vadd.f32 0.0, %v1515
    %v1517 = vpop.f32.mrf.mxu0
    %1518 = vdwg.mxu0
    %1519 = vrot.lane.b32.xlu0 %v524, 32
    %v1520 = vpop.permute.xlu0 %1519
    %v1523 = vsel %vm620, %v1471, 0
    %1525 = vmatprep.subr.bf16.mxu0 0
    %1526 = vmatpush1.bf16.msra.mxu0 0
    %1527 = vmatprep.subr.bf16.mxu0 0
    %1528 = vmatpush1.bf16.msra.mxu0 0
    %1529 = vmatprep.subr.bf16.mxu0 0
    %1530 = vmatpush1.bf16.msra.mxu0 0
    %1531 = vmatprep.subr.bf16.mxu0 0
    %1532 = vmatpush1.bf16.msra.mxu0 0
    %1533 = vmatprep.subr.bf16.mxu0 0
    %1534 = vmatpush1.bf16.msra.mxu0 0
    %1535 = vmatprep.subr.bf16.mxu0 0
    %1536 = vmatpush1.bf16.msra.mxu0 0
    %1537 = vmatprep.subr.bf16.mxu0 0
    %1538 = vmatpush1.bf16.msra.mxu0 0
    %1539 = vmatprep.subr.bf16.mxu0 0
    %1540 = vmatpush1.bf16.msra.mxu0 %v1520
    %1541 = vmatprep.subr.bf16.mxu0 0
    %1542 = vmatpush2.bf16.msra.mxu0 0
    %1543 = vmatprep.subr.bf16.mxu0 0
    %1544 = vmatpush2.bf16.msra.mxu0 0
    %1545 = vmatprep.subr.bf16.mxu0 0
    %1546 = vmatpush2.bf16.msra.mxu0 0
    %1547 = vmatprep.subr.bf16.mxu0 0
    %1548 = vmatpush2.bf16.msra.mxu0 0
    %1549 = vmatprep.subr.bf16.mxu0 0
    %1550 = vmatpush2.bf16.msra.mxu0 0
    %1551 = vmatprep.subr.bf16.mxu0 0
    %1552 = vmatpush2.bf16.msra.mxu0 0
    %1553 = vmatprep.subr.bf16.mxu0 0
    %1554 = vmatpush2.bf16.msra.mxu0 0
    %1555 = vmatprep.subr.bf16.mxu0 0
    %1556 = vmatpush2.bf16.msra.mxu0 0
    %1557 = vmatprep.mubr.bf16.mxu0 0
    %1558 = vmatmul.mubr.bf16.gmra.mxu0 %v1523
    %v1559 = vpop.f32.mrf.mxu0
    %v1560 = vadd.f32 0.0, %v1559
    %v1561 = vpop.f32.mrf.mxu0
    %v1562 = vpop.f32.mrf.mxu0
    %v1563 = vadd.f32 0.0, %v1562
    %v1564 = vpop.f32.mrf.mxu0
    %1565 = vdwg.mxu0
    %v1566 = vpack.c.bf16 %v1516, %v1513
    %v1567 = vpack.c.bf16 %v1563, %v1560
    %v1570 = vunpack.c.l.b16 %v1566
    %v1571 = vunpack.c.h.b16 %v1566
    %v1572 = vunpack.c.l.b16 %v1567
    %v1573 = vunpack.c.h.b16 %v1567
    %v1574 = vpack.c.b16 %v1570, %v1570
    %v1575 = vpack.c.b16 %v1571, %v1571
    %v1576 = vpack.c.b16 %v1572, %v1572
    %v1577 = vpack.c.b16 %v1573, %v1573
    %1578 = vrot.lane.b32.xlu0 %v1574, 96
    %v1579 = vpop.permute.xlu0 %1578
    %1580 = vrot.lane.b32.xlu0 %v1575, 96
    %v1581 = vpop.permute.xlu0 %1580
    %1582 = vrot.lane.b32.xlu0 %v1576, 96
    %v1583 = vpop.permute.xlu0 %1582
    %1584 = vrot.lane.b32.xlu0 %v1577, 96
    %v1585 = vpop.permute.xlu0 %1584
    %vm1590 = vcmask 1044224
    %1591 = vst.msk [vmem:[#allocation2] sm:$0xf] %vm1590, %v1579
    %1592 = vst.msk [vmem:[#allocation2 + $0x4] sm:$0xf] %vm1590, %v1581
    %1593 = vst.msk [vmem:[#allocation2 + $0x8] sm:$0xf] %vm1590, %v1583
    %1594 = vst.msk [vmem:[#allocation2 + $0xc] sm:$0xf] %vm1590, %v1585
    %v1595 = vld [vmem:[#allocation2] sm:$0xf]
    %v1596 = vld [vmem:[#allocation2 + $0x4] sm:$0xf]
    %v1597 = vld [vmem:[#allocation2 + $0x8] sm:$0xf]
    %v1598 = vld [vmem:[#allocation2 + $0xc] sm:$0xf]
    %v1599 = vld [vmem:[#allocation11] sm:$0xf]
    %v1600 = vld [vmem:[#allocation11 + $0x4] sm:$0xf]
    %v1601 = vld [vmem:[#allocation11 + $0x8] sm:$0xf]
    %v1602 = vld [vmem:[#allocation11 + $0xc] sm:$0xf]
    %v1603 = vld [vmem:[#allocation11 + $0x10] sm:$0xf]
    %v1604 = vld [vmem:[#allocation11 + $0x14] sm:$0xf]
    %v1605 = vld [vmem:[#allocation11 + $0x18] sm:$0xf]
    %v1606 = vld [vmem:[#allocation11 + $0x1c] sm:$0xf]
    %v1607 = vld [vmem:[#allocation11 + $0x20] sm:$0xf]
    %v1608 = vld [vmem:[#allocation11 + $0x24] sm:$0xf]
    %v1609 = vld [vmem:[#allocation11 + $0x28] sm:$0xf]
    %v1610 = vld [vmem:[#allocation11 + $0x2c] sm:$0xf]
    %v1611 = vld [vmem:[#allocation11 + $0x30] sm:$0xf]
    %v1612 = vld [vmem:[#allocation11 + $0x34] sm:$0xf]
    %v1613 = vld [vmem:[#allocation11 + $0x38] sm:$0xf]
    %v1614 = vld [vmem:[#allocation11 + $0x3c] sm:$0xf]
    %v1615 = vld [vmem:[%s8] sm:$0x1]
    %v1617 = vlaneseq
    %v1618 = vshrl.u32 %v1617, 7
    %v1619 = vsub.s32 0, %v1618
    %v1620 = vrot.slane %v1615, %v1619
    %v1626 = vunpack.c.l.b16 %v1595
    %v1627 = vunpack.c.l.b16 %v1596
    %v1628 = vunpack.c.l.b16 %v1597
    %v1629 = vunpack.c.l.b16 %v1598
    %v1630 = vpack.c.b16 %v1627, %v1626
    %v1631 = vpack.c.b16 %v1629, %v1628
    %v1650 = vunpack.c.l.b16 %v1599
    %v1651 = vunpack.c.l.b16 %v1600
    %v1652 = vunpack.c.l.b16 %v1601
    %v1653 = vunpack.c.l.b16 %v1602
    %v1654 = vunpack.c.l.b16 %v1603
    %v1655 = vunpack.c.l.b16 %v1604
    %v1656 = vunpack.c.l.b16 %v1605
    %v1657 = vunpack.c.l.b16 %v1606
    %v1658 = vunpack.c.l.b16 %v1607
    %v1659 = vunpack.c.l.b16 %v1608
    %v1660 = vunpack.c.l.b16 %v1609
    %v1661 = vunpack.c.l.b16 %v1610
    %v1662 = vunpack.c.l.b16 %v1611
    %v1663 = vunpack.c.l.b16 %v1612
    %v1664 = vunpack.c.l.b16 %v1613
    %v1665 = vunpack.c.l.b16 %v1614
    %v1666 = vpack.c.b16 %v1651, %v1650
    %v1667 = vpack.c.b16 %v1653, %v1652
    %v1668 = vpack.c.b16 %v1655, %v1654
    %v1669 = vpack.c.b16 %v1657, %v1656
    %v1670 = vpack.c.b16 %v1659, %v1658
    %v1671 = vpack.c.b16 %v1661, %v1660
    %v1672 = vpack.c.b16 %v1663, %v1662
    %v1673 = vpack.c.b16 %v1665, %v1664
    %1682 = vmatprep.subr.bf16.mxu0 0
    %1683 = vmatpush1.bf16.msra.mxu0 %v1673
    %1684 = vmatprep.subr.bf16.mxu0 0
    %1685 = vmatpush1.bf16.msra.mxu0 %v1672
    %1686 = vmatprep.subr.bf16.mxu0 0
    %1687 = vmatpush1.bf16.msra.mxu0 %v1671
    %1688 = vmatprep.subr.bf16.mxu0 0
    %1689 = vmatpush1.bf16.msra.mxu0 %v1670
    %1690 = vmatprep.subr.bf16.mxu0 0
    %1691 = vmatpush1.bf16.msra.mxu0 %v1669
    %1692 = vmatprep.subr.bf16.mxu0 0
    %1693 = vmatpush1.bf16.msra.mxu0 %v1668
    %1694 = vmatprep.subr.bf16.mxu0 0
    %1695 = vmatpush1.bf16.msra.mxu0 %v1667
    %1696 = vmatprep.subr.bf16.mxu0 0
    %1697 = vmatpush1.bf16.msra.mxu0 %v1666
    %1698 = vmatprep.subr.bf16.mxu0 0
    %1699 = vmatpush2.bf16.msra.mxu0 0
    %1700 = vmatprep.subr.bf16.mxu0 0
    %1701 = vmatpush2.bf16.msra.mxu0 0
    %1702 = vmatprep.subr.bf16.mxu0 0
    %1703 = vmatpush2.bf16.msra.mxu0 0
    %1704 = vmatprep.subr.bf16.mxu0 0
    %1705 = vmatpush2.bf16.msra.mxu0 0
    %1706 = vmatprep.subr.bf16.mxu0 0
    %1707 = vmatpush2.bf16.msra.mxu0 0
    %1708 = vmatprep.subr.bf16.mxu0 0
    %1709 = vmatpush2.bf16.msra.mxu0 0
    %1710 = vmatprep.subr.bf16.mxu0 0
    %1711 = vmatpush2.bf16.msra.mxu0 0
    %1712 = vmatprep.subr.bf16.mxu0 0
    %1713 = vmatpush2.bf16.msra.mxu0 0
    %1714 = vmatprep.mubr.bf16.mxu0 0
    %1715 = vmatmul.mubr.bf16.gmra.mxu0 %v1630
    %v1716 = vpop.f32.mrf.mxu0
    %v1717 = vadd.f32 %v1620, %v1716
    %v1718 = vpop.f32.mrf.mxu0
    %v1719 = vpop.f32.mrf.mxu0
    %v1720 = vadd.f32 %v1620, %v1719
    %v1721 = vpop.f32.mrf.mxu0
    %1722 = vmatprep.mubr.bf16.mxu0 0
    %1723 = vmatmul.mubr.bf16.gmra.mxu0 %v1631
    %v1724 = vpop.f32.mrf.mxu0
    %v1725 = vadd.f32 %v1620, %v1724
    %v1726 = vpop.f32.mrf.mxu0
    %v1727 = vpop.f32.mrf.mxu0
    %v1728 = vadd.f32 %v1620, %v1727
    %v1729 = vpop.f32.mrf.mxu0
    %1730 = vdwg.mxu0
    %v1731 = vadd.f32 %v153, %v1717
    %v1732 = vadd.f32 %v154, %v1720
    %v1733 = vadd.f32 %v155, %v1725
    %v1734 = vadd.f32 %v156, %v1728
    %v1735 = vld [vmem:[%s13] sm:$0x1]
    %v1736 = vld [vmem:[%s14] sm:$0x1]
    %1737 = vadd.xlane.f32.xlu0 %v1731
    %v1738 = vpop.xlane.xlu0 %1737
    %1739 = vadd.xlane.f32.xlu0 %v1732
    %v1740 = vpop.xlane.xlu0 %1739
    %1741 = vadd.xlane.f32.xlu0 %v1733
    %v1742 = vpop.xlane.xlu0 %1741
    %1743 = vadd.xlane.f32.xlu0 %v1734
    %v1744 = vpop.xlane.xlu0 %1743
    %v1745 = vrcp.pop 128.0
    %v1746 = vmul.f32 %v1738, %v1745
    %v1747 = vmul.f32 %v1740, %v1745
    %v1748 = vmul.f32 %v1742, %v1745
    %v1749 = vmul.f32 %v1744, %v1745
    %v1750 = vsub.f32 %v1731, %v1746
    %v1751 = vsub.f32 %v1732, %v1747
    %v1752 = vsub.f32 %v1733, %v1748
    %v1753 = vsub.f32 %v1734, %v1749
    %v1754 = vmul.f32 %v1750, %v1750
    %v1755 = vmul.f32 %v1751, %v1751
    %v1756 = vmul.f32 %v1752, %v1752
    %v1757 = vmul.f32 %v1753, %v1753
    %1758 = vadd.xlane.f32.xlu0 %v1754
    %v1759 = vpop.xlane.xlu0 %1758
    %1760 = vadd.xlane.f32.xlu0 %v1755
    %v1761 = vpop.xlane.xlu0 %1760
    %1762 = vadd.xlane.f32.xlu0 %v1756
    %v1763 = vpop.xlane.xlu0 %1762
    %1764 = vadd.xlane.f32.xlu0 %v1757
    %v1765 = vpop.xlane.xlu0 %1764
    %v1766 = vmul.f32 %v1759, %v1745
    %v1767 = vmul.f32 %v1761, %v1745
    %v1768 = vmul.f32 %v1763, %v1745
    %v1769 = vmul.f32 %v1765, %v1745
    %v1770 = vadd.f32 %v1766, 1e-05
    %v1771 = vadd.f32 %v1767, 1e-05
    %v1772 = vadd.f32 %v1768, 1e-05
    %v1773 = vadd.f32 %v1769, 1e-05
    %v1774 = vrsqrt.pop %v1770
    %v1775 = vrsqrt.pop %v1771
    %v1776 = vrsqrt.pop %v1772
    %v1777 = vrsqrt.pop %v1773
    %v1778 = vmul.f32 %v1750, %v1774
    %v1779 = vmul.f32 %v1751, %v1775
    %v1780 = vmul.f32 %v1752, %v1776
    %v1781 = vmul.f32 %v1753, %v1777
    %v1783 = vlaneseq
    %v1784 = vshrl.u32 %v1783, 7
    %v1785 = vsub.s32 0, %v1784
    %v1786 = vrot.slane %v1735, %v1785
    %v1788 = vmul.f32 %v1786, %v1778
    %v1789 = vmul.f32 %v1786, %v1779
    %v1790 = vmul.f32 %v1786, %v1780
    %v1791 = vmul.f32 %v1786, %v1781
    %v1793 = vlaneseq
    %v1794 = vshrl.u32 %v1793, 7
    %v1795 = vsub.s32 0, %v1794
    %v1796 = vrot.slane %v1736, %v1795
    %v1798 = vadd.f32 %v1788, %v1796
    %v1799 = vadd.f32 %v1789, %v1796
    %v1800 = vadd.f32 %v1790, %v1796
    %v1801 = vadd.f32 %v1791, %v1796
    %v1802 = vpack.c.bf16 %v1799, %v1798
    %v1803 = vpack.c.bf16 %v1801, %v1800
    %v1804 = vld [vmem:[#allocation12] sm:$0xff]
    %v1805 = vld [vmem:[#allocation12 + $0x8] sm:$0xff]
    %v1806 = vld [vmem:[#allocation12 + $0x10] sm:$0xff]
    %v1807 = vld [vmem:[#allocation12 + $0x18] sm:$0xff]
    %v1808 = vld [vmem:[#allocation12 + $0x20] sm:$0xff]
    %v1809 = vld [vmem:[#allocation12 + $0x28] sm:$0xff]
    %v1810 = vld [vmem:[#allocation12 + $0x30] sm:$0xff]
    %v1811 = vld [vmem:[#allocation12 + $0x38] sm:$0xff]
    %v1812 = vld [vmem:[#allocation12 + $0x40] sm:$0xff]
    %v1813 = vld [vmem:[#allocation12 + $0x48] sm:$0xff]
    %v1814 = vld [vmem:[#allocation12 + $0x50] sm:$0xff]
    %v1815 = vld [vmem:[#allocation12 + $0x58] sm:$0xff]
    %v1816 = vld [vmem:[#allocation12 + $0x60] sm:$0xff]
    %v1817 = vld [vmem:[#allocation12 + $0x68] sm:$0xff]
    %v1818 = vld [vmem:[#allocation12 + $0x70] sm:$0xff]
    %v1819 = vld [vmem:[#allocation12 + $0x78] sm:$0xff]
    %v1820 = vld [vmem:[%s10] sm:$0x3]
    %v1822 = vlaneseq
    %v1823 = vshrl.u32 %v1822, 7
    %v1824 = vsub.s32 0, %v1823
    %v1825 = vrot.slane %v1820, %v1824
    %v1826 = vlaneseq
    %v1827 = vshrl.u32 %v1826, 7
    %v1828 = vsub.s32 1, %v1827
    %v1829 = vrot.slane %v1820, %v1828
    %v1848 = vunpack.c.l.b16 %v1804
    %v1849 = vunpack.c.h.b16 %v1804
    %v1850 = vunpack.c.l.b16 %v1805
    %v1851 = vunpack.c.h.b16 %v1805
    %v1852 = vunpack.c.l.b16 %v1806
    %v1853 = vunpack.c.h.b16 %v1806
    %v1854 = vunpack.c.l.b16 %v1807
    %v1855 = vunpack.c.h.b16 %v1807
    %v1856 = vunpack.c.l.b16 %v1808
    %v1857 = vunpack.c.h.b16 %v1808
    %v1858 = vunpack.c.l.b16 %v1809
    %v1859 = vunpack.c.h.b16 %v1809
    %v1860 = vunpack.c.l.b16 %v1810
    %v1861 = vunpack.c.h.b16 %v1810
    %v1862 = vunpack.c.l.b16 %v1811
    %v1863 = vunpack.c.h.b16 %v1811
    %v1864 = vunpack.c.l.b16 %v1812
    %v1865 = vunpack.c.h.b16 %v1812
    %v1866 = vunpack.c.l.b16 %v1813
    %v1867 = vunpack.c.h.b16 %v1813
    %v1868 = vunpack.c.l.b16 %v1814
    %v1869 = vunpack.c.h.b16 %v1814
    %v1870 = vunpack.c.l.b16 %v1815
    %v1871 = vunpack.c.h.b16 %v1815
    %v1872 = vunpack.c.l.b16 %v1816
    %v1873 = vunpack.c.h.b16 %v1816
    %v1874 = vunpack.c.l.b16 %v1817
    %v1875 = vunpack.c.h.b16 %v1817
    %v1876 = vunpack.c.l.b16 %v1818
    %v1877 = vunpack.c.h.b16 %v1818
    %v1878 = vunpack.c.l.b16 %v1819
    %v1879 = vunpack.c.h.b16 %v1819
    %v1880 = vpack.c.b16 %v1850, %v1848
    %v1881 = vpack.c.b16 %v1851, %v1849
    %v1882 = vpack.c.b16 %v1854, %v1852
    %v1883 = vpack.c.b16 %v1855, %v1853
    %v1884 = vpack.c.b16 %v1858, %v1856
    %v1885 = vpack.c.b16 %v1859, %v1857
    %v1886 = vpack.c.b16 %v1862, %v1860
    %v1887 = vpack.c.b16 %v1863, %v1861
    %v1888 = vpack.c.b16 %v1866, %v1864
    %v1889 = vpack.c.b16 %v1867, %v1865
    %v1890 = vpack.c.b16 %v1870, %v1868
    %v1891 = vpack.c.b16 %v1871, %v1869
    %v1892 = vpack.c.b16 %v1874, %v1872
    %v1893 = vpack.c.b16 %v1875, %v1873
    %v1894 = vpack.c.b16 %v1878, %v1876
    %v1895 = vpack.c.b16 %v1879, %v1877
    %1912 = vmatprep.subr.bf16.mxu0 %v1895
    %1913 = vmatpush1.bf16.msra.mxu0 %v1894
    %1914 = vmatprep.subr.bf16.mxu0 %v1893
    %1915 = vmatpush1.bf16.msra.mxu0 %v1892
    %1916 = vmatprep.subr.bf16.mxu0 %v1891
    %1917 = vmatpush1.bf16.msra.mxu0 %v1890
    %1918 = vmatprep.subr.bf16.mxu0 %v1889
    %1919 = vmatpush1.bf16.msra.mxu0 %v1888
    %1920 = vmatprep.subr.bf16.mxu0 %v1887
    %1921 = vmatpush1.bf16.msra.mxu0 %v1886
    %1922 = vmatprep.subr.bf16.mxu0 %v1885
    %1923 = vmatpush1.bf16.msra.mxu0 %v1884
    %1924 = vmatprep.subr.bf16.mxu0 %v1883
    %1925 = vmatpush1.bf16.msra.mxu0 %v1882
    %1926 = vmatprep.subr.bf16.mxu0 %v1881
    %1927 = vmatpush1.bf16.msra.mxu0 %v1880
    %1928 = vmatprep.subr.bf16.mxu0 0
    %1929 = vmatpush2.bf16.msra.mxu0 0
    %1930 = vmatprep.subr.bf16.mxu0 0
    %1931 = vmatpush2.bf16.msra.mxu0 0
    %1932 = vmatprep.subr.bf16.mxu0 0
    %1933 = vmatpush2.bf16.msra.mxu0 0
    %1934 = vmatprep.subr.bf16.mxu0 0
    %1935 = vmatpush2.bf16.msra.mxu0 0
    %1936 = vmatprep.subr.bf16.mxu0 0
    %1937 = vmatpush2.bf16.msra.mxu0 0
    %1938 = vmatprep.subr.bf16.mxu0 0
    %1939 = vmatpush2.bf16.msra.mxu0 0
    %1940 = vmatprep.subr.bf16.mxu0 0
    %1941 = vmatpush2.bf16.msra.mxu0 0
    %1942 = vmatprep.subr.bf16.mxu0 0
    %1943 = vmatpush2.bf16.msra.mxu0 0
    %1944 = vmatprep.mubr.bf16.mxu0 0
    %1945 = vmatmul.mubr.bf16.gmra.mxu0 %v1802
    %v1946 = vpop.f32.mrf.mxu0
    %v1947 = vadd.f32 %v1825, %v1946
    %v1948 = vpop.f32.mrf.mxu0
    %v1949 = vadd.f32 %v1829, %v1948
    %v1950 = vpop.f32.mrf.mxu0
    %v1951 = vadd.f32 %v1825, %v1950
    %v1952 = vpop.f32.mrf.mxu0
    %v1953 = vadd.f32 %v1829, %v1952
    %1954 = vmatprep.mubr.bf16.mxu0 0
    %1955 = vmatmul.mubr.bf16.gmra.mxu0 %v1803
    %v1956 = vpop.f32.mrf.mxu0
    %v1957 = vadd.f32 %v1825, %v1956
    %v1958 = vpop.f32.mrf.mxu0
    %v1959 = vadd.f32 %v1829, %v1958
    %v1960 = vpop.f32.mrf.mxu0
    %v1961 = vadd.f32 %v1825, %v1960
    %v1962 = vpop.f32.mrf.mxu0
    %v1963 = vadd.f32 %v1829, %v1962
    %1964 = vdwg.mxu0
    %v1965 = vmul.f32 %v1947, 0.5
    %v1966 = vmul.f32 %v1949, 0.5
    %v1967 = vmul.f32 %v1951, 0.5
    %v1968 = vmul.f32 %v1953, 0.5
    %v1969 = vmul.f32 %v1957, 0.5
    %v1970 = vmul.f32 %v1959, 0.5
    %v1971 = vmul.f32 %v1961, 0.5
    %v1972 = vmul.f32 %v1963, 0.5
    %v1973 = vmul.f32 %v1947, %v1947
    %v1974 = vmul.f32 %v1949, %v1949
    %v1975 = vmul.f32 %v1951, %v1951
    %v1976 = vmul.f32 %v1953, %v1953
    %v1977 = vmul.f32 %v1957, %v1957
    %v1978 = vmul.f32 %v1959, %v1959
    %v1979 = vmul.f32 %v1961, %v1961
    %v1980 = vmul.f32 %v1963, %v1963
    %v1981 = vmul.f32 %v1947, %v1973
    %v1982 = vmul.f32 %v1949, %v1974
    %v1983 = vmul.f32 %v1951, %v1975
    %v1984 = vmul.f32 %v1953, %v1976
    %v1985 = vmul.f32 %v1957, %v1977
    %v1986 = vmul.f32 %v1959, %v1978
    %v1987 = vmul.f32 %v1961, %v1979
    %v1988 = vmul.f32 %v1963, %v1980
    %v1989 = vmul.f32 %v1981, 0.044715
    %v1990 = vmul.f32 %v1982, 0.044715
    %v1991 = vmul.f32 %v1983, 0.044715
    %v1992 = vmul.f32 %v1984, 0.044715
    %v1993 = vmul.f32 %v1985, 0.044715
    %v1994 = vmul.f32 %v1986, 0.044715
    %v1995 = vmul.f32 %v1987, 0.044715
    %v1996 = vmul.f32 %v1988, 0.044715
    %v1997 = vadd.f32 %v1947, %v1989
    %v1998 = vadd.f32 %v1949, %v1990
    %v1999 = vadd.f32 %v1951, %v1991
    %v2000 = vadd.f32 %v1953, %v1992
    %v2001 = vadd.f32 %v1957, %v1993
    %v2002 = vadd.f32 %v1959, %v1994
    %v2003 = vadd.f32 %v1961, %v1995
    %v2004 = vadd.f32 %v1963, %v1996
    %v2005 = vmul.f32 %v1997, 0.7978846
    %v2006 = vmul.f32 %v1998, 0.7978846
    %v2007 = vmul.f32 %v1999, 0.7978846
    %v2008 = vmul.f32 %v2000, 0.7978846
    %v2009 = vmul.f32 %v2001, 0.7978846
    %v2010 = vmul.f32 %v2002, 0.7978846
    %v2011 = vmul.f32 %v2003, 0.7978846
    %v2012 = vmul.f32 %v2004, 0.7978846
    %v2013 = vtanh.pop %v2005
    %v2014 = vtanh.pop %v2006
    %v2015 = vtanh.pop %v2007
    %v2016 = vtanh.pop %v2008
    %v2017 = vtanh.pop %v2009
    %v2018 = vtanh.pop %v2010
    %v2019 = vtanh.pop %v2011
    %v2020 = vtanh.pop %v2012
    %v2021 = vadd.f32 %v2013, 1.0
    %v2022 = vadd.f32 %v2014, 1.0
    %v2023 = vadd.f32 %v2015, 1.0
    %v2024 = vadd.f32 %v2016, 1.0
    %v2025 = vadd.f32 %v2017, 1.0
    %v2026 = vadd.f32 %v2018, 1.0
    %v2027 = vadd.f32 %v2019, 1.0
    %v2028 = vadd.f32 %v2020, 1.0
    %v2029 = vmul.f32 %v1965, %v2021
    %v2030 = vmul.f32 %v1966, %v2022
    %v2031 = vmul.f32 %v1967, %v2023
    %v2032 = vmul.f32 %v1968, %v2024
    %v2033 = vmul.f32 %v1969, %v2025
    %v2034 = vmul.f32 %v1970, %v2026
    %v2035 = vmul.f32 %v1971, %v2027
    %v2036 = vmul.f32 %v1972, %v2028
    %v2037 = vpack.c.bf16 %v2031, %v2029
    %v2038 = vpack.c.bf16 %v2032, %v2030
    %v2039 = vpack.c.bf16 %v2035, %v2033
    %v2040 = vpack.c.bf16 %v2036, %v2034
    %v2041 = vld [vmem:[#allocation14] sm:$0xf]
    %v2042 = vld [vmem:[#allocation14 + $0x4] sm:$0xf]
    %v2043 = vld [vmem:[#allocation14 + $0x8] sm:$0xf]
    %v2044 = vld [vmem:[#allocation14 + $0xc] sm:$0xf]
    %v2045 = vld [vmem:[#allocation14 + $0x10] sm:$0xf]
    %v2046 = vld [vmem:[#allocation14 + $0x14] sm:$0xf]
    %v2047 = vld [vmem:[#allocation14 + $0x18] sm:$0xf]
    %v2048 = vld [vmem:[#allocation14 + $0x1c] sm:$0xf]
    %v2049 = vld [vmem:[#allocation14 + $0x20] sm:$0xf]
    %v2050 = vld [vmem:[#allocation14 + $0x24] sm:$0xf]
    %v2051 = vld [vmem:[#allocation14 + $0x28] sm:$0xf]
    %v2052 = vld [vmem:[#allocation14 + $0x2c] sm:$0xf]
    %v2053 = vld [vmem:[#allocation14 + $0x30] sm:$0xf]
    %v2054 = vld [vmem:[#allocation14 + $0x34] sm:$0xf]
    %v2055 = vld [vmem:[#allocation14 + $0x38] sm:$0xf]
    %v2056 = vld [vmem:[#allocation14 + $0x3c] sm:$0xf]
    %v2057 = vld [vmem:[#allocation14 + $0x40] sm:$0xf]
    %v2058 = vld [vmem:[#allocation14 + $0x44] sm:$0xf]
    %v2059 = vld [vmem:[#allocation14 + $0x48] sm:$0xf]
    %v2060 = vld [vmem:[#allocation14 + $0x4c] sm:$0xf]
    %v2061 = vld [vmem:[#allocation14 + $0x50] sm:$0xf]
    %v2062 = vld [vmem:[#allocation14 + $0x54] sm:$0xf]
    %v2063 = vld [vmem:[#allocation14 + $0x58] sm:$0xf]
    %v2064 = vld [vmem:[#allocation14 + $0x5c] sm:$0xf]
    %v2065 = vld [vmem:[#allocation14 + $0x60] sm:$0xf]
    %v2066 = vld [vmem:[#allocation14 + $0x64] sm:$0xf]
    %v2067 = vld [vmem:[#allocation14 + $0x68] sm:$0xf]
    %v2068 = vld [vmem:[#allocation14 + $0x6c] sm:$0xf]
    %v2069 = vld [vmem:[#allocation14 + $0x70] sm:$0xf]
    %v2070 = vld [vmem:[#allocation14 + $0x74] sm:$0xf]
    %v2071 = vld [vmem:[#allocation14 + $0x78] sm:$0xf]
    %v2072 = vld [vmem:[#allocation14 + $0x7c] sm:$0xf]
    %v2073 = vld [vmem:[%s12] sm:$0x1]
    %v2075 = vlaneseq
    %v2076 = vshrl.u32 %v2075, 7
    %v2077 = vsub.s32 0, %v2076
    %v2078 = vrot.slane %v2073, %v2077
    %v2112 = vunpack.c.l.b16 %v2041
    %v2113 = vunpack.c.l.b16 %v2042
    %v2114 = vunpack.c.l.b16 %v2043
    %v2115 = vunpack.c.l.b16 %v2044
    %v2116 = vunpack.c.l.b16 %v2045
    %v2117 = vunpack.c.l.b16 %v2046
    %v2118 = vunpack.c.l.b16 %v2047
    %v2119 = vunpack.c.l.b16 %v2048
    %v2120 = vunpack.c.l.b16 %v2049
    %v2121 = vunpack.c.l.b16 %v2050
    %v2122 = vunpack.c.l.b16 %v2051
    %v2123 = vunpack.c.l.b16 %v2052
    %v2124 = vunpack.c.l.b16 %v2053
    %v2125 = vunpack.c.l.b16 %v2054
    %v2126 = vunpack.c.l.b16 %v2055
    %v2127 = vunpack.c.l.b16 %v2056
    %v2128 = vunpack.c.l.b16 %v2057
    %v2129 = vunpack.c.l.b16 %v2058
    %v2130 = vunpack.c.l.b16 %v2059
    %v2131 = vunpack.c.l.b16 %v2060
    %v2132 = vunpack.c.l.b16 %v2061
    %v2133 = vunpack.c.l.b16 %v2062
    %v2134 = vunpack.c.l.b16 %v2063
    %v2135 = vunpack.c.l.b16 %v2064
    %v2136 = vunpack.c.l.b16 %v2065
    %v2137 = vunpack.c.l.b16 %v2066
    %v2138 = vunpack.c.l.b16 %v2067
    %v2139 = vunpack.c.l.b16 %v2068
    %v2140 = vunpack.c.l.b16 %v2069
    %v2141 = vunpack.c.l.b16 %v2070
    %v2142 = vunpack.c.l.b16 %v2071
    %v2143 = vunpack.c.l.b16 %v2072
    %v2144 = vpack.c.b16 %v2113, %v2112
    %v2145 = vpack.c.b16 %v2115, %v2114
    %v2146 = vpack.c.b16 %v2117, %v2116
    %v2147 = vpack.c.b16 %v2119, %v2118
    %v2148 = vpack.c.b16 %v2121, %v2120
    %v2149 = vpack.c.b16 %v2123, %v2122
    %v2150 = vpack.c.b16 %v2125, %v2124
    %v2151 = vpack.c.b16 %v2127, %v2126
    %v2152 = vpack.c.b16 %v2129, %v2128
    %v2153 = vpack.c.b16 %v2131, %v2130
    %v2154 = vpack.c.b16 %v2133, %v2132
    %v2155 = vpack.c.b16 %v2135, %v2134
    %v2156 = vpack.c.b16 %v2137, %v2136
    %v2157 = vpack.c.b16 %v2139, %v2138
    %v2158 = vpack.c.b16 %v2141, %v2140
    %v2159 = vpack.c.b16 %v2143, %v2142
    %2176 = vmatprep.subr.bf16.mxu0 0
    %2177 = vmatpush1.bf16.msra.mxu0 %v2151
    %2178 = vmatprep.subr.bf16.mxu0 0
    %2179 = vmatpush1.bf16.msra.mxu0 %v2150
    %2180 = vmatprep.subr.bf16.mxu0 0
    %2181 = vmatpush1.bf16.msra.mxu0 %v2149
    %2182 = vmatprep.subr.bf16.mxu0 0
    %2183 = vmatpush1.bf16.msra.mxu0 %v2148
    %2184 = vmatprep.subr.bf16.mxu0 0
    %2185 = vmatpush1.bf16.msra.mxu0 %v2147
    %2186 = vmatprep.subr.bf16.mxu0 0
    %2187 = vmatpush1.bf16.msra.mxu0 %v2146
    %2188 = vmatprep.subr.bf16.mxu0 0
    %2189 = vmatpush1.bf16.msra.mxu0 %v2145
    %2190 = vmatprep.subr.bf16.mxu0 0
    %2191 = vmatpush1.bf16.msra.mxu0 %v2144
    %2192 = vmatprep.subr.bf16.mxu0 0
    %2193 = vmatpush2.bf16.msra.mxu0 %v2159
    %2194 = vmatprep.subr.bf16.mxu0 0
    %2195 = vmatpush2.bf16.msra.mxu0 %v2158
    %2196 = vmatprep.subr.bf16.mxu0 0
    %2197 = vmatpush2.bf16.msra.mxu0 %v2157
    %2198 = vmatprep.subr.bf16.mxu0 0
    %2199 = vmatpush2.bf16.msra.mxu0 %v2156
    %2200 = vmatprep.subr.bf16.mxu0 0
    %2201 = vmatpush2.bf16.msra.mxu0 %v2155
    %2202 = vmatprep.subr.bf16.mxu0 0
    %2203 = vmatpush2.bf16.msra.mxu0 %v2154
    %2204 = vmatprep.subr.bf16.mxu0 0
    %2205 = vmatpush2.bf16.msra.mxu0 %v2153
    %2206 = vmatprep.subr.bf16.mxu0 0
    %2207 = vmatpush2.bf16.msra.mxu0 %v2152
    %2208 = vmatprep.mubr.bf16.mxu0 %v2038
    %2209 = vmatmul.mubr.bf16.gmra.mxu0 %v2037
    %v2210 = vpop.f32.mrf.mxu0
    %v2211 = vadd.f32 %v2078, %v2210
    %v2212 = vpop.f32.mrf.mxu0
    %v2213 = vpop.f32.mrf.mxu0
    %v2214 = vadd.f32 %v2078, %v2213
    %v2215 = vpop.f32.mrf.mxu0
    %2216 = vmatprep.mubr.bf16.mxu0 %v2040
    %2217 = vmatmul.mubr.bf16.gmra.mxu0 %v2039
    %v2218 = vpop.f32.mrf.mxu0
    %v2219 = vadd.f32 %v2078, %v2218
    %v2220 = vpop.f32.mrf.mxu0
    %v2221 = vpop.f32.mrf.mxu0
    %v2222 = vadd.f32 %v2078, %v2221
    %v2223 = vpop.f32.mrf.mxu0
    %2224 = vdwg.mxu0
    %v2225 = vadd.f32 %v1798, %v2211
    %v2226 = vadd.f32 %v1799, %v2214
    %v2227 = vadd.f32 %v1800, %v2219
    %v2228 = vadd.f32 %v1801, %v2222
    %v2229 = vld [vmem:[%s15] sm:$0x1]
    %v2230 = vld [vmem:[%s16] sm:$0x1]
    %2231 = vadd.xlane.f32.xlu0 %v2225
    %v2232 = vpop.xlane.xlu0 %2231
    %2233 = vadd.xlane.f32.xlu0 %v2226
    %v2234 = vpop.xlane.xlu0 %2233
    %2235 = vadd.xlane.f32.xlu0 %v2227
    %v2236 = vpop.xlane.xlu0 %2235
    %2237 = vadd.xlane.f32.xlu0 %v2228
    %v2238 = vpop.xlane.xlu0 %2237
    %v2239 = vmul.f32 %v2232, %v1745
    %v2240 = vmul.f32 %v2234, %v1745
    %v2241 = vmul.f32 %v2236, %v1745
    %v2242 = vmul.f32 %v2238, %v1745
    %v2243 = vsub.f32 %v2225, %v2239
    %v2244 = vsub.f32 %v2226, %v2240
    %v2245 = vsub.f32 %v2227, %v2241
    %v2246 = vsub.f32 %v2228, %v2242
    %v2247 = vmul.f32 %v2243, %v2243
    %v2248 = vmul.f32 %v2244, %v2244
    %v2249 = vmul.f32 %v2245, %v2245
    %v2250 = vmul.f32 %v2246, %v2246
    %2251 = vadd.xlane.f32.xlu0 %v2247
    %v2252 = vpop.xlane.xlu0 %2251
    %2253 = vadd.xlane.f32.xlu0 %v2248
    %v2254 = vpop.xlane.xlu0 %2253
    %2255 = vadd.xlane.f32.xlu0 %v2249
    %v2256 = vpop.xlane.xlu0 %2255
    %2257 = vadd.xlane.f32.xlu0 %v2250
    %v2258 = vpop.xlane.xlu0 %2257
    %v2259 = vmul.f32 %v2252, %v1745
    %v2260 = vmul.f32 %v2254, %v1745
    %v2261 = vmul.f32 %v2256, %v1745
    %v2262 = vmul.f32 %v2258, %v1745
    %v2263 = vadd.f32 %v2259, 1e-05
    %v2264 = vadd.f32 %v2260, 1e-05
    %v2265 = vadd.f32 %v2261, 1e-05
    %v2266 = vadd.f32 %v2262, 1e-05
    %v2267 = vrsqrt.pop %v2263
    %v2268 = vrsqrt.pop %v2264
    %v2269 = vrsqrt.pop %v2265
    %v2270 = vrsqrt.pop %v2266
    %v2271 = vmul.f32 %v2243, %v2267
    %v2272 = vmul.f32 %v2244, %v2268
    %v2273 = vmul.f32 %v2245, %v2269
    %v2274 = vmul.f32 %v2246, %v2270
    %v2276 = vlaneseq
    %v2277 = vshrl.u32 %v2276, 7
    %v2278 = vsub.s32 0, %v2277
    %v2279 = vrot.slane %v2229, %v2278
    %v2281 = vmul.f32 %v2279, %v2271
    %v2282 = vmul.f32 %v2279, %v2272
    %v2283 = vmul.f32 %v2279, %v2273
    %v2284 = vmul.f32 %v2279, %v2274
    %v2286 = vlaneseq
    %v2287 = vshrl.u32 %v2286, 7
    %v2288 = vsub.s32 0, %v2287
    %v2289 = vrot.slane %v2230, %v2288
    %v2291 = vadd.f32 %v2281, %v2289
    %v2292 = vadd.f32 %v2282, %v2289
    %v2293 = vadd.f32 %v2283, %v2289
    %v2294 = vadd.f32 %v2284, %v2289
    %2295 = vst [vmem:[#allocation15] sm:$0xff] %v2291
    %2296 = vst [vmem:[#allocation15 + $0x8] sm:$0xff] %v2292
    %2297 = vst [vmem:[#allocation15 + $0x10] sm:$0xff] %v2293
    %2298 = vst [vmem:[#allocation15 + $0x18] sm:$0xff] %v2294
    // Predicated region
    $region98: #{tpu_custom_call.1} parent=1 // pred_check
      _
    $region99: #{tpu_custom_call.1} parent=1 // pred_check_branch
      %2300 = sbr.rel (0) target = $region101
    $region100: #{tpu_custom_call.1} parent=1 // pred_region
      %s2302 = ssub.s32 512, 512
      %2303 = vsyncadd [#allocation5], %s2302
      %s2304 = sshll.u32 [#allocation15], 4
      %s2305 = int_to_ptr.vmem [resolvable:$true] %s2304
      %2310 = dma.vmem_to_hbm [thread:$0]  %s2305, 512, %s17, [#allocation5], 128, 128, 8
    $region101: #{tpu_custom_call.1} parent=1 // pred_fallthru
      _
    // Predicated region
    $region102: #{tpu_custom_call.1} parent=1 // pred_check
      _
    $region103: #{tpu_custom_call.1} parent=1 // pred_check_branch
      %2312 = sbr.rel (0) target = $region105
    $region104: #{tpu_custom_call.1} parent=1 // pred_region
      %2313 = dma.done [#allocation5], 512
    $region105: #{tpu_custom_call.1} parent=1 // pred_fallthru
      _
    %2314 = vsyncpa [#allocation4], 1
    %2315 = vsyncpa [#allocation7], 1
    %2316 = vsyncpa [#allocation10], 1
    %2317 = vsyncpa [#allocation13], 1
    %2318 = vsyncpa [#allocation5], 1

// kernel: tpu_custom_call.1
$region0: #{tpu_custom_call.1}
  #allocation0 [shape = 'u32[]', space=smem, size = 0x4, offset = 0x4, fixed_abs, tag = 'smem constant byte address 0x4 - core index']
  #allocation1 [shape = 'u32[144,128]{1,0:T(1,128)}', space=vmem, size = 0x12000, scoped, tag = 'internal scratch']
  #allocation2 [shape = 'bf16[32,128]{1,0:T(8,128)(2,1)}', space=vmem, size = 0x2000, scoped, tag = 'scratch operand']
  %s0 = inlined_call_operand.hbm [shape: f32[32,128], index: 0, kind: input, shape index: {}]
  %s1 = inlined_call_operand.hbm [shape: bf16[128,128], index: 1, kind: input, shape index: {}]
  %s2 = inlined_call_operand.vmem [shape: f32[1,128], index: 2, kind: input, shape index: {}]
  %s3 = inlined_call_operand.hbm [shape: bf16[128,128], index: 3, kind: input, shape index: {}]
  %s4 = inlined_call_operand.vmem [shape: f32[1,128], index: 4, kind: input, shape index: {}]
  %s5 = inlined_call_operand.hbm [shape: bf16[128,128], index: 5, kind: input, shape index: {}]
  %s6 = inlined_call_operand.vmem [shape: f32[1,128], index: 6, kind: input, shape index: {}]
  %s7 = inlined_call_operand.hbm [shape: bf16[128,128], index: 7, kind: input, shape index: {}]
  %s8 = inlined_call_operand.vmem [shape: f32[1,128], index: 8, kind: input, shape index: {}]
  %s9 = inlined_call_operand.hbm [shape: bf16[128,256], index: 9, kind: input, shape index: {}]
  %s10 = inlined_call_operand.vmem [shape: f32[1,256], index: 10, kind: input, shape index: {}]
  %s11 = inlined_call_operand.hbm [shape: bf16[256,128], index: 11, kind: input, shape index: {}]
  %s12 = inlined_call_operand.vmem [shape: f32[1,128], index: 12, kind: input, shape index: {}]
  %s13 = inlined_call_operand.vmem [shape: f32[1,128], index: 13, kind: input, shape index: {}]
  %s14 = inlined_call_operand.vmem [shape: f32[1,128], index: 14, kind: input, shape index: {}]
  %s15 = inlined_call_operand.vmem [shape: f32[1,128], index: 15, kind: input, shape index: {}]
  %s16 = inlined_call_operand.vmem [shape: f32[1,128], index: 16, kind: input, shape index: {}]
  %s17 = inlined_call_operand.hbm [shape: f32[32,128], index: 17, kind: output, shape index: {}]
  %s18 = sld [smem:[#allocation0]]
  $region106: #{tpu_custom_call.1} parent=0
    _
  %s20 = ssub.s32 1, %s18
  %s21 = scalar_select 0, %s20, %s18
  $region1: #{tpu_custom_call.1} parent=0
    #allocation3 [shape = 'u8[16384]{0}', space=vmem, size = 0x4000, scoped, tag = 'input window, operand 0, single buffered']
    #allocation4 [shape = 's32[1]{0}', space=sflag, size = 0x4, scoped, tag = 'scoped memory for tpu_custom_call.1']
    #allocation5 [shape = 's32[1]{0}', space=sflag, size = 0x4, scoped, tag = 'scoped memory for tpu_custom_call.1']
    #allocation6 [shape = 'u8[32768]{0}', space=vmem, size = 0x8000, scoped, tag = 'input window, operand 1, single buffered']
    #allocation7 [shape = 's32[1]{0}', space=sflag, size = 0x4, scoped, tag = 'scoped memory for tpu_custom_call.1']
    #allocation8 [shape = 'u8[32768]{0}', space=vmem, size = 0x8000, scoped, tag = 'input window, operand 3, single buffered']
    #allocation9 [shape = 'u8[32768]{0}', space=vmem, size = 0x8000, scoped, tag = 'input window, operand 5, single buffered']
    #allocation10 [shape = 's32[1]{0}', space=sflag, size = 0x4, scoped, tag = 'scoped memory for tpu_custom_call.1']
    #allocation11 [shape = 'u8[32768]{0}', space=vmem, size = 0x8000, scoped, tag = 'input window, operand 7, single buffered']
    #allocation12 [shape = 'u8[65536]{0}', space=vmem, size = 0x10000, scoped, tag = 'input window, operand 9, single buffered']
    #allocation13 [shape = 's32[1]{0}', space=sflag, size = 0x4, scoped, tag = 'scoped memory for tpu_custom_call.1']
    #allocation14 [shape = 'u8[65536]{0}', space=vmem, size = 0x10000, scoped, tag = 'input window, operand 11, single buffered']
    #allocation15 [shape = 'u8[16384]{0}', space=vmem, size = 0x4000, scoped, tag = 'output window, operand 0, single buffered']
    %22 = vsyncpa [#allocation4], 0
    %23 = vsyncpa [#allocation7], 0
    %24 = vsyncpa [#allocation10], 0
    %25 = vsyncpa [#allocation13], 0
    %26 = vsyncpa [#allocation5], 0
    // Predicated region
    $region2: #{tpu_custom_call.1} parent=1 // pred_check
      _
    $region3: #{tpu_custom_call.1} parent=1 // pred_check_branch
      %28 = sbr.rel (0) target = $region5
    $region4: #{tpu_custom_call.1} parent=1 // pred_region
      %s30 = ssub.s32 512, 512
      %31 = vsyncadd [#allocation4], %s30
      %s32 = sshll.u32 [#allocation3], 4
      %s33 = int_to_ptr.vmem [resolvable:$true] %s32
      %38 = dma.hbm_to_vmem [thread:$0]  %s0, 512, %s33, [#allocation4], 128, 128, 8
    $region5: #{tpu_custom_call.1} parent=1 // pred_fallthru
      _
    // Predicated region
    $region6: #{tpu_custom_call.1} parent=1 // pred_check
      _
    $region7: #{tpu_custom_call.1} parent=1 // pred_check_branch
      %40 = sbr.rel (0) target = $region9
    $region8: #{tpu_custom_call.1} parent=1 // pred_region
      %s42 = ssub.s32 1024, 1024
      %43 = vsyncadd [#allocation7], %s42
      %s44 = sshll.u32 [#allocation6], 4
      %s45 = int_to_ptr.vmem [resolvable:$true] %s44
      %50 = dma.hbm_to_vmem [thread:$0]  %s1, 1024, %s45, [#allocation7], 64, 64, 4
    $region9: #{tpu_custom_call.1} parent=1 // pred_fallthru
      _
    // Predicated region
    $region10: #{tpu_custom_call.1} parent=1 // pred_check
      _
    $region11: #{tpu_custom_call.1} parent=1 // pred_check_branch
      %52 = sbr.rel (0) target = $region13
    $region12: #{tpu_custom_call.1} parent=1 // pred_region
      _
    $region13: #{tpu_custom_call.1} parent=1 // pred_fallthru
      _
    // Predicated region
    $region14: #{tpu_custom_call.1} parent=1 // pred_check
      _
    $region15: #{tpu_custom_call.1} parent=1 // pred_check_branch
      %54 = sbr.rel (0) target = $region17
    $region16: #{tpu_custom_call.1} parent=1 // pred_region
      %s56 = ssub.s32 1024, 1024
      %57 = vsyncadd [#allocation7], %s56
      %s58 = sshll.u32 [#allocation8], 4
      %s59 = int_to_ptr.vmem [resolvable:$true] %s58
      %64 = dma.hbm_to_vmem [thread:$0]  %s3, 1024, %s59, [#allocation7], 64, 64, 4
    $region17: #{tpu_custom_call.1} parent=1 // pred_fallthru
      _
    // Predicated region
    $region18: #{tpu_custom_call.1} parent=1 // pred_check
      _
    $region19: #{tpu_custom_call.1} parent=1 // pred_check_branch
      %66 = sbr.rel (0) target = $region21
    $region20: #{tpu_custom_call.1} parent=1 // pred_region
      _
    $region21: #{tpu_custom_call.1} parent=1 // pred_fallthru
      _
    // Predicated region
    $region22: #{tpu_custom_call.1} parent=1 // pred_check
      _
    $region23: #{tpu_custom_call.1} parent=1 // pred_check_branch
      %68 = sbr.rel (0) target = $region25
    $region24: #{tpu_custom_call.1} parent=1 // pred_region
      %s70 = ssub.s32 1024, 1024
      %71 = vsyncadd [#allocation10], %s70
      %s72 = sshll.u32 [#allocation9], 4
      %s73 = int_to_ptr.vmem [resolvable:$true] %s72
      %78 = dma.hbm_to_vmem [thread:$0]  %s5, 1024, %s73, [#allocation10], 64, 64, 4
    $region25: #{tpu_custom_call.1} parent=1 // pred_fallthru
      _
    // Predicated region
    $region26: #{tpu_custom_call.1} parent=1 // pred_check
      _
    $region27: #{tpu_custom_call.1} parent=1 // pred_check_branch
      %80 = sbr.rel (0) target = $region29
    $region28: #{tpu_custom_call.1} parent=1 // pred_region
      _
    $region29: #{tpu_custom_call.1} parent=1 // pred_fallthru
      _
    // Predicated region
    $region30: #{tpu_custom_call.1} parent=1 // pred_check
      _
    $region31: #{tpu_custom_call.1} parent=1 // pred_check_branch
      %82 = sbr.rel (0) target = $region33
    $region32: #{tpu_custom_call.1} parent=1 // pred_region
      %s84 = ssub.s32 1024, 1024
      %85 = vsyncadd [#allocation10], %s84
      %s86 = sshll.u32 [#allocation11], 4
      %s87 = int_to_ptr.vmem [resolvable:$true] %s86
      %92 = dma.hbm_to_vmem [thread:$0]  %s7, 1024, %s87, [#allocation10], 64, 64, 4
    $region33: #{tpu_custom_call.1} parent=1 // pred_fallthru
      _
    // Predicated region
    $region34: #{tpu_custom_call.1} parent=1 // pred_check
      _
    $region35: #{tpu_custom_call.1} parent=1 // pred_check_branch
      %94 = sbr.rel (0) target = $region37
    $region36: #{tpu_custom_call.1} parent=1 // pred_region
      _
    $region37: #{tpu_custom_call.1} parent=1 // pred_fallthru
      _
    // Predicated region
    $region38: #{tpu_custom_call.1} parent=1 // pred_check
      _
    $region39: #{tpu_custom_call.1} parent=1 // pred_check_branch
      %96 = sbr.rel (0) target = $region41
    $region40: #{tpu_custom_call.1} parent=1 // pred_region
      %s98 = ssub.s32 2048, 2048
      %99 = vsyncadd [#allocation13], %s98
      %s100 = sshll.u32 [#allocation12], 4
      %s101 = int_to_ptr.vmem [resolvable:$true] %s100
      %106 = dma.hbm_to_vmem [thread:$0]  %s9, 2048, %s101, [#allocation13], 128, 128, 8
    $region41: #{tpu_custom_call.1} parent=1 // pred_fallthru
      _
    // Predicated region
    $region42: #{tpu_custom_call.1} parent=1 // pred_check
      _
    $region43: #{tpu_custom_call.1} parent=1 // pred_check_branch
      %108 = sbr.rel (0) target = $region45
    $region44: #{tpu_custom_call.1} parent=1 // pred_region
      _
    $region45: #{tpu_custom_call.1} parent=1 // pred_fallthru
      _
    // Predicated region
    $region46: #{tpu_custom_call.1} parent=1 // pred_check
      _
    $region47: #{tpu_custom_call.1} parent=1 // pred_check_branch
      %110 = sbr.rel (0) target = $region49
    $region48: #{tpu_custom_call.1} parent=1 // pred_region
      %s112 = ssub.s32 2048, 2048
      %113 = vsyncadd [#allocation13], %s112
      %s114 = sshll.u32 [#allocation14], 4
      %s115 = int_to_ptr.vmem [resolvable:$true] %s114
      %120 = dma.hbm_to_vmem [thread:$0]  %s11, 2048, %s115, [#allocation13], 64, 64, 4
    $region49: #{tpu_custom_call.1} parent=1 // pred_fallthru
      _
    // Predicated region
    $region50: #{tpu_custom_call.1} parent=1 // pred_check
      _
    $region51: #{tpu_custom_call.1} parent=1 // pred_check_branch
      %122 = sbr.rel (0) target = $region53
    $region52: #{tpu_custom_call.1} parent=1 // pred_region
      _
    $region53: #{tpu_custom_call.1} parent=1 // pred_fallthru
      _
    // Predicated region
    $region54: #{tpu_custom_call.1} parent=1 // pred_check
      _
    $region55: #{tpu_custom_call.1} parent=1 // pred_check_branch
      %124 = sbr.rel (0) target = $region57
    $region56: #{tpu_custom_call.1} parent=1 // pred_region
      _
    $region57: #{tpu_custom_call.1} parent=1 // pred_fallthru
      _
    // Predicated region
    $region58: #{tpu_custom_call.1} parent=1 // pred_check
      _
    $region59: #{tpu_custom_call.1} parent=1 // pred_check_branch
      %126 = sbr.rel (0) target = $region61
    $region60: #{tpu_custom_call.1} parent=1 // pred_region
      _
    $region61: #{tpu_custom_call.1} parent=1 // pred_fallthru
      _
    // Predicated region
    $region62: #{tpu_custom_call.1} parent=1 // pred_check
      _
    $region63: #{tpu_custom_call.1} parent=1 // pred_check_branch
      %128 = sbr.rel (0) target = $region65
    $region64: #{tpu_custom_call.1} parent=1 // pred_region
      _
    $region65: #{tpu_custom_call.1} parent=1 // pred_fallthru
      _
    // Predicated region
    $region66: #{tpu_custom_call.1} parent=1 // pred_check
      _
    $region67: #{tpu_custom_call.1} parent=1 // pred_check_branch
      %130 = sbr.rel (0) target = $region69
    $region68: #{tpu_custom_call.1} parent=1 // pred_region
      _
    $region69: #{tpu_custom_call.1} parent=1 // pred_fallthru
      _
    // Predicated region
    $region70: #{tpu_custom_call.1} parent=1 // pred_check
      _
    $region71: #{tpu_custom_call.1} parent=1 // pred_check_branch
      %132 = sbr.rel (0) target = $region73
    $region72: #{tpu_custom_call.1} parent=1 // pred_region
      %133 = dma.done [#allocation4], 512
    $region73: #{tpu_custom_call.1} parent=1 // pred_fallthru
      _
    // Predicated region
    $region74: #{tpu_custom_call.1} parent=1 // pred_check
      _
    $region75: #{tpu_custom_call.1} parent=1 // pred_check_branch
      %135 = sbr.rel (0) target = $region77
    $region76: #{tpu_custom_call.1} parent=1 // pred_region
      %136 = dma.done [#allocation7], 1024
    $region77: #{tpu_custom_call.1} parent=1 // pred_fallthru
      _
    // Predicated region
    $region78: #{tpu_custom_call.1} parent=1 // pred_check
      _
    $region79: #{tpu_custom_call.1} parent=1 // pred_check_branch
      %138 = sbr.rel (0) target = $region81
    $region80: #{tpu_custom_call.1} parent=1 // pred_region
      %139 = dma.done [#allocation7], 1024
    $region81: #{tpu_custom_call.1} parent=1 // pred_fallthru
      _
    // Predicated region
    $region82: #{tpu_custom_call.1} parent=1 // pred_check
      _
    $region83: #{tpu_custom_call.1} parent=1 // pred_check_branch
      %141 = sbr.rel (0) target = $region85
    $region84: #{tpu_custom_call.1} parent=1 // pred_region
      %142 = dma.done [#allocation10], 1024
    $region85: #{tpu_custom_call.1} parent=1 // pred_fallthru
      _
    // Predicated region
    $region86: #{tpu_custom_call.1} parent=1 // pred_check
      _
    $region87: #{tpu_custom_call.1} parent=1 // pred_check_branch
      %144 = sbr.rel (0) target = $region89
    $region88: #{tpu_custom_call.1} parent=1 // pred_region
      %145 = dma.done [#allocation10], 1024
    $region89: #{tpu_custom_call.1} parent=1 // pred_fallthru
      _
    // Predicated region
    $region90: #{tpu_custom_call.1} parent=1 // pred_check
      _
    $region91: #{tpu_custom_call.1} parent=1 // pred_check_branch
      %147 = sbr.rel (0) target = $region93
    $region92: #{tpu_custom_call.1} parent=1 // pred_region
      %148 = dma.done [#allocation13], 2048
    $region93: #{tpu_custom_call.1} parent=1 // pred_fallthru
      _
    // Predicated region
    $region94: #{tpu_custom_call.1} parent=1 // pred_check
      _
    $region95: #{tpu_custom_call.1} parent=1 // pred_check_branch
      %150 = sbr.rel (0) target = $region97
    $region96: #{tpu_custom_call.1} parent=1 // pred_region
      %151 = dma.done [#allocation13], 2048
    $region97: #{tpu_custom_call.1} parent=1 // pred_fallthru
      _
    %v153 = vld [vmem:[#allocation3] sm:$0xff]
    %v154 = vld [vmem:[#allocation3 + $0x8] sm:$0xff]
    %v155 = vld [vmem:[#allocation3 + $0x10] sm:$0xff]
    %v156 = vld [vmem:[#allocation3 + $0x18] sm:$0xff]
    %v157 = vpack.c.bf16 %v154, %v153
    %v158 = vpack.c.bf16 %v156, %v155
    %v159 = vld [vmem:[#allocation6] sm:$0xf]
    %v160 = vld [vmem:[#allocation6 + $0x4] sm:$0xf]
    %v161 = vld [vmem:[#allocation6 + $0x8] sm:$0xf]
    %v162 = vld [vmem:[#allocation6 + $0xc] sm:$0xf]
    %v163 = vld [vmem:[#allocation6 + $0x10] sm:$0xf]
    %v164 = vld [vmem:[#allocation6 + $0x14] sm:$0xf]
    %v165 = vld [vmem:[#allocation6 + $0x18] sm:$0xf]
    %v166 = vld [vmem:[#allocation6 + $0x1c] sm:$0xf]
    %v167 = vld [vmem:[#allocation6 + $0x20] sm:$0xf]
    %v168 = vld [vmem:[#allocation6 + $0x24] sm:$0xf]
    %v169 = vld [vmem:[#allocation6 + $0x28] sm:$0xf]
    %v170 = vld [vmem:[#allocation6 + $0x2c] sm:$0xf]
    %v171 = vld [vmem:[#allocation6 + $0x30] sm:$0xf]
    %v172 = vld [vmem:[#allocation6 + $0x34] sm:$0xf]
    %v173 = vld [vmem:[#allocation6 + $0x38] sm:$0xf]
    %v174 = vld [vmem:[#allocation6 + $0x3c] sm:$0xf]
    %v175 = vld [vmem:[%s2] sm:$0x1]
    %v177 = vlaneseq
    %v178 = vshrl.u32 %v177, 7
    %v179 = vsub.s32 0, %v178
    %v180 = vrot.slane %v175, %v179
    %v198 = vunpack.c.l.b16 %v159
    %v199 = vunpack.c.l.b16 %v160
    %v200 = vunpack.c.l.b16 %v161
    %v201 = vunpack.c.l.b16 %v162
    %v202 = vunpack.c.l.b16 %v163
    %v203 = vunpack.c.l.b16 %v164
    %v204 = vunpack.c.l.b16 %v165
    %v205 = vunpack.c.l.b16 %v166
    %v206 = vunpack.c.l.b16 %v167
    %v207 = vunpack.c.l.b16 %v168
    %v208 = vunpack.c.l.b16 %v169
    %v209 = vunpack.c.l.b16 %v170
    %v210 = vunpack.c.l.b16 %v171
    %v211 = vunpack.c.l.b16 %v172
    %v212 = vunpack.c.l.b16 %v173
    %v213 = vunpack.c.l.b16 %v174
    %v214 = vpack.c.b16 %v199, %v198
    %v215 = vpack.c.b16 %v201, %v200
    %v216 = vpack.c.b16 %v203, %v202
    %v217 = vpack.c.b16 %v205, %v204
    %v218 = vpack.c.b16 %v207, %v206
    %v219 = vpack.c.b16 %v209, %v208
    %v220 = vpack.c.b16 %v211, %v210
    %v221 = vpack.c.b16 %v213, %v212
    %230 = vmatprep.subr.bf16.mxu0 0
    %231 = vmatpush1.bf16.msra.mxu0 %v221
    %232 = vmatprep.subr.bf16.mxu0 0
    %233 = vmatpush1.bf16.msra.mxu0 %v220
    %234 = vmatprep.subr.bf16.mxu0 0
    %235 = vmatpush1.bf16.msra.mxu0 %v219
    %236 = vmatprep.subr.bf16.mxu0 0
    %237 = vmatpush1.bf16.msra.mxu0 %v218
    %238 = vmatprep.subr.bf16.mxu0 0
    %239 = vmatpush1.bf16.msra.mxu0 %v217
    %240 = vmatprep.subr.bf16.mxu0 0
    %241 = vmatpush1.bf16.msra.mxu0 %v216
    %242 = vmatprep.subr.bf16.mxu0 0
    %243 = vmatpush1.bf16.msra.mxu0 %v215
    %244 = vmatprep.subr.bf16.mxu0 0
    %245 = vmatpush1.bf16.msra.mxu0 %v214
    %246 = vmatprep.subr.bf16.mxu0 0
    %247 = vmatpush2.bf16.msra.mxu0 0
    %248 = vmatprep.subr.bf16.mxu0 0
    %249 = vmatpush2.bf16.msra.mxu0 0
    %250 = vmatprep.subr.bf16.mxu0 0
    %251 = vmatpush2.bf16.msra.mxu0 0
    %252 = vmatprep.subr.bf16.mxu0 0
    %253 = vmatpush2.bf16.msra.mxu0 0
    %254 = vmatprep.subr.bf16.mxu0 0
    %255 = vmatpush2.bf16.msra.mxu0 0
    %256 = vmatprep.subr.bf16.mxu0 0
    %257 = vmatpush2.bf16.msra.mxu0 0
    %258 = vmatprep.subr.bf16.mxu0 0
    %259 = vmatpush2.bf16.msra.mxu0 0
    %260 = vmatprep.subr.bf16.mxu0 0
    %261 = vmatpush2.bf16.msra.mxu0 0
    %262 = vmatprep.mubr.bf16.mxu0 0
    %263 = vmatmul.mubr.bf16.gmra.mxu0 %v157
    %v264 = vpop.f32.mrf.mxu0
    %v265 = vadd.f32 %v180, %v264
    %v266 = vpop.f32.mrf.mxu0
    %v267 = vpop.f32.mrf.mxu0
    %v268 = vadd.f32 %v180, %v267
    %v269 = vpop.f32.mrf.mxu0
    %270 = vmatprep.mubr.bf16.mxu0 0
    %271 = vmatmul.mubr.bf16.gmra.mxu0 %v158
    %v272 = vpop.f32.mrf.mxu0
    %v273 = vadd.f32 %v180, %v272
    %v274 = vpop.f32.mrf.mxu0
    %v275 = vpop.f32.mrf.mxu0
    %v276 = vadd.f32 %v180, %v275
    %v277 = vpop.f32.mrf.mxu0
    %278 = vdwg.mxu0
    %v279 = vpack.c.bf16 %v268, %v265
    %v280 = vpack.c.bf16 %v276, %v273
    %v281 = vld [vmem:[#allocation8] sm:$0xf]
    %v282 = vld [vmem:[#allocation8 + $0x4] sm:$0xf]
    %v283 = vld [vmem:[#allocation8 + $0x8] sm:$0xf]
    %v284 = vld [vmem:[#allocation8 + $0xc] sm:$0xf]
    %v285 = vld [vmem:[#allocation8 + $0x10] sm:$0xf]
    %v286 = vld [vmem:[#allocation8 + $0x14] sm:$0xf]
    %v287 = vld [vmem:[#allocation8 + $0x18] sm:$0xf]
    %v288 = vld [vmem:[#allocation8 + $0x1c] sm:$0xf]
    %v289 = vld [vmem:[#allocation8 + $0x20] sm:$0xf]
    %v290 = vld [vmem:[#allocation8 + $0x24] sm:$0xf]
    %v291 = vld [vmem:[#allocation8 + $0x28] sm:$0xf]
    %v292 = vld [vmem:[#allocation8 + $0x2c] sm:$0xf]
    %v293 = vld [vmem:[#allocation8 + $0x30] sm:$0xf]
    %v294 = vld [vmem:[#allocation8 + $0x34] sm:$0xf]
    %v295 = vld [vmem:[#allocation8 + $0x38] sm:$0xf]
    %v296 = vld [vmem:[#allocation8 + $0x3c] sm:$0xf]
    %v297 = vld [vmem:[%s4] sm:$0x1]
    %v299 = vlaneseq
    %v300 = vshrl.u32 %v299, 7
    %v301 = vsub.s32 0, %v300
    %v302 = vrot.slane %v297, %v301
    %v320 = vunpack.c.l.b16 %v281
    %v321 = vunpack.c.l.b16 %v282
    %v322 = vunpack.c.l.b16 %v283
    %v323 = vunpack.c.l.b16 %v284
    %v324 = vunpack.c.l.b16 %v285
    %v325 = vunpack.c.l.b16 %v286
    %v326 = vunpack.c.l.b16 %v287
    %v327 = vunpack.c.l.b16 %v288
    %v328 = vunpack.c.l.b16 %v289
    %v329 = vunpack.c.l.b16 %v290
    %v330 = vunpack.c.l.b16 %v291
    %v331 = vunpack.c.l.b16 %v292
    %v332 = vunpack.c.l.b16 %v293
    %v333 = vunpack.c.l.b16 %v294
    %v334 = vunpack.c.l.b16 %v295
    %v335 = vunpack.c.l.b16 %v296
    %v336 = vpack.c.b16 %v321, %v320
    %v337 = vpack.c.b16 %v323, %v322
    %v338 = vpack.c.b16 %v325, %v324
    %v339 = vpack.c.b16 %v327, %v326
    %v340 = vpack.c.b16 %v329, %v328
    %v341 = vpack.c.b16 %v331, %v330
    %v342 = vpack.c.b16 %v333, %v332
    %v343 = vpack.c.b16 %v335, %v334
    %352 = vmatprep.subr.bf16.mxu0 0
    %353 = vmatpush1.bf16.msra.mxu0 %v343
    %354 = vmatprep.subr.bf16.mxu0 0
    %355 = vmatpush1.bf16.msra.mxu0 %v342
    %356 = vmatprep.subr.bf16.mxu0 0
    %357 = vmatpush1.bf16.msra.mxu0 %v341
    %358 = vmatprep.subr.bf16.mxu0 0
    %359 = vmatpush1.bf16.msra.mxu0 %v340
    %360 = vmatprep.subr.bf16.mxu0 0
    %361 = vmatpush1.bf16.msra.mxu0 %v339
    %362 = vmatprep.subr.bf16.mxu0 0
    %363 = vmatpush1.bf16.msra.mxu0 %v338
    %364 = vmatprep.subr.bf16.mxu0 0
    %365 = vmatpush1.bf16.msra.mxu0 %v337
    %366 = vmatprep.subr.bf16.mxu0 0
    %367 = vmatpush1.bf16.msra.mxu0 %v336
    %368 = vmatprep.subr.bf16.mxu0 0
    %369 = vmatpush2.bf16.msra.mxu0 0
    %370 = vmatprep.subr.bf16.mxu0 0
    %371 = vmatpush2.bf16.msra.mxu0 0
    %372 = vmatprep.subr.bf16.mxu0 0
    %373 = vmatpush2.bf16.msra.mxu0 0
    %374 = vmatprep.subr.bf16.mxu0 0
    %375 = vmatpush2.bf16.msra.mxu0 0
    %376 = vmatprep.subr.bf16.mxu0 0
    %377 = vmatpush2.bf16.msra.mxu0 0
    %378 = vmatprep.subr.bf16.mxu0 0
    %379 = vmatpush2.bf16.msra.mxu0 0
    %380 = vmatprep.subr.bf16.mxu0 0
    %381 = vmatpush2.bf16.msra.mxu0 0
    %382 = vmatprep.subr.bf16.mxu0 0
    %383 = vmatpush2.bf16.msra.mxu0 0
    %384 = vmatprep.mubr.bf16.mxu0 0
    %385 = vmatmul.mubr.bf16.gmra.mxu0 %v157
    %v386 = vpop.f32.mrf.mxu0
    %v387 = vadd.f32 %v302, %v386
    %v388 = vpop.f32.mrf.mxu0
    %v389 = vpop.f32.mrf.mxu0
    %v390 = vadd.f32 %v302, %v389
    %v391 = vpop.f32.mrf.mxu0
    %392 = vmatprep.mubr.bf16.mxu0 0
    %393 = vmatmul.mubr.bf16.gmra.mxu0 %v158
    %v394 = vpop.f32.mrf.mxu0
    %v395 = vadd.f32 %v302, %v394
    %v396 = vpop.f32.mrf.mxu0
    %v397 = vpop.f32.mrf.mxu0
    %v398 = vadd.f32 %v302, %v397
    %v399 = vpop.f32.mrf.mxu0
    %400 = vdwg.mxu0
    %v401 = vpack.c.bf16 %v390, %v387
    %v402 = vpack.c.bf16 %v398, %v395
    %v403 = vld [vmem:[#allocation9] sm:$0xf]
    %v404 = vld [vmem:[#allocation9 + $0x4] sm:$0xf]
    %v405 = vld [vmem:[#allocation9 + $0x8] sm:$0xf]
    %v406 = vld [vmem:[#allocation9 + $0xc] sm:$0xf]
    %v407 = vld [vmem:[#allocation9 + $0x10] sm:$0xf]
    %v408 = vld [vmem:[#allocation9 + $0x14] sm:$0xf]
    %v409 = vld [vmem:[#allocation9 + $0x18] sm:$0xf]
    %v410 = vld [vmem:[#allocation9 + $0x1c] sm:$0xf]
    %v411 = vld [vmem:[#allocation9 + $0x20] sm:$0xf]
    %v412 = vld [vmem:[#allocation9 + $0x24] sm:$0xf]
    %v413 = vld [vmem:[#allocation9 + $0x28] sm:$0xf]
    %v414 = vld [vmem:[#allocation9 + $0x2c] sm:$0xf]
    %v415 = vld [vmem:[#allocation9 + $0x30] sm:$0xf]
    %v416 = vld [vmem:[#allocation9 + $0x34] sm:$0xf]
    %v417 = vld [vmem:[#allocation9 + $0x38] sm:$0xf]
    %v418 = vld [vmem:[#allocation9 + $0x3c] sm:$0xf]
    %v419 = vld [vmem:[%s6] sm:$0x1]
    %v421 = vlaneseq
    %v422 = vshrl.u32 %v421, 7
    %v423 = vsub.s32 0, %v422
    %v424 = vrot.slane %v419, %v423
    %v442 = vunpack.c.l.b16 %v403
    %v443 = vunpack.c.l.b16 %v404
    %v444 = vunpack.c.l.b16 %v405
    %v445 = vunpack.c.l.b16 %v406
    %v446 = vunpack.c.l.b16 %v407
    %v447 = vunpack.c.l.b16 %v408
    %v448 = vunpack.c.l.b16 %v409
    %v449 = vunpack.c.l.b16 %v410
    %v450 = vunpack.c.l.b16 %v411
    %v451 = vunpack.c.l.b16 %v412
    %v452 = vunpack.c.l.b16 %v413
    %v453 = vunpack.c.l.b16 %v414
    %v454 = vunpack.c.l.b16 %v415
    %v455 = vunpack.c.l.b16 %v416
    %v456 = vunpack.c.l.b16 %v417
    %v457 = vunpack.c.l.b16 %v418
    %v458 = vpack.c.b16 %v443, %v442
    %v459 = vpack.c.b16 %v445, %v444
    %v460 = vpack.c.b16 %v447, %v446
    %v461 = vpack.c.b16 %v449, %v448
    %v462 = vpack.c.b16 %v451, %v450
    %v463 = vpack.c.b16 %v453, %v452
    %v464 = vpack.c.b16 %v455, %v454
    %v465 = vpack.c.b16 %v457, %v456
    %474 = vmatprep.subr.bf16.mxu0 0
    %475 = vmatpush1.bf16.msra.mxu0 %v465
    %476 = vmatprep.subr.bf16.mxu0 0
    %477 = vmatpush1.bf16.msra.mxu0 %v464
    %478 = vmatprep.subr.bf16.mxu0 0
    %479 = vmatpush1.bf16.msra.mxu0 %v463
    %480 = vmatprep.subr.bf16.mxu0 0
    %481 = vmatpush1.bf16.msra.mxu0 %v462
    %482 = vmatprep.subr.bf16.mxu0 0
    %483 = vmatpush1.bf16.msra.mxu0 %v461
    %484 = vmatprep.subr.bf16.mxu0 0
    %485 = vmatpush1.bf16.msra.mxu0 %v460
    %486 = vmatprep.subr.bf16.mxu0 0
    %487 = vmatpush1.bf16.msra.mxu0 %v459
    %488 = vmatprep.subr.bf16.mxu0 0
    %489 = vmatpush1.bf16.msra.mxu0 %v458
    %490 = vmatprep.subr.bf16.mxu0 0
    %491 = vmatpush2.bf16.msra.mxu0 0
    %492 = vmatprep.subr.bf16.mxu0 0
    %493 = vmatpush2.bf16.msra.mxu0 0
    %494 = vmatprep.subr.bf16.mxu0 0
    %495 = vmatpush2.bf16.msra.mxu0 0
    %496 = vmatprep.subr.bf16.mxu0 0
    %497 = vmatpush2.bf16.msra.mxu0 0
    %498 = vmatprep.subr.bf16.mxu0 0
    %499 = vmatpush2.bf16.msra.mxu0 0
    %500 = vmatprep.subr.bf16.mxu0 0
    %501 = vmatpush2.bf16.msra.mxu0 0
    %502 = vmatprep.subr.bf16.mxu0 0
    %503 = vmatpush2.bf16.msra.mxu0 0
    %504 = vmatprep.subr.bf16.mxu0 0
    %505 = vmatpush2.bf16.msra.mxu0 0
    %506 = vmatprep.mubr.bf16.mxu0 0
    %507 = vmatmul.mubr.bf16.gmra.mxu0 %v157
    %v508 = vpop.f32.mrf.mxu0
    %v509 = vadd.f32 %v424, %v508
    %v510 = vpop.f32.mrf.mxu0
    %v511 = vpop.f32.mrf.mxu0
    %v512 = vadd.f32 %v424, %v511
    %v513 = vpop.f32.mrf.mxu0
    %514 = vmatprep.mubr.bf16.mxu0 0
    %515 = vmatmul.mubr.bf16.gmra.mxu0 %v158
    %v516 = vpop.f32.mrf.mxu0
    %v517 = vadd.f32 %v424, %v516
    %v518 = vpop.f32.mrf.mxu0
    %v519 = vpop.f32.mrf.mxu0
    %v520 = vadd.f32 %v424, %v519
    %v521 = vpop.f32.mrf.mxu0
    %522 = vdwg.mxu0
    %v523 = vpack.c.bf16 %v512, %v509
    %v524 = vpack.c.bf16 %v520, %v517
    %vm525 = vcmask 261120
    %v527 = vsel %vm525, %v279, 0
    %v530 = vsel %vm525, %v401, 0
    %532 = vmatprep.subr.bf16.mxu0 0
    %533 = vmatpush1.bf16.xpose.msra.mxu0 0
    %534 = vmatprep.subr.bf16.mxu0 0
    %535 = vmatpush1.bf16.xpose.msra.mxu0 0
    %536 = vmatprep.subr.bf16.mxu0 0
    %537 = vmatpush1.bf16.xpose.msra.mxu0 0
    %538 = vmatprep.subr.bf16.mxu0 0
    %539 = vmatpush1.bf16.xpose.msra.mxu0 0
    %540 = vmatprep.subr.bf16.mxu0 0
    %541 = vmatpush1.bf16.xpose.msra.mxu0 0
    %542 = vmatprep.subr.bf16.mxu0 0
    %543 = vmatpush1.bf16.xpose.msra.mxu0 0
    %544 = vmatprep.subr.bf16.mxu0 0
    %545 = vmatpush1.bf16.xpose.msra.mxu0 0
    %546 = vmatprep.subr.bf16.mxu0 0
    %547 = vmatpush1.bf16.xpose.msra.mxu0 %v530
    %548 = vmatprep.subr.bf16.mxu0 0
    %549 = vmatpush2.bf16.xpose.msra.mxu0 0
    %550 = vmatprep.subr.bf16.mxu0 0
    %551 = vmatpush2.bf16.xpose.msra.mxu0 0
    %552 = vmatprep.subr.bf16.mxu0 0
    %553 = vmatpush2.bf16.xpose.msra.mxu0 0
    %554 = vmatprep.subr.bf16.mxu0 0
    %555 = vmatpush2.bf16.xpose.msra.mxu0 0
    %556 = vmatprep.subr.bf16.mxu0 0
    %557 = vmatpush2.bf16.xpose.msra.mxu0 0
    %558 = vmatprep.subr.bf16.mxu0 0
    %559 = vmatpush2.bf16.xpose.msra.mxu0 0
    %560 = vmatprep.subr.bf16.mxu0 0
    %561 = vmatpush2.bf16.xpose.msra.mxu0 0
    %562 = vmatprep.subr.bf16.mxu0 0
    %563 = vmatpush2.bf16.xpose.msra.mxu0 0
    %564 = vmatprep.mubr.bf16.mxu0 0
    %565 = vmatmul.mubr.bf16.gmra.mxu0 %v527
    %v566 = vpop.f32.mrf.mxu0
    %v567 = vadd.f32 0.0, %v566
    %v568 = vpop.f32.mrf.mxu0
    %v569 = vpop.f32.mrf.mxu0
    %v570 = vadd.f32 0.0, %v569
    %v571 = vpop.f32.mrf.mxu0
    %572 = vdwg.mxu0
    %v574 = vsel %vm525, %v280, 0
    %v577 = vsel %vm525, %v402, 0
    %579 = vmatprep.subr.bf16.mxu0 0
    %580 = vmatpush1.bf16.xpose.msra.mxu0 0
    %581 = vmatprep.subr.bf16.mxu0 0
    %582 = vmatpush1.bf16.xpose.msra.mxu0 0
    %583 = vmatprep.subr.bf16.mxu0 0
    %584 = vmatpush1.bf16.xpose.msra.mxu0 0
    %585 = vmatprep.subr.bf16.mxu0 0
    %586 = vmatpush1.bf16.xpose.msra.mxu0 0
    %587 = vmatprep.subr.bf16.mxu0 0
    %588 = vmatpush1.bf16.xpose.msra.mxu0 0
    %589 = vmatprep.subr.bf16.mxu0 0
    %590 = vmatpush1.bf16.xpose.msra.mxu0 0
    %591 = vmatprep.subr.bf16.mxu0 0
    %592 = vmatpush1.bf16.xpose.msra.mxu0 0
    %593 = vmatprep.subr.bf16.mxu0 0
    %594 = vmatpush1.bf16.xpose.msra.mxu0 %v577
    %595 = vmatprep.subr.bf16.mxu0 0
    %596 = vmatpush2.bf16.xpose.msra.mxu0 0
    %597 = vmatprep.subr.bf16.mxu0 0
    %598 = vmatpush2.bf16.xpose.msra.mxu0 0
    %599 = vmatprep.subr.bf16.mxu0 0
    %600 = vmatpush2.bf16.xpose.msra.mxu0 0
    %601 = vmatprep.subr.bf16.mxu0 0
    %602 = vmatpush2.bf16.xpose.msra.mxu0 0
    %603 = vmatprep.subr.bf16.mxu0 0
    %604 = vmatpush2.bf16.xpose.msra.mxu0 0
    %605 = vmatprep.subr.bf16.mxu0 0
    %606 = vmatpush2.bf16.xpose.msra.mxu0 0
    %607 = vmatprep.subr.bf16.mxu0 0
    %608 = vmatpush2.bf16.xpose.msra.mxu0 0
    %609 = vmatprep.subr.bf16.mxu0 0
    %610 = vmatpush2.bf16.xpose.msra.mxu0 0
    %611 = vmatprep.mubr.bf16.mxu0 0
    %612 = vmatmul.mubr.bf16.gmra.mxu0 %v574
    %v613 = vpop.f32.mrf.mxu0
    %v614 = vadd.f32 0.0, %v613
    %v615 = vpop.f32.mrf.mxu0
    %v616 = vpop.f32.mrf.mxu0
    %v617 = vadd.f32 0.0, %v616
    %v618 = vpop.f32.mrf.mxu0
    %619 = vdwg.mxu0
    %vm620 = vcmask 130048
    %v621 = vsel %vm620, %v567, -inf
    %622 = vmax.xlane.f32.xlu0 %v621
    %v623 = vpop.xlane.xlu0 %622
    %v624 = vsel %vm620, %v570, -inf
    %625 = vmax.xlane.f32.xlu0 %v624
    %v626 = vpop.xlane.xlu0 %625
    %v627 = vsel %vm620, %v614, -inf
    %628 = vmax.xlane.f32.xlu0 %v627
    %v629 = vpop.xlane.xlu0 %628
    %v630 = vsel %vm620, %v617, -inf
    %631 = vmax.xlane.f32.xlu0 %v630
    %v632 = vpop.xlane.xlu0 %631
    %v633 = vsub.f32 %v567, %v623
    %v634 = vsub.f32 %v570, %v626
    %v635 = vsub.f32 %v614, %v629
    %v636 = vsub.f32 %v617, %v632
    %v637 = vmul.f32 %v633, 1.442695
    %v638 = vpow.pop %v637
    %v639 = vmul.f32 %v634, 1.442695
    %v640 = vpow.pop %v639
    %v641 = vmul.f32 %v635, 1.442695
    %v642 = vpow.pop %v641
    %v643 = vmul.f32 %v636, 1.442695
    %v644 = vpow.pop %v643
    %v645 = vsel %vm620, %v638, 0.0
    %646 = vadd.xlane.f32.xlu0 %v645
    %v647 = vpop.xlane.xlu0 %646
    %v648 = vsel %vm620, %v640, 0.0
    %649 = vadd.xlane.f32.xlu0 %v648
    %v650 = vpop.xlane.xlu0 %649
    %v651 = vsel %vm620, %v642, 0.0
    %652 = vadd.xlane.f32.xlu0 %v651
    %v653 = vpop.xlane.xlu0 %652
    %v654 = vsel %vm620, %v644, 0.0
    %655 = vadd.xlane.f32.xlu0 %v654
    %v656 = vpop.xlane.xlu0 %655
    %v657 = vrcp.pop %v647
    %v658 = vrcp.pop %v650
    %v659 = vrcp.pop %v653
    %v660 = vrcp.pop %v656
    %v661 = vmul.f32 %v638, %v657
    %v662 = vmul.f32 %v640, %v658
    %v663 = vmul.f32 %v642, %v659
    %v664 = vmul.f32 %v644, %v660
    %v665 = vpack.c.bf16 %v662, %v661
    %v666 = vpack.c.bf16 %v664, %v663
    %v668 = vsel %vm620, %v665, 0
    %670 = vmatprep.subr.bf16.mxu0 0
    %671 = vmatpush1.bf16.msra.mxu0 0
    %672 = vmatprep.subr.bf16.mxu0 0
    %673 = vmatpush1.bf16.msra.mxu0 0
    %674 = vmatprep.subr.bf16.mxu0 0
    %675 = vmatpush1.bf16.msra.mxu0 0
    %676 = vmatprep.subr.bf16.mxu0 0
    %677 = vmatpush1.bf16.msra.mxu0 0
    %678 = vmatprep.subr.bf16.mxu0 0
    %679 = vmatpush1.bf16.msra.mxu0 0
    %680 = vmatprep.subr.bf16.mxu0 0
    %681 = vmatpush1.bf16.msra.mxu0 0
    %682 = vmatprep.subr.bf16.mxu0 0
    %683 = vmatpush1.bf16.msra.mxu0 0
    %684 = vmatprep.subr.bf16.mxu0 0
    %685 = vmatpush1.bf16.msra.mxu0 %v523
    %686 = vmatprep.subr.bf16.mxu0 0
    %687 = vmatpush2.bf16.msra.mxu0 0
    %688 = vmatprep.subr.bf16.mxu0 0
    %689 = vmatpush2.bf16.msra.mxu0 0
    %690 = vmatprep.subr.bf16.mxu0 0
    %691 = vmatpush2.bf16.msra.mxu0 0
    %692 = vmatprep.subr.bf16.mxu0 0
    %693 = vmatpush2.bf16.msra.mxu0 0
    %694 = vmatprep.subr.bf16.mxu0 0
    %695 = vmatpush2.bf16.msra.mxu0 0
    %696 = vmatprep.subr.bf16.mxu0 0
    %697 = vmatpush2.bf16.msra.mxu0 0
    %698 = vmatprep.subr.bf16.mxu0 0
    %699 = vmatpush2.bf16.msra.mxu0 0
    %700 = vmatprep.subr.bf16.mxu0 0
    %701 = vmatpush2.bf16.msra.mxu0 0
    %702 = vmatprep.mubr.bf16.mxu0 0
    %703 = vmatmul.mubr.bf16.gmra.mxu0 %v668
    %v704 = vpop.f32.mrf.mxu0
    %v705 = vadd.f32 0.0, %v704
    %v706 = vpop.f32.mrf.mxu0
    %v707 = vpop.f32.mrf.mxu0
    %v708 = vadd.f32 0.0, %v707
    %v709 = vpop.f32.mrf.mxu0
    %710 = vdwg.mxu0
    %v712 = vsel %vm620, %v666, 0
    %714 = vmatprep.subr.bf16.mxu0 0
    %715 = vmatpush1.bf16.msra.mxu0 0
    %716 = vmatprep.subr.bf16.mxu0 0
    %717 = vmatpush1.bf16.msra.mxu0 0
    %718 = vmatprep.subr.bf16.mxu0 0
    %719 = vmatpush1.bf16.msra.mxu0 0
    %720 = vmatprep.subr.bf16.mxu0 0
    %721 = vmatpush1.bf16.msra.mxu0 0
    %722 = vmatprep.subr.bf16.mxu0 0
    %723 = vmatpush1.bf16.msra.mxu0 0
    %724 = vmatprep.subr.bf16.mxu0 0
    %725 = vmatpush1.bf16.msra.mxu0 0
    %726 = vmatprep.subr.bf16.mxu0 0
    %727 = vmatpush1.bf16.msra.mxu0 0
    %728 = vmatprep.subr.bf16.mxu0 0
    %729 = vmatpush1.bf16.msra.mxu0 %v524
    %730 = vmatprep.subr.bf16.mxu0 0
    %731 = vmatpush2.bf16.msra.mxu0 0
    %732 = vmatprep.subr.bf16.mxu0 0
    %733 = vmatpush2.bf16.msra.mxu0 0
    %734 = vmatprep.subr.bf16.mxu0 0
    %735 = vmatpush2.bf16.msra.mxu0 0
    %736 = vmatprep.subr.bf16.mxu0 0
    %737 = vmatpush2.bf16.msra.mxu0 0
    %738 = vmatprep.subr.bf16.mxu0 0
    %739 = vmatpush2.bf16.msra.mxu0 0
    %740 = vmatprep.subr.bf16.mxu0 0
    %741 = vmatpush2.bf16.msra.mxu0 0
    %742 = vmatprep.subr.bf16.mxu0 0
    %743 = vmatpush2.bf16.msra.mxu0 0
    %744 = vmatprep.subr.bf16.mxu0 0
    %745 = vmatpush2.bf16.msra.mxu0 0
    %746 = vmatprep.mubr.bf16.mxu0 0
    %747 = vmatmul.mubr.bf16.gmra.mxu0 %v712
    %v748 = vpop.f32.mrf.mxu0
    %v749 = vadd.f32 0.0, %v748
    %v750 = vpop.f32.mrf.mxu0
    %v751 = vpop.f32.mrf.mxu0
    %v752 = vadd.f32 0.0, %v751
    %v753 = vpop.f32.mrf.mxu0
    %754 = vdwg.mxu0
    %v755 = vpack.c.bf16 %v708, %v705
    %v756 = vpack.c.bf16 %v752, %v749
    %v759 = vunpack.c.l.b16 %v755
    %v760 = vunpack.c.h.b16 %v755
    %v761 = vunpack.c.l.b16 %v756
    %v762 = vunpack.c.h.b16 %v756
    %v763 = vpack.c.b16 %v759, %v759
    %v764 = vpack.c.b16 %v760, %v760
    %v765 = vpack.c.b16 %v761, %v761
    %v766 = vpack.c.b16 %v762, %v762
    %vm771 = vcmask 257024
    %772 = vst.msk [vmem:[#allocation2] sm:$0xf] %vm771, %v763
    %773 = vst.msk [vmem:[#allocation2 + $0x4] sm:$0xf] %vm771, %v764
    %774 = vst.msk [vmem:[#allocation2 + $0x8] sm:$0xf] %vm771, %v765
    %775 = vst.msk [vmem:[#allocation2 + $0xc] sm:$0xf] %vm771, %v766
    %777 = vrot.lane.b32.xlu0 %v279, 96
    %v778 = vpop.permute.xlu0 %777
    %780 = vrot.lane.b32.xlu0 %v401, 96
    %v781 = vpop.permute.xlu0 %780
    %v783 = vsel %vm525, %v778, 0
    %v786 = vsel %vm525, %v781, 0
    %788 = vmatprep.subr.bf16.mxu0 0
    %789 = vmatpush1.bf16.xpose.msra.mxu0 0
    %790 = vmatprep.subr.bf16.mxu0 0
    %791 = vmatpush1.bf16.xpose.msra.mxu0 0
    %792 = vmatprep.subr.bf16.mxu0 0
    %793 = vmatpush1.bf16.xpose.msra.mxu0 0
    %794 = vmatprep.subr.bf16.mxu0 0
    %795 = vmatpush1.bf16.xpose.msra.mxu0 0
    %796 = vmatprep.subr.bf16.mxu0 0
    %797 = vmatpush1.bf16.xpose.msra.mxu0 0
    %798 = vmatprep.subr.bf16.mxu0 0
    %799 = vmatpush1.bf16.xpose.msra.mxu0 0
    %800 = vmatprep.subr.bf16.mxu0 0
    %801 = vmatpush1.bf16.xpose.msra.mxu0 0
    %802 = vmatprep.subr.bf16.mxu0 0
    %803 = vmatpush1.bf16.xpose.msra.mxu0 %v786
    %804 = vmatprep.subr.bf16.mxu0 0
    %805 = vmatpush2.bf16.xpose.msra.mxu0 0
    %806 = vmatprep.subr.bf16.mxu0 0
    %807 = vmatpush2.bf16.xpose.msra.mxu0 0
    %808 = vmatprep.subr.bf16.mxu0 0
    %809 = vmatpush2.bf16.xpose.msra.mxu0 0
    %810 = vmatprep.subr.bf16.mxu0 0
    %811 = vmatpush2.bf16.xpose.msra.mxu0 0
    %812 = vmatprep.subr.bf16.mxu0 0
    %813 = vmatpush2.bf16.xpose.msra.mxu0 0
    %814 = vmatprep.subr.bf16.mxu0 0
    %815 = vmatpush2.bf16.xpose.msra.mxu0 0
    %816 = vmatprep.subr.bf16.mxu0 0
    %817 = vmatpush2.bf16.xpose.msra.mxu0 0
    %818 = vmatprep.subr.bf16.mxu0 0
    %819 = vmatpush2.bf16.xpose.msra.mxu0 0
    %820 = vmatprep.mubr.bf16.mxu0 0
    %821 = vmatmul.mubr.bf16.gmra.mxu0 %v783
    %v822 = vpop.f32.mrf.mxu0
    %v823 = vadd.f32 0.0, %v822
    %v824 = vpop.f32.mrf.mxu0
    %v825 = vpop.f32.mrf.mxu0
    %v826 = vadd.f32 0.0, %v825
    %v827 = vpop.f32.mrf.mxu0
    %828 = vdwg.mxu0
    %830 = vrot.lane.b32.xlu0 %v280, 96
    %v831 = vpop.permute.xlu0 %830
    %833 = vrot.lane.b32.xlu0 %v402, 96
    %v834 = vpop.permute.xlu0 %833
    %v836 = vsel %vm525, %v831, 0
    %v839 = vsel %vm525, %v834, 0
    %841 = vmatprep.subr.bf16.mxu0 0
    %842 = vmatpush1.bf16.xpose.msra.mxu0 0
    %843 = vmatprep.subr.bf16.mxu0 0
    %844 = vmatpush1.bf16.xpose.msra.mxu0 0
    %845 = vmatprep.subr.bf16.mxu0 0
    %846 = vmatpush1.bf16.xpose.msra.mxu0 0
    %847 = vmatprep.subr.bf16.mxu0 0
    %848 = vmatpush1.bf16.xpose.msra.mxu0 0
    %849 = vmatprep.subr.bf16.mxu0 0
    %850 = vmatpush1.bf16.xpose.msra.mxu0 0
    %851 = vmatprep.subr.bf16.mxu0 0
    %852 = vmatpush1.bf16.xpose.msra.mxu0 0
    %853 = vmatprep.subr.bf16.mxu0 0
    %854 = vmatpush1.bf16.xpose.msra.mxu0 0
    %855 = vmatprep.subr.bf16.mxu0 0
    %856 = vmatpush1.bf16.xpose.msra.mxu0 %v839
    %857 = vmatprep.subr.bf16.mxu0 0
    %858 = vmatpush2.bf16.xpose.msra.mxu0 0
    %859 = vmatprep.subr.bf16.mxu0 0
    %860 = vmatpush2.bf16.xpose.msra.mxu0 0
    %861 = vmatprep.subr.bf16.mxu0 0
    %862 = vmatpush2.bf16.xpose.msra.mxu0 0
    %863 = vmatprep.subr.bf16.mxu0 0
    %864 = vmatpush2.bf16.xpose.msra.mxu0 0
    %865 = vmatprep.subr.bf16.mxu0 0
    %866 = vmatpush2.bf16.xpose.msra.mxu0 0
    %867 = vmatprep.subr.bf16.mxu0 0
    %868 = vmatpush2.bf16.xpose.msra.mxu0 0
    %869 = vmatprep.subr.bf16.mxu0 0
    %870 = vmatpush2.bf16.xpose.msra.mxu0 0
    %871 = vmatprep.subr.bf16.mxu0 0
    %872 = vmatpush2.bf16.xpose.msra.mxu0 0
    %873 = vmatprep.mubr.bf16.mxu0 0
    %874 = vmatmul.mubr.bf16.gmra.mxu0 %v836
    %v875 = vpop.f32.mrf.mxu0
    %v876 = vadd.f32 0.0, %v875
    %v877 = vpop.f32.mrf.mxu0
    %v878 = vpop.f32.mrf.mxu0
    %v879 = vadd.f32 0.0, %v878
    %v880 = vpop.f32.mrf.mxu0
    %881 = vdwg.mxu0
    %v882 = vsel %vm620, %v823, -inf
    %883 = vmax.xlane.f32.xlu0 %v882
    %v884 = vpop.xlane.xlu0 %883
    %v885 = vsel %vm620, %v826, -inf
    %886 = vmax.xlane.f32.xlu0 %v885
    %v887 = vpop.xlane.xlu0 %886
    %v888 = vsel %vm620, %v876, -inf
    %889 = vmax.xlane.f32.xlu0 %v888
    %v890 = vpop.xlane.xlu0 %889
    %v891 = vsel %vm620, %v879, -inf
    %892 = vmax.xlane.f32.xlu0 %v891
    %v893 = vpop.xlane.xlu0 %892
    %v894 = vsub.f32 %v823, %v884
    %v895 = vsub.f32 %v826, %v887
    %v896 = vsub.f32 %v876, %v890
    %v897 = vsub.f32 %v879, %v893
    %v898 = vmul.f32 %v894, 1.442695
    %v899 = vpow.pop %v898
    %v900 = vmul.f32 %v895, 1.442695
    %v901 = vpow.pop %v900
    %v902 = vmul.f32 %v896, 1.442695
    %v903 = vpow.pop %v902
    %v904 = vmul.f32 %v897, 1.442695
    %v905 = vpow.pop %v904
    %v906 = vsel %vm620, %v899, 0.0
    %907 = vadd.xlane.f32.xlu0 %v906
    %v908 = vpop.xlane.xlu0 %907
    %v909 = vsel %vm620, %v901, 0.0
    %910 = vadd.xlane.f32.xlu0 %v909
    %v911 = vpop.xlane.xlu0 %910
    %v912 = vsel %vm620, %v903, 0.0
    %913 = vadd.xlane.f32.xlu0 %v912
    %v914 = vpop.xlane.xlu0 %913
    %v915 = vsel %vm620, %v905, 0.0
    %916 = vadd.xlane.f32.xlu0 %v915
    %v917 = vpop.xlane.xlu0 %916
    %v918 = vrcp.pop %v908
    %v919 = vrcp.pop %v911
    %v920 = vrcp.pop %v914
    %v921 = vrcp.pop %v917
    %v922 = vmul.f32 %v899, %v918
    %v923 = vmul.f32 %v901, %v919
    %v924 = vmul.f32 %v903, %v920
    %v925 = vmul.f32 %v905, %v921
    %v926 = vpack.c.bf16 %v923, %v922
    %v927 = vpack.c.bf16 %v925, %v924
    %929 = vrot.lane.b32.xlu0 %v523, 96
    %v930 = vpop.permute.xlu0 %929
    %v933 = vsel %vm620, %v926, 0
    %935 = vmatprep.subr.bf16.mxu0 0
    %936 = vmatpush1.bf16.msra.mxu0 0
    %937 = vmatprep.subr.bf16.mxu0 0
    %938 = vmatpush1.bf16.msra.mxu0 0
    %939 = vmatprep.subr.bf16.mxu0 0
    %940 = vmatpush1.bf16.msra.mxu0 0
    %941 = vmatprep.subr.bf16.mxu0 0
    %942 = vmatpush1.bf16.msra.mxu0 0
    %943 = vmatprep.subr.bf16.mxu0 0
    %944 = vmatpush1.bf16.msra.mxu0 0
    %945 = vmatprep.subr.bf16.mxu0 0
    %946 = vmatpush1.bf16.msra.mxu0 0
    %947 = vmatprep.subr.bf16.mxu0 0
    %948 = vmatpush1.bf16.msra.mxu0 0
    %949 = vmatprep.subr.bf16.mxu0 0
    %950 = vmatpush1.bf16.msra.mxu0 %v930
    %951 = vmatprep.subr.bf16.mxu0 0
    %952 = vmatpush2.bf16.msra.mxu0 0
    %953 = vmatprep.subr.bf16.mxu0 0
    %954 = vmatpush2.bf16.msra.mxu0 0
    %955 = vmatprep.subr.bf16.mxu0 0
    %956 = vmatpush2.bf16.msra.mxu0 0
    %957 = vmatprep.subr.bf16.mxu0 0
    %958 = vmatpush2.bf16.msra.mxu0 0
    %959 = vmatprep.subr.bf16.mxu0 0
    %960 = vmatpush2.bf16.msra.mxu0 0
    %961 = vmatprep.subr.bf16.mxu0 0
    %962 = vmatpush2.bf16.msra.mxu0 0
    %963 = vmatprep.subr.bf16.mxu0 0
    %964 = vmatpush2.bf16.msra.mxu0 0
    %965 = vmatprep.subr.bf16.mxu0 0
    %966 = vmatpush2.bf16.msra.mxu0 0
    %967 = vmatprep.mubr.bf16.mxu0 0
    %968 = vmatmul.mubr.bf16.gmra.mxu0 %v933
    %v969 = vpop.f32.mrf.mxu0
    %v970 = vadd.f32 0.0, %v969
    %v971 = vpop.f32.mrf.mxu0
    %v972 = vpop.f32.mrf.mxu0
    %v973 = vadd.f32 0.0, %v972
    %v974 = vpop.f32.mrf.mxu0
    %975 = vdwg.mxu0
    %977 = vrot.lane.b32.xlu0 %v524, 96
    %v978 = vpop.permute.xlu0 %977
    %v981 = vsel %vm620, %v927, 0
    %983 = vmatprep.subr.bf16.mxu0 0
    %984 = vmatpush1.bf16.msra.mxu0 0
    %985 = vmatprep.subr.bf16.mxu0 0
    %986 = vmatpush1.bf16.msra.mxu0 0
    %987 = vmatprep.subr.bf16.mxu0 0
    %988 = vmatpush1.bf16.msra.mxu0 0
    %989 = vmatprep.subr.bf16.mxu0 0
    %990 = vmatpush1.bf16.msra.mxu0 0
    %991 = vmatprep.subr.bf16.mxu0 0
    %992 = vmatpush1.bf16.msra.mxu0 0
    %993 = vmatprep.subr.bf16.mxu0 0
    %994 = vmatpush1.bf16.msra.mxu0 0
    %995 = vmatprep.subr.bf16.mxu0 0
    %996 = vmatpush1.bf16.msra.mxu0 0
    %997 = vmatprep.subr.bf16.mxu0 0
    %998 = vmatpush1.bf16.msra.mxu0 %v978
    %999 = vmatprep.subr.bf16.mxu0 0
    %1000 = vmatpush2.bf16.msra.mxu0 0
    %1001 = vmatprep.subr.bf16.mxu0 0
    %1002 = vmatpush2.bf16.msra.mxu0 0
    %1003 = vmatprep.subr.bf16.mxu0 0
    %1004 = vmatpush2.bf16.msra.mxu0 0
    %1005 = vmatprep.subr.bf16.mxu0 0
    %1006 = vmatpush2.bf16.msra.mxu0 0
    %1007 = vmatprep.subr.bf16.mxu0 0
    %1008 = vmatpush2.bf16.msra.mxu0 0
    %1009 = vmatprep.subr.bf16.mxu0 0
    %1010 = vmatpush2.bf16.msra.mxu0 0
    %1011 = vmatprep.subr.bf16.mxu0 0
    %1012 = vmatpush2.bf16.msra.mxu0 0
    %1013 = vmatprep.subr.bf16.mxu0 0
    %1014 = vmatpush2.bf16.msra.mxu0 0
    %1015 = vmatprep.mubr.bf16.mxu0 0
    %1016 = vmatmul.mubr.bf16.gmra.mxu0 %v981
    %v1017 = vpop.f32.mrf.mxu0
    %v1018 = vadd.f32 0.0, %v1017
    %v1019 = vpop.f32.mrf.mxu0
    %v1020 = vpop.f32.mrf.mxu0
    %v1021 = vadd.f32 0.0, %v1020
    %v1022 = vpop.f32.mrf.mxu0
    %1023 = vdwg.mxu0
    %v1024 = vpack.c.bf16 %v973, %v970
    %v1025 = vpack.c.bf16 %v1021, %v1018
    %v1028 = vunpack.c.l.b16 %v1024
    %v1029 = vunpack.c.h.b16 %v1024
    %v1030 = vunpack.c.l.b16 %v1025
    %v1031 = vunpack.c.h.b16 %v1025
    %v1032 = vpack.c.b16 %v1028, %v1028
    %v1033 = vpack.c.b16 %v1029, %v1029
    %v1034 = vpack.c.b16 %v1030, %v1030
    %v1035 = vpack.c.b16 %v1031, %v1031
    %1036 = vrot.lane.b32.xlu0 %v1032, 32
    %v1037 = vpop.permute.xlu0 %1036
    %1038 = vrot.lane.b32.xlu0 %v1033, 32
    %v1039 = vpop.permute.xlu0 %1038
    %1040 = vrot.lane.b32.xlu0 %v1034, 32
    %v1041 = vpop.permute.xlu0 %1040
    %1042 = vrot.lane.b32.xlu0 %v1035, 32
    %v1043 = vpop.permute.xlu0 %1042
    %vm1048 = vcmask 519424
    %1049 = vst.msk [vmem:[#allocation2] sm:$0xf] %vm1048, %v1037
    %1050 = vst.msk [vmem:[#allocation2 + $0x4] sm:$0xf] %vm1048, %v1039
    %1051 = vst.msk [vmem:[#allocation2 + $0x8] sm:$0xf] %vm1048, %v1041
    %1052 = vst.msk [vmem:[#allocation2 + $0xc] sm:$0xf] %vm1048, %v1043
    %1053 = vrot.lane.b32.xlu0 %v279, 64
    %v1054 = vpop.permute.xlu0 %1053
    %1055 = vrot.lane.b32.xlu0 %v401, 64
    %v1056 = vpop.permute.xlu0 %1055
    %v1058 = vsel %vm525, %v1054, 0
    %v1061 = vsel %vm525, %v1056, 0
    %1063 = vmatprep.subr.bf16.mxu0 0
    %1064 = vmatpush1.bf16.xpose.msra.mxu0 0
    %1065 = vmatprep.subr.bf16.mxu0 0
    %1066 = vmatpush1.bf16.xpose.msra.mxu0 0
    %1067 = vmatprep.subr.bf16.mxu0 0
    %1068 = vmatpush1.bf16.xpose.msra.mxu0 0
    %1069 = vmatprep.subr.bf16.mxu0 0
    %1070 = vmatpush1.bf16.xpose.msra.mxu0 0
    %1071 = vmatprep.subr.bf16.mxu0 0
    %1072 = vmatpush1.bf16.xpose.msra.mxu0 0
    %1073 = vmatprep.subr.bf16.mxu0 0
    %1074 = vmatpush1.bf16.xpose.msra.mxu0 0
    %1075 = vmatprep.subr.bf16.mxu0 0
    %1076 = vmatpush1.bf16.xpose.msra.mxu0 0
    %1077 = vmatprep.subr.bf16.mxu0 0
    %1078 = vmatpush1.bf16.xpose.msra.mxu0 %v1061
    %1079 = vmatprep.subr.bf16.mxu0 0
    %1080 = vmatpush2.bf16.xpose.msra.mxu0 0
    %1081 = vmatprep.subr.bf16.mxu0 0
    %1082 = vmatpush2.bf16.xpose.msra.mxu0 0
    %1083 = vmatprep.subr.bf16.mxu0 0
    %1084 = vmatpush2.bf16.xpose.msra.mxu0 0
    %1085 = vmatprep.subr.bf16.mxu0 0
    %1086 = vmatpush2.bf16.xpose.msra.mxu0 0
    %1087 = vmatprep.subr.bf16.mxu0 0
    %1088 = vmatpush2.bf16.xpose.msra.mxu0 0
    %1089 = vmatprep.subr.bf16.mxu0 0
    %1090 = vmatpush2.bf16.xpose.msra.mxu0 0
    %1091 = vmatprep.subr.bf16.mxu0 0
    %1092 = vmatpush2.bf16.xpose.msra.mxu0 0
    %1093 = vmatprep.subr.bf16.mxu0 0
    %1094 = vmatpush2.bf16.xpose.msra.mxu0 0
    %1095 = vmatprep.mubr.bf16.mxu0 0
    %1096 = vmatmul.mubr.bf16.gmra.mxu0 %v1058
    %v1097 = vpop.f32.mrf.mxu0
    %v1098 = vadd.f32 0.0, %v1097
    %v1099 = vpop.f32.mrf.mxu0
    %v1100 = vpop.f32.mrf.mxu0
    %v1101 = vadd.f32 0.0, %v1100
    %v1102 = vpop.f32.mrf.mxu0
    %1103 = vdwg.mxu0
    %1104 = vrot.lane.b32.xlu0 %v280, 64
    %v1105 = vpop.permute.xlu0 %1104
    %1106 = vrot.lane.b32.xlu0 %v402, 64
    %v1107 = vpop.permute.xlu0 %1106
    %v1109 = vsel %vm525, %v1105, 0
    %v1112 = vsel %vm525, %v1107, 0
    %1114 = vmatprep.subr.bf16.mxu0 0
    %1115 = vmatpush1.bf16.xpose.msra.mxu0 0
    %1116 = vmatprep.subr.bf16.mxu0 0
    %1117 = vmatpush1.bf16.xpose.msra.mxu0 0
    %1118 = vmatprep.subr.bf16.mxu0 0
    %1119 = vmatpush1.bf16.xpose.msra.mxu0 0
    %1120 = vmatprep.subr.bf16.mxu0 0
    %1121 = vmatpush1.bf16.xpose.msra.mxu0 0
    %1122 = vmatprep.subr.bf16.mxu0 0
    %1123 = vmatpush1.bf16.xpose.msra.mxu0 0
    %1124 = vmatprep.subr.bf16.mxu0 0
    %1125 = vmatpush1.bf16.xpose.msra.mxu0 0
    %1126 = vmatprep.subr.bf16.mxu0 0
    %1127 = vmatpush1.bf16.xpose.msra.mxu0 0
    %1128 = vmatprep.subr.bf16.mxu0 0
    %1129 = vmatpush1.bf16.xpose.msra.mxu0 %v1112
    %1130 = vmatprep.subr.bf16.mxu0 0
    %1131 = vmatpush2.bf16.xpose.msra.mxu0 0
    %1132 = vmatprep.subr.bf16.mxu0 0
    %1133 = vmatpush2.bf16.xpose.msra.mxu0 0
    %1134 = vmatprep.subr.bf16.mxu0 0
    %1135 = vmatpush2.bf16.xpose.msra.mxu0 0
    %1136 = vmatprep.subr.bf16.mxu0 0
    %1137 = vmatpush2.bf16.xpose.msra.mxu0 0
    %1138 = vmatprep.subr.bf16.mxu0 0
    %1139 = vmatpush2.bf16.xpose.msra.mxu0 0
    %1140 = vmatprep.subr.bf16.mxu0 0
    %1141 = vmatpush2.bf16.xpose.msra.mxu0 0
    %1142 = vmatprep.subr.bf16.mxu0 0
    %1143 = vmatpush2.bf16.xpose.msra.mxu0 0
    %1144 = vmatprep.subr.bf16.mxu0 0
    %1145 = vmatpush2.bf16.xpose.msra.mxu0 0
    %1146 = vmatprep.mubr.bf16.mxu0 0
    %1147 = vmatmul.mubr.bf16.gmra.mxu0 %v1109
    %v1148 = vpop.f32.mrf.mxu0
    %v1149 = vadd.f32 0.0, %v1148
    %v1150 = vpop.f32.mrf.mxu0
    %v1151 = vpop.f32.mrf.mxu0
    %v1152 = vadd.f32 0.0, %v1151
    %v1153 = vpop.f32.mrf.mxu0
    %1154 = vdwg.mxu0
    %v1155 = vsel %vm620, %v1098, -inf
    %1156 = vmax.xlane.f32.xlu0 %v1155
    %v1157 = vpop.xlane.xlu0 %1156
    %v1158 = vsel %vm620, %v1101, -inf
    %1159 = vmax.xlane.f32.xlu0 %v1158
    %v1160 = vpop.xlane.xlu0 %1159
    %v1161 = vsel %vm620, %v1149, -inf
    %1162 = vmax.xlane.f32.xlu0 %v1161
    %v1163 = vpop.xlane.xlu0 %1162
    %v1164 = vsel %vm620, %v1152, -inf
    %1165 = vmax.xlane.f32.xlu0 %v1164
    %v1166 = vpop.xlane.xlu0 %1165
    %v1167 = vsub.f32 %v1098, %v1157
    %v1168 = vsub.f32 %v1101, %v1160
    %v1169 = vsub.f32 %v1149, %v1163
    %v1170 = vsub.f32 %v1152, %v1166
    %v1171 = vmul.f32 %v1167, 1.442695
    %v1172 = vpow.pop %v1171
    %v1173 = vmul.f32 %v1168, 1.442695
    %v1174 = vpow.pop %v1173
    %v1175 = vmul.f32 %v1169, 1.442695
    %v1176 = vpow.pop %v1175
    %v1177 = vmul.f32 %v1170, 1.442695
    %v1178 = vpow.pop %v1177
    %v1179 = vsel %vm620, %v1172, 0.0
    %1180 = vadd.xlane.f32.xlu0 %v1179
    %v1181 = vpop.xlane.xlu0 %1180
    %v1182 = vsel %vm620, %v1174, 0.0
    %1183 = vadd.xlane.f32.xlu0 %v1182
    %v1184 = vpop.xlane.xlu0 %1183
    %v1185 = vsel %vm620, %v1176, 0.0
    %1186 = vadd.xlane.f32.xlu0 %v1185
    %v1187 = vpop.xlane.xlu0 %1186
    %v1188 = vsel %vm620, %v1178, 0.0
    %1189 = vadd.xlane.f32.xlu0 %v1188
    %v1190 = vpop.xlane.xlu0 %1189
    %v1191 = vrcp.pop %v1181
    %v1192 = vrcp.pop %v1184
    %v1193 = vrcp.pop %v1187
    %v1194 = vrcp.pop %v1190
    %v1195 = vmul.f32 %v1172, %v1191
    %v1196 = vmul.f32 %v1174, %v1192
    %v1197 = vmul.f32 %v1176, %v1193
    %v1198 = vmul.f32 %v1178, %v1194
    %v1199 = vpack.c.bf16 %v1196, %v1195
    %v1200 = vpack.c.bf16 %v1198, %v1197
    %1201 = vrot.lane.b32.xlu0 %v523, 64
    %v1202 = vpop.permute.xlu0 %1201
    %v1205 = vsel %vm620, %v1199, 0
    %1207 = vmatprep.subr.bf16.mxu0 0
    %1208 = vmatpush1.bf16.msra.mxu0 0
    %1209 = vmatprep.subr.bf16.mxu0 0
    %1210 = vmatpush1.bf16.msra.mxu0 0
    %1211 = vmatprep.subr.bf16.mxu0 0
    %1212 = vmatpush1.bf16.msra.mxu0 0
    %1213 = vmatprep.subr.bf16.mxu0 0
    %1214 = vmatpush1.bf16.msra.mxu0 0
    %1215 = vmatprep.subr.bf16.mxu0 0
    %1216 = vmatpush1.bf16.msra.mxu0 0
    %1217 = vmatprep.subr.bf16.mxu0 0
    %1218 = vmatpush1.bf16.msra.mxu0 0
    %1219 = vmatprep.subr.bf16.mxu0 0
    %1220 = vmatpush1.bf16.msra.mxu0 0
    %1221 = vmatprep.subr.bf16.mxu0 0
    %1222 = vmatpush1.bf16.msra.mxu0 %v1202
    %1223 = vmatprep.subr.bf16.mxu0 0
    %1224 = vmatpush2.bf16.msra.mxu0 0
    %1225 = vmatprep.subr.bf16.mxu0 0
    %1226 = vmatpush2.bf16.msra.mxu0 0
    %1227 = vmatprep.subr.bf16.mxu0 0
    %1228 = vmatpush2.bf16.msra.mxu0 0
    %1229 = vmatprep.subr.bf16.mxu0 0
    %1230 = vmatpush2.bf16.msra.mxu0 0
    %1231 = vmatprep.subr.bf16.mxu0 0
    %1232 = vmatpush2.bf16.msra.mxu0 0
    %1233 = vmatprep.subr.bf16.mxu0 0
    %1234 = vmatpush2.bf16.msra.mxu0 0
    %1235 = vmatprep.subr.bf16.mxu0 0
    %1236 = vmatpush2.bf16.msra.mxu0 0
    %1237 = vmatprep.subr.bf16.mxu0 0
    %1238 = vmatpush2.bf16.msra.mxu0 0
    %1239 = vmatprep.mubr.bf16.mxu0 0
    %1240 = vmatmul.mubr.bf16.gmra.mxu0 %v1205
    %v1241 = vpop.f32.mrf.mxu0
    %v1242 = vadd.f32 0.0, %v1241
    %v1243 = vpop.f32.mrf.mxu0
    %v1244 = vpop.f32.mrf.mxu0
    %v1245 = vadd.f32 0.0, %v1244
    %v1246 = vpop.f32.mrf.mxu0
    %1247 = vdwg.mxu0
    %1248 = vrot.lane.b32.xlu0 %v524, 64
    %v1249 = vpop.permute.xlu0 %1248
    %v1252 = vsel %vm620, %v1200, 0
    %1254 = vmatprep.subr.bf16.mxu0 0
    %1255 = vmatpush1.bf16.msra.mxu0 0
    %1256 = vmatprep.subr.bf16.mxu0 0
    %1257 = vmatpush1.bf16.msra.mxu0 0
    %1258 = vmatprep.subr.bf16.mxu0 0
    %1259 = vmatpush1.bf16.msra.mxu0 0
    %1260 = vmatprep.subr.bf16.mxu0 0
    %1261 = vmatpush1.bf16.msra.mxu0 0
    %1262 = vmatprep.subr.bf16.mxu0 0
    %1263 = vmatpush1.bf16.msra.mxu0 0
    %1264 = vmatprep.subr.bf16.mxu0 0
    %1265 = vmatpush1.bf16.msra.mxu0 0
    %1266 = vmatprep.subr.bf16.mxu0 0
    %1267 = vmatpush1.bf16.msra.mxu0 0
    %1268 = vmatprep.subr.bf16.mxu0 0
    %1269 = vmatpush1.bf16.msra.mxu0 %v1249
    %1270 = vmatprep.subr.bf16.mxu0 0
    %1271 = vmatpush2.bf16.msra.mxu0 0
    %1272 = vmatprep.subr.bf16.mxu0 0
    %1273 = vmatpush2.bf16.msra.mxu0 0
    %1274 = vmatprep.subr.bf16.mxu0 0
    %1275 = vmatpush2.bf16.msra.mxu0 0
    %1276 = vmatprep.subr.bf16.mxu0 0
    %1277 = vmatpush2.bf16.msra.mxu0 0
    %1278 = vmatprep.subr.bf16.mxu0 0
    %1279 = vmatpush2.bf16.msra.mxu0 0
    %1280 = vmatprep.subr.bf16.mxu0 0
    %1281 = vmatpush2.bf16.msra.mxu0 0
    %1282 = vmatprep.subr.bf16.mxu0 0
    %1283 = vmatpush2.bf16.msra.mxu0 0
    %1284 = vmatprep.subr.bf16.mxu0 0
    %1285 = vmatpush2.bf16.msra.mxu0 0
    %1286 = vmatprep.mubr.bf16.mxu0 0
    %1287 = vmatmul.mubr.bf16.gmra.mxu0 %v1252
    %v1288 = vpop.f32.mrf.mxu0
    %v1289 = vadd.f32 0.0, %v1288
    %v1290 = vpop.f32.mrf.mxu0
    %v1291 = vpop.f32.mrf.mxu0
    %v1292 = vadd.f32 0.0, %v1291
    %v1293 = vpop.f32.mrf.mxu0
    %1294 = vdwg.mxu0
    %v1295 = vpack.c.bf16 %v1245, %v1242
    %v1296 = vpack.c.bf16 %v1292, %v1289
    %v1299 = vunpack.c.l.b16 %v1295
    %v1300 = vunpack.c.h.b16 %v1295
    %v1301 = vunpack.c.l.b16 %v1296
    %v1302 = vunpack.c.h.b16 %v1296
    %v1303 = vpack.c.b16 %v1299, %v1299
    %v1304 = vpack.c.b16 %v1300, %v1300
    %v1305 = vpack.c.b16 %v1301, %v1301
    %v1306 = vpack.c.b16 %v1302, %v1302
    %1307 = vrot.lane.b32.xlu0 %v1303, 64
    %v1308 = vpop.permute.xlu0 %1307
    %1309 = vrot.lane.b32.xlu0 %v1304, 64
    %v1310 = vpop.permute.xlu0 %1309
    %1311 = vrot.lane.b32.xlu0 %v1305, 64
    %v1312 = vpop.permute.xlu0 %1311
    %1313 = vrot.lane.b32.xlu0 %v1306, 64
    %v1314 = vpop.permute.xlu0 %1313
    %vm1319 = vcmask 781824
    %1320 = vst.msk [vmem:[#allocation2] sm:$0xf] %vm1319, %v1308
    %1321 = vst.msk [vmem:[#allocation2 + $0x4] sm:$0xf] %vm1319, %v1310
    %1322 = vst.msk [vmem:[#allocation2 + $0x8] sm:$0xf] %vm1319, %v1312
    %1323 = vst.msk [vmem:[#allocation2 + $0xc] sm:$0xf] %vm1319, %v1314
    %1324 = vrot.lane.b32.xlu0 %v279, 32
    %v1325 = vpop.permute.xlu0 %1324
    %1326 = vrot.lane.b32.xlu0 %v401, 32
    %v1327 = vpop.permute.xlu0 %1326
    %v1329 = vsel %vm525, %v1325, 0
    %v1332 = vsel %vm525, %v1327, 0
    %1334 = vmatprep.subr.bf16.mxu0 0
    %1335 = vmatpush1.bf16.xpose.msra.mxu0 0
    %1336 = vmatprep.subr.bf16.mxu0 0
    %1337 = vmatpush1.bf16.xpose.msra.mxu0 0
    %1338 = vmatprep.subr.bf16.mxu0 0
    %1339 = vmatpush1.bf16.xpose.msra.mxu0 0
    %1340 = vmatprep.subr.bf16.mxu0 0
    %1341 = vmatpush1.bf16.xpose.msra.mxu0 0
    %1342 = vmatprep.subr.bf16.mxu0 0
    %1343 = vmatpush1.bf16.xpose.msra.mxu0 0
    %1344 = vmatprep.subr.bf16.mxu0 0
    %1345 = vmatpush1.bf16.xpose.msra.mxu0 0
    %1346 = vmatprep.subr.bf16.mxu0 0
    %1347 = vmatpush1.bf16.xpose.msra.mxu0 0
    %1348 = vmatprep.subr.bf16.mxu0 0
    %1349 = vmatpush1.bf16.xpose.msra.mxu0 %v1332
    %1350 = vmatprep.subr.bf16.mxu0 0
    %1351 = vmatpush2.bf16.xpose.msra.mxu0 0
    %1352 = vmatprep.subr.bf16.mxu0 0
    %1353 = vmatpush2.bf16.xpose.msra.mxu0 0
    %1354 = vmatprep.subr.bf16.mxu0 0
    %1355 = vmatpush2.bf16.xpose.msra.mxu0 0
    %1356 = vmatprep.subr.bf16.mxu0 0
    %1357 = vmatpush2.bf16.xpose.msra.mxu0 0
    %1358 = vmatprep.subr.bf16.mxu0 0
    %1359 = vmatpush2.bf16.xpose.msra.mxu0 0
    %1360 = vmatprep.subr.bf16.mxu0 0
    %1361 = vmatpush2.bf16.xpose.msra.mxu0 0
    %1362 = vmatprep.subr.bf16.mxu0 0
    %1363 = vmatpush2.bf16.xpose.msra.mxu0 0
    %1364 = vmatprep.subr.bf16.mxu0 0
    %1365 = vmatpush2.bf16.xpose.msra.mxu0 0
    %1366 = vmatprep.mubr.bf16.mxu0 0
    %1367 = vmatmul.mubr.bf16.gmra.mxu0 %v1329
    %v1368 = vpop.f32.mrf.mxu0
    %v1369 = vadd.f32 0.0, %v1368
    %v1370 = vpop.f32.mrf.mxu0
    %v1371 = vpop.f32.mrf.mxu0
    %v1372 = vadd.f32 0.0, %v1371
    %v1373 = vpop.f32.mrf.mxu0
    %1374 = vdwg.mxu0
    %1375 = vrot.lane.b32.xlu0 %v280, 32
    %v1376 = vpop.permute.xlu0 %1375
    %1377 = vrot.lane.b32.xlu0 %v402, 32
    %v1378 = vpop.permute.xlu0 %1377
    %v1380 = vsel %vm525, %v1376, 0
    %v1383 = vsel %vm525, %v1378, 0
    %1385 = vmatprep.subr.bf16.mxu0 0
    %1386 = vmatpush1.bf16.xpose.msra.mxu0 0
    %1387 = vmatprep.subr.bf16.mxu0 0
    %1388 = vmatpush1.bf16.xpose.msra.mxu0 0
    %1389 = vmatprep.subr.bf16.mxu0 0
    %1390 = vmatpush1.bf16.xpose.msra.mxu0 0
    %1391 = vmatprep.subr.bf16.mxu0 0
    %1392 = vmatpush1.bf16.xpose.msra.mxu0 0
    %1393 = vmatprep.subr.bf16.mxu0 0
    %1394 = vmatpush1.bf16.xpose.msra.mxu0 0
    %1395 = vmatprep.subr.bf16.mxu0 0
    %1396 = vmatpush1.bf16.xpose.msra.mxu0 0
    %1397 = vmatprep.subr.bf16.mxu0 0
    %1398 = vmatpush1.bf16.xpose.msra.mxu0 0
    %1399 = vmatprep.subr.bf16.mxu0 0
    %1400 = vmatpush1.bf16.xpose.msra.mxu0 %v1383
    %1401 = vmatprep.subr.bf16.mxu0 0
    %1402 = vmatpush2.bf16.xpose.msra.mxu0 0
    %1403 = vmatprep.subr.bf16.mxu0 0
    %1404 = vmatpush2.bf16.xpose.msra.mxu0 0
    %1405 = vmatprep.subr.bf16.mxu0 0
    %1406 = vmatpush2.bf16.xpose.msra.mxu0 0
    %1407 = vmatprep.subr.bf16.mxu0 0
    %1408 = vmatpush2.bf16.xpose.msra.mxu0 0
    %1409 = vmatprep.subr.bf16.mxu0 0
    %1410 = vmatpush2.bf16.xpose.msra.mxu0 0
    %1411 = vmatprep.subr.bf16.mxu0 0
    %1412 = vmatpush2.bf16.xpose.msra.mxu0 0
    %1413 = vmatprep.subr.bf16.mxu0 0
    %1414 = vmatpush2.bf16.xpose.msra.mxu0 0
    %1415 = vmatprep.subr.bf16.mxu0 0
    %1416 = vmatpush2.bf16.xpose.msra.mxu0 0
    %1417 = vmatprep.mubr.bf16.mxu0 0
    %1418 = vmatmul.mubr.bf16.gmra.mxu0 %v1380
    %v1419 = vpop.f32.mrf.mxu0
    %v1420 = vadd.f32 0.0, %v1419
    %v1421 = vpop.f32.mrf.mxu0
    %v1422 = vpop.f32.mrf.mxu0
    %v1423 = vadd.f32 0.0, %v1422
    %v1424 = vpop.f32.mrf.mxu0
    %1425 = vdwg.mxu0
    %v1426 = vsel %vm620, %v1369, -inf
    %1427 = vmax.xlane.f32.xlu0 %v1426
    %v1428 = vpop.xlane.xlu0 %1427
    %v1429 = vsel %vm620, %v1372, -inf
    %1430 = vmax.xlane.f32.xlu0 %v1429
    %v1431 = vpop.xlane.xlu0 %1430
    %v1432 = vsel %vm620, %v1420, -inf
    %1433 = vmax.xlane.f32.xlu0 %v1432
    %v1434 = vpop.xlane.xlu0 %1433
    %v1435 = vsel %vm620, %v1423, -inf
    %1436 = vmax.xlane.f32.xlu0 %v1435
    %v1437 = vpop.xlane.xlu0 %1436
    %v1438 = vsub.f32 %v1369, %v1428
    %v1439 = vsub.f32 %v1372, %v1431
    %v1440 = vsub.f32 %v1420, %v1434
    %v1441 = vsub.f32 %v1423, %v1437
    %v1442 = vmul.f32 %v1438, 1.442695
    %v1443 = vpow.pop %v1442
    %v1444 = vmul.f32 %v1439, 1.442695
    %v1445 = vpow.pop %v1444
    %v1446 = vmul.f32 %v1440, 1.442695
    %v1447 = vpow.pop %v1446
    %v1448 = vmul.f32 %v1441, 1.442695
    %v1449 = vpow.pop %v1448
    %v1450 = vsel %vm620, %v1443, 0.0
    %1451 = vadd.xlane.f32.xlu0 %v1450
    %v1452 = vpop.xlane.xlu0 %1451
    %v1453 = vsel %vm620, %v1445, 0.0
    %1454 = vadd.xlane.f32.xlu0 %v1453
    %v1455 = vpop.xlane.xlu0 %1454
    %v1456 = vsel %vm620, %v1447, 0.0
    %1457 = vadd.xlane.f32.xlu0 %v1456
    %v1458 = vpop.xlane.xlu0 %1457
    %v1459 = vsel %vm620, %v1449, 0.0
    %1460 = vadd.xlane.f32.xlu0 %v1459
    %v1461 = vpop.xlane.xlu0 %1460
    %v1462 = vrcp.pop %v1452
    %v1463 = vrcp.pop %v1455
    %v1464 = vrcp.pop %v1458
    %v1465 = vrcp.pop %v1461
    %v1466 = vmul.f32 %v1443, %v1462
    %v1467 = vmul.f32 %v1445, %v1463
    %v1468 = vmul.f32 %v1447, %v1464
    %v1469 = vmul.f32 %v1449, %v1465
    %v1470 = vpack.c.bf16 %v1467, %v1466
    %v1471 = vpack.c.bf16 %v1469, %v1468
    %1472 = vrot.lane.b32.xlu0 %v523, 32
    %v1473 = vpop.permute.xlu0 %1472
    %v1476 = vsel %vm620, %v1470, 0
    %1478 = vmatprep.subr.bf16.mxu0 0
    %1479 = vmatpush1.bf16.msra.mxu0 0
    %1480 = vmatprep.subr.bf16.mxu0 0
    %1481 = vmatpush1.bf16.msra.mxu0 0
    %1482 = vmatprep.subr.bf16.mxu0 0
    %1483 = vmatpush1.bf16.msra.mxu0 0
    %1484 = vmatprep.subr.bf16.mxu0 0
    %1485 = vmatpush1.bf16.msra.mxu0 0
    %1486 = vmatprep.subr.bf16.mxu0 0
    %1487 = vmatpush1.bf16.msra.mxu0 0
    %1488 = vmatprep.subr.bf16.mxu0 0
    %1489 = vmatpush1.bf16.msra.mxu0 0
    %1490 = vmatprep.subr.bf16.mxu0 0
    %1491 = vmatpush1.bf16.msra.mxu0 0
    %1492 = vmatprep.subr.bf16.mxu0 0
    %1493 = vmatpush1.bf16.msra.mxu0 %v1473
    %1494 = vmatprep.subr.bf16.mxu0 0
    %1495 = vmatpush2.bf16.msra.mxu0 0
    %1496 = vmatprep.subr.bf16.mxu0 0
    %1497 = vmatpush2.bf16.msra.mxu0 0
    %1498 = vmatprep.subr.bf16.mxu0 0
    %1499 = vmatpush2.bf16.msra.mxu0 0
    %1500 = vmatprep.subr.bf16.mxu0 0
    %1501 = vmatpush2.bf16.msra.mxu0 0
    %1502 = vmatprep.subr.bf16.mxu0 0
    %1503 = vmatpush2.bf16.msra.mxu0 0
    %1504 = vmatprep.subr.bf16.mxu0 0
    %1505 = vmatpush2.bf16.msra.mxu0 0
    %1506 = vmatprep.subr.bf16.mxu0 0
    %1507 = vmatpush2.bf16.msra.mxu0 0
    %1508 = vmatprep.subr.bf16.mxu0 0
    %1509 = vmatpush2.bf16.msra.mxu0 0
    %1510 = vmatprep.mubr.bf16.mxu0 0
    %1511 = vmatmul.mubr.bf16.gmra.mxu0 %v1476
    %v1512 = vpop.f32.mrf.mxu0
    %v1513 = vadd.f32 0.0, %v1512
    %v1514 = vpop.f32.mrf.mxu0
    %v1515 = vpop.f32.mrf.mxu0
    %v1516 = vadd.f32 0.0, %v1515
    %v1517 = vpop.f32.mrf.mxu0
    %1518 = vdwg.mxu0
    %1519 = vrot.lane.b32.xlu0 %v524, 32
    %v1520 = vpop.permute.xlu0 %1519
    %v1523 = vsel %vm620, %v1471, 0
    %1525 = vmatprep.subr.bf16.mxu0 0
    %1526 = vmatpush1.bf16.msra.mxu0 0
    %1527 = vmatprep.subr.bf16.mxu0 0
    %1528 = vmatpush1.bf16.msra.mxu0 0
    %1529 = vmatprep.subr.bf16.mxu0 0
    %1530 = vmatpush1.bf16.msra.mxu0 0
    %1531 = vmatprep.subr.bf16.mxu0 0
    %1532 = vmatpush1.bf16.msra.mxu0 0
    %1533 = vmatprep.subr.bf16.mxu0 0
    %1534 = vmatpush1.bf16.msra.mxu0 0
    %1535 = vmatprep.subr.bf16.mxu0 0
    %1536 = vmatpush1.bf16.msra.mxu0 0
    %1537 = vmatprep.subr.bf16.mxu0 0
    %1538 = vmatpush1.bf16.msra.mxu0 0
    %1539 = vmatprep.subr.bf16.mxu0 0
    %1540 = vmatpush1.bf16.msra.mxu0 %v1520
    %1541 = vmatprep.subr.bf16.mxu0 0
    %1542 = vmatpush2.bf16.msra.mxu0 0
    %1543 = vmatprep.subr.bf16.mxu0 0
    %1544 = vmatpush2.bf16.msra.mxu0 0
    %1545 = vmatprep.subr.bf16.mxu0 0
    %1546 = vmatpush2.bf16.msra.mxu0 0
    %1547 = vmatprep.subr.bf16.mxu0 0
    %1548 = vmatpush2.bf16.msra.mxu0 0
    %1549 = vmatprep.subr.bf16.mxu0 0
    %1550 = vmatpush2.bf16.msra.mxu0 0
    %1551 = vmatprep.subr.bf16.mxu0 0
    %1552 = vmatpush2.bf16.msra.mxu0 0
    %1553 = vmatprep.subr.bf16.mxu0 0
    %1554 = vmatpush2.bf16.msra.mxu0 0
    %1555 = vmatprep.subr.bf16.mxu0 0
    %1556 = vmatpush2.bf16.msra.mxu0 0
    %1557 = vmatprep.mubr.bf16.mxu0 0
    %1558 = vmatmul.mubr.bf16.gmra.mxu0 %v1523
    %v1559 = vpop.f32.mrf.mxu0
    %v1560 = vadd.f32 0.0, %v1559
    %v1561 = vpop.f32.mrf.mxu0
    %v1562 = vpop.f32.mrf.mxu0
    %v1563 = vadd.f32 0.0, %v1562
    %v1564 = vpop.f32.mrf.mxu0
    %1565 = vdwg.mxu0
    %v1566 = vpack.c.bf16 %v1516, %v1513
    %v1567 = vpack.c.bf16 %v1563, %v1560
    %v1570 = vunpack.c.l.b16 %v1566
    %v1571 = vunpack.c.h.b16 %v1566
    %v1572 = vunpack.c.l.b16 %v1567
    %v1573 = vunpack.c.h.b16 %v1567
    %v1574 = vpack.c.b16 %v1570, %v1570
    %v1575 = vpack.c.b16 %v1571, %v1571
    %v1576 = vpack.c.b16 %v1572, %v1572
    %v1577 = vpack.c.b16 %v1573, %v1573
    %1578 = vrot.lane.b32.xlu0 %v1574, 96
    %v1579 = vpop.permute.xlu0 %1578
    %1580 = vrot.lane.b32.xlu0 %v1575, 96
    %v1581 = vpop.permute.xlu0 %1580
    %1582 = vrot.lane.b32.xlu0 %v1576, 96
    %v1583 = vpop.permute.xlu0 %1582
    %1584 = vrot.lane.b32.xlu0 %v1577, 96
    %v1585 = vpop.permute.xlu0 %1584
    %vm1590 = vcmask 1044224
    %1591 = vst.msk [vmem:[#allocation2] sm:$0xf] %vm1590, %v1579
    %1592 = vst.msk [vmem:[#allocation2 + $0x4] sm:$0xf] %vm1590, %v1581
    %1593 = vst.msk [vmem:[#allocation2 + $0x8] sm:$0xf] %vm1590, %v1583
    %1594 = vst.msk [vmem:[#allocation2 + $0xc] sm:$0xf] %vm1590, %v1585
    %v1595 = vld [vmem:[#allocation2] sm:$0xf]
    %v1596 = vld [vmem:[#allocation2 + $0x4] sm:$0xf]
    %v1597 = vld [vmem:[#allocation2 + $0x8] sm:$0xf]
    %v1598 = vld [vmem:[#allocation2 + $0xc] sm:$0xf]
    %v1599 = vld [vmem:[#allocation11] sm:$0xf]
    %v1600 = vld [vmem:[#allocation11 + $0x4] sm:$0xf]
    %v1601 = vld [vmem:[#allocation11 + $0x8] sm:$0xf]
    %v1602 = vld [vmem:[#allocation11 + $0xc] sm:$0xf]
    %v1603 = vld [vmem:[#allocation11 + $0x10] sm:$0xf]
    %v1604 = vld [vmem:[#allocation11 + $0x14] sm:$0xf]
    %v1605 = vld [vmem:[#allocation11 + $0x18] sm:$0xf]
    %v1606 = vld [vmem:[#allocation11 + $0x1c] sm:$0xf]
    %v1607 = vld [vmem:[#allocation11 + $0x20] sm:$0xf]
    %v1608 = vld [vmem:[#allocation11 + $0x24] sm:$0xf]
    %v1609 = vld [vmem:[#allocation11 + $0x28] sm:$0xf]
    %v1610 = vld [vmem:[#allocation11 + $0x2c] sm:$0xf]
    %v1611 = vld [vmem:[#allocation11 + $0x30] sm:$0xf]
    %v1612 = vld [vmem:[#allocation11 + $0x34] sm:$0xf]
    %v1613 = vld [vmem:[#allocation11 + $0x38] sm:$0xf]
    %v1614 = vld [vmem:[#allocation11 + $0x3c] sm:$0xf]
    %v1615 = vld [vmem:[%s8] sm:$0x1]
    %v1617 = vlaneseq
    %v1618 = vshrl.u32 %v1617, 7
    %v1619 = vsub.s32 0, %v1618
    %v1620 = vrot.slane %v1615, %v1619
    %v1626 = vunpack.c.l.b16 %v1595
    %v1627 = vunpack.c.l.b16 %v1596
    %v1628 = vunpack.c.l.b16 %v1597
    %v1629 = vunpack.c.l.b16 %v1598
    %v1630 = vpack.c.b16 %v1627, %v1626
    %v1631 = vpack.c.b16 %v1629, %v1628
    %v1650 = vunpack.c.l.b16 %v1599
    %v1651 = vunpack.c.l.b16 %v1600
    %v1652 = vunpack.c.l.b16 %v1601
    %v1653 = vunpack.c.l.b16 %v1602
    %v1654 = vunpack.c.l.b16 %v1603
    %v1655 = vunpack.c.l.b16 %v1604
    %v1656 = vunpack.c.l.b16 %v1605
    %v1657 = vunpack.c.l.b16 %v1606
    %v1658 = vunpack.c.l.b16 %v1607
    %v1659 = vunpack.c.l.b16 %v1608
    %v1660 = vunpack.c.l.b16 %v1609
    %v1661 = vunpack.c.l.b16 %v1610
    %v1662 = vunpack.c.l.b16 %v1611
    %v1663 = vunpack.c.l.b16 %v1612
    %v1664 = vunpack.c.l.b16 %v1613
    %v1665 = vunpack.c.l.b16 %v1614
    %v1666 = vpack.c.b16 %v1651, %v1650
    %v1667 = vpack.c.b16 %v1653, %v1652
    %v1668 = vpack.c.b16 %v1655, %v1654
    %v1669 = vpack.c.b16 %v1657, %v1656
    %v1670 = vpack.c.b16 %v1659, %v1658
    %v1671 = vpack.c.b16 %v1661, %v1660
    %v1672 = vpack.c.b16 %v1663, %v1662
    %v1673 = vpack.c.b16 %v1665, %v1664
    %1682 = vmatprep.subr.bf16.mxu0 0
    %1683 = vmatpush1.bf16.msra.mxu0 %v1673
    %1684 = vmatprep.subr.bf16.mxu0 0
    %1685 = vmatpush1.bf16.msra.mxu0 %v1672
    %1686 = vmatprep.subr.bf16.mxu0 0
    %1687 = vmatpush1.bf16.msra.mxu0 %v1671
    %1688 = vmatprep.subr.bf16.mxu0 0
    %1689 = vmatpush1.bf16.msra.mxu0 %v1670
    %1690 = vmatprep.subr.bf16.mxu0 0
    %1691 = vmatpush1.bf16.msra.mxu0 %v1669
    %1692 = vmatprep.subr.bf16.mxu0 0
    %1693 = vmatpush1.bf16.msra.mxu0 %v1668
    %1694 = vmatprep.subr.bf16.mxu0 0
    %1695 = vmatpush1.bf16.msra.mxu0 %v1667
    %1696 = vmatprep.subr.bf16.mxu0 0
    %1697 = vmatpush1.bf16.msra.mxu0 %v1666
    %1698 = vmatprep.subr.bf16.mxu0 0
    %1699 = vmatpush2.bf16.msra.mxu0 0
    %1700 = vmatprep.subr.bf16.mxu0 0
    %1701 = vmatpush2.bf16.msra.mxu0 0
    %1702 = vmatprep.subr.bf16.mxu0 0
    %1703 = vmatpush2.bf16.msra.mxu0 0
    %1704 = vmatprep.subr.bf16.mxu0 0
    %1705 = vmatpush2.bf16.msra.mxu0 0
    %1706 = vmatprep.subr.bf16.mxu0 0
    %1707 = vmatpush2.bf16.msra.mxu0 0
    %1708 = vmatprep.subr.bf16.mxu0 0
    %1709 = vmatpush2.bf16.msra.mxu0 0
    %1710 = vmatprep.subr.bf16.mxu0 0
    %1711 = vmatpush2.bf16.msra.mxu0 0
    %1712 = vmatprep.subr.bf16.mxu0 0
    %1713 = vmatpush2.bf16.msra.mxu0 0
    %1714 = vmatprep.mubr.bf16.mxu0 0
    %1715 = vmatmul.mubr.bf16.gmra.mxu0 %v1630
    %v1716 = vpop.f32.mrf.mxu0
    %v1717 = vadd.f32 %v1620, %v1716
    %v1718 = vpop.f32.mrf.mxu0
    %v1719 = vpop.f32.mrf.mxu0
    %v1720 = vadd.f32 %v1620, %v1719
    %v1721 = vpop.f32.mrf.mxu0
    %1722 = vmatprep.mubr.bf16.mxu0 0
    %1723 = vmatmul.mubr.bf16.gmra.mxu0 %v1631
    %v1724 = vpop.f32.mrf.mxu0
    %v1725 = vadd.f32 %v1620, %v1724
    %v1726 = vpop.f32.mrf.mxu0
    %v1727 = vpop.f32.mrf.mxu0
    %v1728 = vadd.f32 %v1620, %v1727
    %v1729 = vpop.f32.mrf.mxu0
    %1730 = vdwg.mxu0
    %v1731 = vadd.f32 %v153, %v1717
    %v1732 = vadd.f32 %v154, %v1720
    %v1733 = vadd.f32 %v155, %v1725
    %v1734 = vadd.f32 %v156, %v1728
    %v1735 = vld [vmem:[%s13] sm:$0x1]
    %v1736 = vld [vmem:[%s14] sm:$0x1]
    %1737 = vadd.xlane.f32.xlu0 %v1731
    %v1738 = vpop.xlane.xlu0 %1737
    %1739 = vadd.xlane.f32.xlu0 %v1732
    %v1740 = vpop.xlane.xlu0 %1739
    %1741 = vadd.xlane.f32.xlu0 %v1733
    %v1742 = vpop.xlane.xlu0 %1741
    %1743 = vadd.xlane.f32.xlu0 %v1734
    %v1744 = vpop.xlane.xlu0 %1743
    %v1745 = vrcp.pop 128.0
    %v1746 = vmul.f32 %v1738, %v1745
    %v1747 = vmul.f32 %v1740, %v1745
    %v1748 = vmul.f32 %v1742, %v1745
    %v1749 = vmul.f32 %v1744, %v1745
    %v1750 = vsub.f32 %v1731, %v1746
    %v1751 = vsub.f32 %v1732, %v1747
    %v1752 = vsub.f32 %v1733, %v1748
    %v1753 = vsub.f32 %v1734, %v1749
    %v1754 = vmul.f32 %v1750, %v1750
    %v1755 = vmul.f32 %v1751, %v1751
    %v1756 = vmul.f32 %v1752, %v1752
    %v1757 = vmul.f32 %v1753, %v1753
    %1758 = vadd.xlane.f32.xlu0 %v1754
    %v1759 = vpop.xlane.xlu0 %1758
    %1760 = vadd.xlane.f32.xlu0 %v1755
    %v1761 = vpop.xlane.xlu0 %1760
    %1762 = vadd.xlane.f32.xlu0 %v1756
    %v1763 = vpop.xlane.xlu0 %1762
    %1764 = vadd.xlane.f32.xlu0 %v1757
    %v1765 = vpop.xlane.xlu0 %1764
    %v1766 = vmul.f32 %v1759, %v1745
    %v1767 = vmul.f32 %v1761, %v1745
    %v1768 = vmul.f32 %v1763, %v1745
    %v1769 = vmul.f32 %v1765, %v1745
    %v1770 = vadd.f32 %v1766, 1e-05
    %v1771 = vadd.f32 %v1767, 1e-05
    %v1772 = vadd.f32 %v1768, 1e-05
    %v1773 = vadd.f32 %v1769, 1e-05
    %v1774 = vrsqrt.pop %v1770
    %v1775 = vrsqrt.pop %v1771
    %v1776 = vrsqrt.pop %v1772
    %v1777 = vrsqrt.pop %v1773
    %v1778 = vmul.f32 %v1750, %v1774
    %v1779 = vmul.f32 %v1751, %v1775
    %v1780 = vmul.f32 %v1752, %v1776
    %v1781 = vmul.f32 %v1753, %v1777
    %v1783 = vlaneseq
    %v1784 = vshrl.u32 %v1783, 7
    %v1785 = vsub.s32 0, %v1784
    %v1786 = vrot.slane %v1735, %v1785
    %v1788 = vmul.f32 %v1786, %v1778
    %v1789 = vmul.f32 %v1786, %v1779
    %v1790 = vmul.f32 %v1786, %v1780
    %v1791 = vmul.f32 %v1786, %v1781
    %v1793 = vlaneseq
    %v1794 = vshrl.u32 %v1793, 7
    %v1795 = vsub.s32 0, %v1794
    %v1796 = vrot.slane %v1736, %v1795
    %v1798 = vadd.f32 %v1788, %v1796
    %v1799 = vadd.f32 %v1789, %v1796
    %v1800 = vadd.f32 %v1790, %v1796
    %v1801 = vadd.f32 %v1791, %v1796
    %v1802 = vpack.c.bf16 %v1799, %v1798
    %v1803 = vpack.c.bf16 %v1801, %v1800
    %v1804 = vld [vmem:[#allocation12] sm:$0xff]
    %v1805 = vld [vmem:[#allocation12 + $0x8] sm:$0xff]
    %v1806 = vld [vmem:[#allocation12 + $0x10] sm:$0xff]
    %v1807 = vld [vmem:[#allocation12 + $0x18] sm:$0xff]
    %v1808 = vld [vmem:[#allocation12 + $0x20] sm:$0xff]
    %v1809 = vld [vmem:[#allocation12 + $0x28] sm:$0xff]
    %v1810 = vld [vmem:[#allocation12 + $0x30] sm:$0xff]
    %v1811 = vld [vmem:[#allocation12 + $0x38] sm:$0xff]
    %v1812 = vld [vmem:[#allocation12 + $0x40] sm:$0xff]
    %v1813 = vld [vmem:[#allocation12 + $0x48] sm:$0xff]
    %v1814 = vld [vmem:[#allocation12 + $0x50] sm:$0xff]
    %v1815 = vld [vmem:[#allocation12 + $0x58] sm:$0xff]
    %v1816 = vld [vmem:[#allocation12 + $0x60] sm:$0xff]
    %v1817 = vld [vmem:[#allocation12 + $0x68] sm:$0xff]
    %v1818 = vld [vmem:[#allocation12 + $0x70] sm:$0xff]
    %v1819 = vld [vmem:[#allocation12 + $0x78] sm:$0xff]
    %v1820 = vld [vmem:[%s10] sm:$0x3]
    %v1822 = vlaneseq
    %v1823 = vshrl.u32 %v1822, 7
    %v1824 = vsub.s32 0, %v1823
    %v1825 = vrot.slane %v1820, %v1824
    %v1826 = vlaneseq
    %v1827 = vshrl.u32 %v1826, 7
    %v1828 = vsub.s32 1, %v1827
    %v1829 = vrot.slane %v1820, %v1828
    %v1848 = vunpack.c.l.b16 %v1804
    %v1849 = vunpack.c.h.b16 %v1804
    %v1850 = vunpack.c.l.b16 %v1805
    %v1851 = vunpack.c.h.b16 %v1805
    %v1852 = vunpack.c.l.b16 %v1806
    %v1853 = vunpack.c.h.b16 %v1806
    %v1854 = vunpack.c.l.b16 %v1807
    %v1855 = vunpack.c.h.b16 %v1807
    %v1856 = vunpack.c.l.b16 %v1808
    %v1857 = vunpack.c.h.b16 %v1808
    %v1858 = vunpack.c.l.b16 %v1809
    %v1859 = vunpack.c.h.b16 %v1809
    %v1860 = vunpack.c.l.b16 %v1810
    %v1861 = vunpack.c.h.b16 %v1810
    %v1862 = vunpack.c.l.b16 %v1811
    %v1863 = vunpack.c.h.b16 %v1811
    %v1864 = vunpack.c.l.b16 %v1812
    %v1865 = vunpack.c.h.b16 %v1812
    %v1866 = vunpack.c.l.b16 %v1813
    %v1867 = vunpack.c.h.b16 %v1813
    %v1868 = vunpack.c.l.b16 %v1814
    %v1869 = vunpack.c.h.b16 %v1814
    %v1870 = vunpack.c.l.b16 %v1815
    %v1871 = vunpack.c.h.b16 %v1815
    %v1872 = vunpack.c.l.b16 %v1816
    %v1873 = vunpack.c.h.b16 %v1816
    %v1874 = vunpack.c.l.b16 %v1817
    %v1875 = vunpack.c.h.b16 %v1817
    %v1876 = vunpack.c.l.b16 %v1818
    %v1877 = vunpack.c.h.b16 %v1818
    %v1878 = vunpack.c.l.b16 %v1819
    %v1879 = vunpack.c.h.b16 %v1819
    %v1880 = vpack.c.b16 %v1850, %v1848
    %v1881 = vpack.c.b16 %v1851, %v1849
    %v1882 = vpack.c.b16 %v1854, %v1852
    %v1883 = vpack.c.b16 %v1855, %v1853
    %v1884 = vpack.c.b16 %v1858, %v1856
    %v1885 = vpack.c.b16 %v1859, %v1857
    %v1886 = vpack.c.b16 %v1862, %v1860
    %v1887 = vpack.c.b16 %v1863, %v1861
    %v1888 = vpack.c.b16 %v1866, %v1864
    %v1889 = vpack.c.b16 %v1867, %v1865
    %v1890 = vpack.c.b16 %v1870, %v1868
    %v1891 = vpack.c.b16 %v1871, %v1869
    %v1892 = vpack.c.b16 %v1874, %v1872
    %v1893 = vpack.c.b16 %v1875, %v1873
    %v1894 = vpack.c.b16 %v1878, %v1876
    %v1895 = vpack.c.b16 %v1879, %v1877
    %1912 = vmatprep.subr.bf16.mxu0 %v1895
    %1913 = vmatpush1.bf16.msra.mxu0 %v1894
    %1914 = vmatprep.subr.bf16.mxu0 %v1893
    %1915 = vmatpush1.bf16.msra.mxu0 %v1892
    %1916 = vmatprep.subr.bf16.mxu0 %v1891
    %1917 = vmatpush1.bf16.msra.mxu0 %v1890
    %1918 = vmatprep.subr.bf16.mxu0 %v1889
    %1919 = vmatpush1.bf16.msra.mxu0 %v1888
    %1920 = vmatprep.subr.bf16.mxu0 %v1887
    %1921 = vmatpush1.bf16.msra.mxu0 %v1886
    %1922 = vmatprep.subr.bf16.mxu0 %v1885
    %1923 = vmatpush1.bf16.msra.mxu0 %v1884
    %1924 = vmatprep.subr.bf16.mxu0 %v1883
    %1925 = vmatpush1.bf16.msra.mxu0 %v1882
    %1926 = vmatprep.subr.bf16.mxu0 %v1881
    %1927 = vmatpush1.bf16.msra.mxu0 %v1880
    %1928 = vmatprep.subr.bf16.mxu0 0
    %1929 = vmatpush2.bf16.msra.mxu0 0
    %1930 = vmatprep.subr.bf16.mxu0 0
    %1931 = vmatpush2.bf16.msra.mxu0 0
    %1932 = vmatprep.subr.bf16.mxu0 0
    %1933 = vmatpush2.bf16.msra.mxu0 0
    %1934 = vmatprep.subr.bf16.mxu0 0
    %1935 = vmatpush2.bf16.msra.mxu0 0
    %1936 = vmatprep.subr.bf16.mxu0 0
    %1937 = vmatpush2.bf16.msra.mxu0 0
    %1938 = vmatprep.subr.bf16.mxu0 0
    %1939 = vmatpush2.bf16.msra.mxu0 0
    %1940 = vmatprep.subr.bf16.mxu0 0
    %1941 = vmatpush2.bf16.msra.mxu0 0
    %1942 = vmatprep.subr.bf16.mxu0 0
    %1943 = vmatpush2.bf16.msra.mxu0 0
    %1944 = vmatprep.mubr.bf16.mxu0 0
    %1945 = vmatmul.mubr.bf16.gmra.mxu0 %v1802
    %v1946 = vpop.f32.mrf.mxu0
    %v1947 = vadd.f32 %v1825, %v1946
    %v1948 = vpop.f32.mrf.mxu0
    %v1949 = vadd.f32 %v1829, %v1948
    %v1950 = vpop.f32.mrf.mxu0
    %v1951 = vadd.f32 %v1825, %v1950
    %v1952 = vpop.f32.mrf.mxu0
    %v1953 = vadd.f32 %v1829, %v1952
    %1954 = vmatprep.mubr.bf16.mxu0 0
    %1955 = vmatmul.mubr.bf16.gmra.mxu0 %v1803
    %v1956 = vpop.f32.mrf.mxu0
    %v1957 = vadd.f32 %v1825, %v1956
    %v1958 = vpop.f32.mrf.mxu0
    %v1959 = vadd.f32 %v1829, %v1958
    %v1960 = vpop.f32.mrf.mxu0
    %v1961 = vadd.f32 %v1825, %v1960
    %v1962 = vpop.f32.mrf.mxu0
    %v1963 = vadd.f32 %v1829, %v1962
    %1964 = vdwg.mxu0
    %v1965 = vmul.f32 %v1947, 0.5
    %v1966 = vmul.f32 %v1949, 0.5
    %v1967 = vmul.f32 %v1951, 0.5
    %v1968 = vmul.f32 %v1953, 0.5
    %v1969 = vmul.f32 %v1957, 0.5
    %v1970 = vmul.f32 %v1959, 0.5
    %v1971 = vmul.f32 %v1961, 0.5
    %v1972 = vmul.f32 %v1963, 0.5
    %v1973 = vmul.f32 %v1947, %v1947
    %v1974 = vmul.f32 %v1949, %v1949
    %v1975 = vmul.f32 %v1951, %v1951
    %v1976 = vmul.f32 %v1953, %v1953
    %v1977 = vmul.f32 %v1957, %v1957
    %v1978 = vmul.f32 %v1959, %v1959
    %v1979 = vmul.f32 %v1961, %v1961
    %v1980 = vmul.f32 %v1963, %v1963
    %v1981 = vmul.f32 %v1947, %v1973
    %v1982 = vmul.f32 %v1949, %v1974
    %v1983 = vmul.f32 %v1951, %v1975
    %v1984 = vmul.f32 %v1953, %v1976
    %v1985 = vmul.f32 %v1957, %v1977
    %v1986 = vmul.f32 %v1959, %v1978
    %v1987 = vmul.f32 %v1961, %v1979
    %v1988 = vmul.f32 %v1963, %v1980
    %v1989 = vmul.f32 %v1981, 0.044715
    %v1990 = vmul.f32 %v1982, 0.044715
    %v1991 = vmul.f32 %v1983, 0.044715
    %v1992 = vmul.f32 %v1984, 0.044715
    %v1993 = vmul.f32 %v1985, 0.044715
    %v1994 = vmul.f32 %v1986, 0.044715
    %v1995 = vmul.f32 %v1987, 0.044715
    %v1996 = vmul.f32 %v1988, 0.044715
    %v1997 = vadd.f32 %v1947, %v1989
    %v1998 = vadd.f32 %v1949, %v1990
    %v1999 = vadd.f32 %v1951, %v1991
    %v2000 = vadd.f32 %v1953, %v1992
    %v2001 = vadd.f32 %v1957, %v1993
    %v2002 = vadd.f32 %v1959, %v1994
    %v2003 = vadd.f32 %v1961, %v1995
    %v2004 = vadd.f32 %v1963, %v1996
    %v2005 = vmul.f32 %v1997, 0.7978846
    %v2006 = vmul.f32 %v1998, 0.7978846
    %v2007 = vmul.f32 %v1999, 0.7978846
    %v2008 = vmul.f32 %v2000, 0.7978846
    %v2009 = vmul.f32 %v2001, 0.7978846
    %v2010 = vmul.f32 %v2002, 0.7978846
    %v2011 = vmul.f32 %v2003, 0.7978846
    %v2012 = vmul.f32 %v2004, 0.7978846
    %v2013 = vtanh.pop %v2005
    %v2014 = vtanh.pop %v2006
    %v2015 = vtanh.pop %v2007
    %v2016 = vtanh.pop %v2008
    %v2017 = vtanh.pop %v2009
    %v2018 = vtanh.pop %v2010
    %v2019 = vtanh.pop %v2011
    %v2020 = vtanh.pop %v2012
    %v2021 = vadd.f32 %v2013, 1.0
    %v2022 = vadd.f32 %v2014, 1.0
    %v2023 = vadd.f32 %v2015, 1.0
    %v2024 = vadd.f32 %v2016, 1.0
    %v2025 = vadd.f32 %v2017, 1.0
    %v2026 = vadd.f32 %v2018, 1.0
    %v2027 = vadd.f32 %v2019, 1.0
    %v2028 = vadd.f32 %v2020, 1.0
    %v2029 = vmul.f32 %v1965, %v2021
    %v2030 = vmul.f32 %v1966, %v2022
    %v2031 = vmul.f32 %v1967, %v2023
    %v2032 = vmul.f32 %v1968, %v2024
    %v2033 = vmul.f32 %v1969, %v2025
    %v2034 = vmul.f32 %v1970, %v2026
    %v2035 = vmul.f32 %v1971, %v2027
    %v2036 = vmul.f32 %v1972, %v2028
    %v2037 = vpack.c.bf16 %v2031, %v2029
    %v2038 = vpack.c.bf16 %v2032, %v2030
    %v2039 = vpack.c.bf16 %v2035, %v2033
    %v2040 = vpack.c.bf16 %v2036, %v2034
    %v2041 = vld [vmem:[#allocation14] sm:$0xf]
    %v2042 = vld [vmem:[#allocation14 + $0x4] sm:$0xf]
    %v2043 = vld [vmem:[#allocation14 + $0x8] sm:$0xf]
    %v2044 = vld [vmem:[#allocation14 + $0xc] sm:$0xf]
    %v2045 = vld [vmem:[#allocation14 + $0x10] sm:$0xf]
    %v2046 = vld [vmem:[#allocation14 + $0x14] sm:$0xf]
    %v2047 = vld [vmem:[#allocation14 + $0x18] sm:$0xf]
    %v2048 = vld [vmem:[#allocation14 + $0x1c] sm:$0xf]
    %v2049 = vld [vmem:[#allocation14 + $0x20] sm:$0xf]
    %v2050 = vld [vmem:[#allocation14 + $0x24] sm:$0xf]
    %v2051 = vld [vmem:[#allocation14 + $0x28] sm:$0xf]
    %v2052 = vld [vmem:[#allocation14 + $0x2c] sm:$0xf]
    %v2053 = vld [vmem:[#allocation14 + $0x30] sm:$0xf]
    %v2054 = vld [vmem:[#allocation14 + $0x34] sm:$0xf]
    %v2055 = vld [vmem:[#allocation14 + $0x38] sm:$0xf]
    %v2056 = vld [vmem:[#allocation14 + $0x3c] sm:$0xf]
    %v2057 = vld [vmem:[#allocation14 + $0x40] sm:$0xf]
    %v2058 = vld [vmem:[#allocation14 + $0x44] sm:$0xf]
    %v2059 = vld [vmem:[#allocation14 + $0x48] sm:$0xf]
    %v2060 = vld [vmem:[#allocation14 + $0x4c] sm:$0xf]
    %v2061 = vld [vmem:[#allocation14 + $0x50] sm:$0xf]
    %v2062 = vld [vmem:[#allocation14 + $0x54] sm:$0xf]
    %v2063 = vld [vmem:[#allocation14 + $0x58] sm:$0xf]
    %v2064 = vld [vmem:[#allocation14 + $0x5c] sm:$0xf]
    %v2065 = vld [vmem:[#allocation14 + $0x60] sm:$0xf]
    %v2066 = vld [vmem:[#allocation14 + $0x64] sm:$0xf]
    %v2067 = vld [vmem:[#allocation14 + $0x68] sm:$0xf]
    %v2068 = vld [vmem:[#allocation14 + $0x6c] sm:$0xf]
    %v2069 = vld [vmem:[#allocation14 + $0x70] sm:$0xf]
    %v2070 = vld [vmem:[#allocation14 + $0x74] sm:$0xf]
    %v2071 = vld [vmem:[#allocation14 + $0x78] sm:$0xf]
    %v2072 = vld [vmem:[#allocation14 + $0x7c] sm:$0xf]
    %v2073 = vld [vmem:[%s12] sm:$0x1]
    %v2075 = vlaneseq
    %v2076 = vshrl.u32 %v2075, 7
    %v2077 = vsub.s32 0, %v2076
    %v2078 = vrot.slane %v2073, %v2077
    %v2112 = vunpack.c.l.b16 %v2041
    %v2113 = vunpack.c.l.b16 %v2042
    %v2114 = vunpack.c.l.b16 %v2043
    %v2115 = vunpack.c.l.b16 %v2044
    %v2116 = vunpack.c.l.b16 %v2045
    %v2117 = vunpack.c.l.b16 %v2046
    %v2118 = vunpack.c.l.b16 %v2047
    %v2119 = vunpack.c.l.b16 %v2048
    %v2120 = vunpack.c.l.b16 %v2049
    %v2121 = vunpack.c.l.b16 %v2050
    %v2122 = vunpack.c.l.b16 %v2051
    %v2123 = vunpack.c.l.b16 %v2052
    %v2124 = vunpack.c.l.b16 %v2053
    %v2125 = vunpack.c.l.b16 %v2054
    %v2126 = vunpack.c.l.b16 %v2055
    %v2127 = vunpack.c.l.b16 %v2056
    %v2128 = vunpack.c.l.b16 %v2057
    %v2129 = vunpack.c.l.b16 %v2058
    %v2130 = vunpack.c.l.b16 %v2059
    %v2131 = vunpack.c.l.b16 %v2060
    %v2132 = vunpack.c.l.b16 %v2061
    %v2133 = vunpack.c.l.b16 %v2062
    %v2134 = vunpack.c.l.b16 %v2063
    %v2135 = vunpack.c.l.b16 %v2064
    %v2136 = vunpack.c.l.b16 %v2065
    %v2137 = vunpack.c.l.b16 %v2066
    %v2138 = vunpack.c.l.b16 %v2067
    %v2139 = vunpack.c.l.b16 %v2068
    %v2140 = vunpack.c.l.b16 %v2069
    %v2141 = vunpack.c.l.b16 %v2070
    %v2142 = vunpack.c.l.b16 %v2071
    %v2143 = vunpack.c.l.b16 %v2072
    %v2144 = vpack.c.b16 %v2113, %v2112
    %v2145 = vpack.c.b16 %v2115, %v2114
    %v2146 = vpack.c.b16 %v2117, %v2116
    %v2147 = vpack.c.b16 %v2119, %v2118
    %v2148 = vpack.c.b16 %v2121, %v2120
    %v2149 = vpack.c.b16 %v2123, %v2122
    %v2150 = vpack.c.b16 %v2125, %v2124
    %v2151 = vpack.c.b16 %v2127, %v2126
    %v2152 = vpack.c.b16 %v2129, %v2128
    %v2153 = vpack.c.b16 %v2131, %v2130
    %v2154 = vpack.c.b16 %v2133, %v2132
    %v2155 = vpack.c.b16 %v2135, %v2134
    %v2156 = vpack.c.b16 %v2137, %v2136
    %v2157 = vpack.c.b16 %v2139, %v2138
    %v2158 = vpack.c.b16 %v2141, %v2140
    %v2159 = vpack.c.b16 %v2143, %v2142
    %2176 = vmatprep.subr.bf16.mxu0 0
    %2177 = vmatpush1.bf16.msra.mxu0 %v2151
    %2178 = vmatprep.subr.bf16.mxu0 0
    %2179 = vmatpush1.bf16.msra.mxu0 %v2150
    %2180 = vmatprep.subr.bf16.mxu0 0
    %2181 = vmatpush1.bf16.msra.mxu0 %v2149
    %2182 = vmatprep.subr.bf16.mxu0 0
    %2183 = vmatpush1.bf16.msra.mxu0 %v2148
    %2184 = vmatprep.subr.bf16.mxu0 0
    %2185 = vmatpush1.bf16.msra.mxu0 %v2147
    %2186 = vmatprep.subr.bf16.mxu0 0
    %2187 = vmatpush1.bf16.msra.mxu0 %v2146
    %2188 = vmatprep.subr.bf16.mxu0 0
    %2189 = vmatpush1.bf16.msra.mxu0 %v2145
    %2190 = vmatprep.subr.bf16.mxu0 0
    %2191 = vmatpush1.bf16.msra.mxu0 %v2144
    %2192 = vmatprep.subr.bf16.mxu0 0
    %2193 = vmatpush2.bf16.msra.mxu0 %v2159
    %2194 = vmatprep.subr.bf16.mxu0 0
    %2195 = vmatpush2.bf16.msra.mxu0 %v2158
    %2196 = vmatprep.subr.bf16.mxu0 0
    %2197 = vmatpush2.bf16.msra.mxu0 %v2157
    %2198 = vmatprep.subr.bf16.mxu0 0
    %2199 = vmatpush2.bf16.msra.mxu0 %v2156
    %2200 = vmatprep.subr.bf16.mxu0 0
    %2201 = vmatpush2.bf16.msra.mxu0 %v2155
    %2202 = vmatprep.subr.bf16.mxu0 0
    %2203 = vmatpush2.bf16.msra.mxu0 %v2154
    %2204 = vmatprep.subr.bf16.mxu0 0
    %2205 = vmatpush2.bf16.msra.mxu0 %v2153
    %2206 = vmatprep.subr.bf16.mxu0 0
    %2207 = vmatpush2.bf16.msra.mxu0 %v2152
    %2208 = vmatprep.mubr.bf16.mxu0 %v2038
    %2209 = vmatmul.mubr.bf16.gmra.mxu0 %v2037
    %v2210 = vpop.f32.mrf.mxu0
    %v2211 = vadd.f32 %v2078, %v2210
    %v2212 = vpop.f32.mrf.mxu0
    %v2213 = vpop.f32.mrf.mxu0
    %v2214 = vadd.f32 %v2078, %v2213
    %v2215 = vpop.f32.mrf.mxu0
    %2216 = vmatprep.mubr.bf16.mxu0 %v2040
    %2217 = vmatmul.mubr.bf16.gmra.mxu0 %v2039
    %v2218 = vpop.f32.mrf.mxu0
    %v2219 = vadd.f32 %v2078, %v2218
    %v2220 = vpop.f32.mrf.mxu0
    %v2221 = vpop.f32.mrf.mxu0
    %v2222 = vadd.f32 %v2078, %v2221
    %v2223 = vpop.f32.mrf.mxu0
    %2224 = vdwg.mxu0
    %v2225 = vadd.f32 %v1798, %v2211
    %v2226 = vadd.f32 %v1799, %v2214
    %v2227 = vadd.f32 %v1800, %v2219
    %v2228 = vadd.f32 %v1801, %v2222
    %v2229 = vld [vmem:[%s15] sm:$0x1]
    %v2230 = vld [vmem:[%s16] sm:$0x1]
    %2231 = vadd.xlane.f32.xlu0 %v2225
    %v2232 = vpop.xlane.xlu0 %2231
    %2233 = vadd.xlane.f32.xlu0 %v2226
    %v2234 = vpop.xlane.xlu0 %2233
    %2235 = vadd.xlane.f32.xlu0 %v2227
    %v2236 = vpop.xlane.xlu0 %2235
    %2237 = vadd.xlane.f32.xlu0 %v2228
    %v2238 = vpop.xlane.xlu0 %2237
    %v2239 = vmul.f32 %v2232, %v1745
    %v2240 = vmul.f32 %v2234, %v1745
    %v2241 = vmul.f32 %v2236, %v1745
    %v2242 = vmul.f32 %v2238, %v1745
    %v2243 = vsub.f32 %v2225, %v2239
    %v2244 = vsub.f32 %v2226, %v2240
    %v2245 = vsub.f32 %v2227, %v2241
    %v2246 = vsub.f32 %v2228, %v2242
    %v2247 = vmul.f32 %v2243, %v2243
    %v2248 = vmul.f32 %v2244, %v2244
    %v2249 = vmul.f32 %v2245, %v2245
    %v2250 = vmul.f32 %v2246, %v2246
    %2251 = vadd.xlane.f32.xlu0 %v2247
    %v2252 = vpop.xlane.xlu0 %2251
    %2253 = vadd.xlane.f32.xlu0 %v2248
    %v2254 = vpop.xlane.xlu0 %2253
    %2255 = vadd.xlane.f32.xlu0 %v2249
    %v2256 = vpop.xlane.xlu0 %2255
    %2257 = vadd.xlane.f32.xlu0 %v2250
    %v2258 = vpop.xlane.xlu0 %2257
    %v2259 = vmul.f32 %v2252, %v1745
    %v2260 = vmul.f32 %v2254, %v1745
    %v2261 = vmul.f32 %v2256, %v1745
    %v2262 = vmul.f32 %v2258, %v1745
    %v2263 = vadd.f32 %v2259, 1e-05
    %v2264 = vadd.f32 %v2260, 1e-05
    %v2265 = vadd.f32 %v2261, 1e-05
    %v2266 = vadd.f32 %v2262, 1e-05
    %v2267 = vrsqrt.pop %v2263
    %v2268 = vrsqrt.pop %v2264
    %v2269 = vrsqrt.pop %v2265
    %v2270 = vrsqrt.pop %v2266
    %v2271 = vmul.f32 %v2243, %v2267
    %v2272 = vmul.f32 %v2244, %v2268
    %v2273 = vmul.f32 %v2245, %v2269
    %v2274 = vmul.f32 %v2246, %v2270
    %v2276 = vlaneseq
    %v2277 = vshrl.u32 %v2276, 7
    %v2278 = vsub.s32 0, %v2277
    %v2279 = vrot.slane %v2229, %v2278
    %v2281 = vmul.f32 %v2279, %v2271
    %v2282 = vmul.f32 %v2279, %v2272
    %v2283 = vmul.f32 %v2279, %v2273
    %v2284 = vmul.f32 %v2279, %v2274
    %v2286 = vlaneseq
    %v2287 = vshrl.u32 %v2286, 7
    %v2288 = vsub.s32 0, %v2287
    %v2289 = vrot.slane %v2230, %v2288
    %v2291 = vadd.f32 %v2281, %v2289
    %v2292 = vadd.f32 %v2282, %v2289
    %v2293 = vadd.f32 %v2283, %v2289
    %v2294 = vadd.f32 %v2284, %v2289
    %2295 = vst [vmem:[#allocation15] sm:$0xff] %v2291
    %2296 = vst [vmem:[#allocation15 + $0x8] sm:$0xff] %v2292
    %2297 = vst [vmem:[#allocation15 + $0x10] sm:$0xff] %v2293
    %2298 = vst [vmem:[#allocation15 + $0x18] sm:$0xff] %v2294
    // Predicated region
    $region98: #{tpu_custom_call.1} parent=1 // pred_check
      _
    $region99: #{tpu_custom_call.1} parent=1 // pred_check_branch
      %2300 = sbr.rel (0) target = $region101
    $region100: #{tpu_custom_call.1} parent=1 // pred_region
      %s2302 = ssub.s32 512, 512
      %2303 = vsyncadd [#allocation5], %s2302
      %s2304 = sshll.u32 [#allocation15], 4
      %s2305 = int_to_ptr.vmem [resolvable:$true] %s2304
      %2310 = dma.vmem_to_hbm [thread:$0]  %s2305, 512, %s17, [#allocation5], 128, 128, 8
    $region101: #{tpu_custom_call.1} parent=1 // pred_fallthru
      _
    // Predicated region
    $region102: #{tpu_custom_call.1} parent=1 // pred_check
      _
    $region103: #{tpu_custom_call.1} parent=1 // pred_check_branch
      %2312 = sbr.rel (0) target = $region105
    $region104: #{tpu_custom_call.1} parent=1 // pred_region
      %2313 = dma.done [#allocation5], 512
    $region105: #{tpu_custom_call.1} parent=1 // pred_fallthru
      _
    %2314 = vsyncpa [#allocation4], 1
    %2315 = vsyncpa [#allocation7], 1
    %2316 = vsyncpa [#allocation10], 1
    %2317 = vsyncpa [#allocation13], 1
    %2318 = vsyncpa [#allocation5], 1

</llo_original>
